<compile_context>
chip_gen: v7x
topology: tpu7x:2x2x1
jax: 0.10.0
libtpu: 0.0.40
codegen_flags: <defaults>
</compile_context>

<pallas_src>
import math
import jax
import jax.numpy as jnp
from jax.experimental import pallas as pl
from jax.experimental.pallas import tpu as pltpu

# ---------------- model hyper-parameters (from the PyTorch module) -------------
NUM_FEATURE = 3
NUM_FEATURE_STR = NUM_FEATURE + 13          # 16
HIDDEN = 64
NUM_LAYERS = 6
ALPHA = 0.9
THETA = 0.3
BETAS = tuple(math.log(THETA / (l + 1) + 1.0) for l in range(NUM_LAYERS))

N = 128            # number of graph nodes (small synthetic graph)
IN_PACK = 32       # packed input lanes: cols 0:3 = data, cols 16:32 = data_str
WIDE = 2 * HIDDEN  # 128: fused two-branch state width (lane-dense)


# ------------------------------- Pallas kernel ---------------------------------
def net_kernel(a_ref, xin_ref, win_ref, bin_ref, wx_ref, wout_ref, bout_ref,
               wh_hbm_ref, out_ref, wh_buf, sem):
    # manual double-buffered prefetch of the per-layer Wh weights from HBM
    def fetch(l):
        cp = pltpu.make_async_copy(wh_hbm_ref.at[l], wh_buf.at[l & 1],
                                   sem.at[l & 1])
        cp.start()
        return cp

    copies = [None] * NUM_LAYERS
    copies[0] = fetch(0)

    # Fused input linears + relu -> X0 = [x_0(a) | x_0(b)]  shape (N, 128)
    x0 = jnp.dot(xin_ref[...], win_ref[...],
                 preferred_element_type=jnp.float32) + bin_ref[...]
    x0 = jnp.maximum(x0, 0.0)

    # All six residual terms in one wide MXU-friendly matmul, off the serial
    # layer chain:  R[:, l*128:(l+1)*128] = X0 @ Wx[l]          shape (N, 768)
    r = jnp.dot(x0, wx_ref[...], preferred_element_type=jnp.float32)

    x = x0
    for l in range(NUM_LAYERS):                    # statically unrolled, 6 layers
        if l + 1 < NUM_LAYERS:                     # prefetch next layer's Wh
            copies[l + 1] = fetch(l + 1)
        copies[l].wait()
        # propagation for both branches at once ((1-alpha) folded into Wh)
        h = jnp.dot(a_ref[...], x, preferred_element_type=jnp.float32)  # (N,128)
        x = jnp.maximum(
            jnp.dot(h, wh_buf[l & 1], preferred_element_type=jnp.float32)
            + r[:, l * WIDE:(l + 1) * WIDE],
            0.0)

    # Fused output linears: col 0 = z, col 1 = z1, rest zero (lane-dense store)
    out_ref[...] = jnp.dot(x, wout_ref[...],
                           preferred_element_type=jnp.float32) + bout_ref[...]


# ------------------------------- wrapper ---------------------------------------
def net_forward(a_hat, xin, p):
    vmem = pl.BlockSpec(memory_space=pltpu.MemorySpace.VMEM)
    hbm = pl.BlockSpec(memory_space=pl.ANY)
    out = pl.pallas_call(
        net_kernel,
        out_shape=jax.ShapeDtypeStruct((N, WIDE), jnp.float32),
        in_specs=[vmem, vmem, vmem, vmem, vmem, vmem, vmem, hbm],
        out_specs=vmem,
        scratch_shapes=[pltpu.VMEM((2, WIDE, WIDE), jnp.float32),
                        pltpu.SemaphoreType.DMA((2,))],
    )(a_hat, xin, p["w_in"], p["b_in"], p["w_x"], p["w_out"], p["b_out"],
      p["w_h"])
    # true outputs are (N, 1): columns 0 (z) and 1 (z1)
    return out[:, 0:1], out[:, 1:2]


# ------------------------------- parameters ------------------------------------
def make_raw_params(key):
    ks = jax.random.split(key, 12)

    def linear(kw, kb, fan_in, fan_out):
        bound = 1.0 / math.sqrt(fan_in)
        w = jax.random.uniform(kw, (fan_in, fan_out), jnp.float32, -bound, bound)
        b = jax.random.uniform(kb, (fan_out,), jnp.float32, -bound, bound)
        return w, b

    lin0_w, lin0_b = linear(ks[0], ks[1], NUM_FEATURE, HIDDEN)        # lins[0]
    lin11_w, lin11_b = linear(ks[2], ks[3], NUM_FEATURE_STR, HIDDEN)  # lin11
    lout_w, lout_b = linear(ks[4], ks[5], HIDDEN, 1)                  # lins[1]
    lout2_w, lout2_b = linear(ks[6], ks[7], HIDDEN, 1)                # lin2

    gscale = math.sqrt(6.0 / (HIDDEN + HIDDEN))
    convs_w1 = jax.random.uniform(ks[8], (NUM_LAYERS, HIDDEN, HIDDEN), jnp.float32, -gscale, gscale)
    convs_w2 = jax.random.uniform(ks[9], (NUM_LAYERS, HIDDEN, HIDDEN), jnp.float32, -gscale, gscale)
    convs1_w1 = jax.random.uniform(ks[10], (NUM_LAYERS, HIDDEN, HIDDEN), jnp.float32, -gscale, gscale)
    convs1_w2 = jax.random.uniform(ks[11], (NUM_LAYERS, HIDDEN, HIDDEN), jnp.float32, -gscale, gscale)

    return dict(lin0_w=lin0_w, lin0_b=lin0_b, lin11_w=lin11_w, lin11_b=lin11_b,
                lout_w=lout_w, lout_b=lout_b, lout2_w=lout2_w, lout2_b=lout2_b,
                convs_w1=convs_w1, convs_w2=convs_w2,
                convs1_w1=convs1_w1, convs1_w2=convs1_w2)


def fold_params(raw):
    """Host-side algebraic folding of alpha/beta + branch/in/out fusion."""
    # fused input linear: (32, 128)
    w_in = jnp.zeros((IN_PACK, WIDE), jnp.float32)
    w_in = w_in.at[:NUM_FEATURE, :HIDDEN].set(raw["lin0_w"])
    w_in = w_in.at[16:16 + NUM_FEATURE_STR, HIDDEN:].set(raw["lin11_w"])
    b_in = jnp.concatenate([raw["lin0_b"], raw["lin11_b"]]).reshape(1, WIDE)

    # per-layer block-diagonal, alpha/beta-folded conv weights:
    #   w_h: (6, 128, 128)  (streamed from HBM, applied to h = A @ x)
    #   w_x: (128, 768)     (all six residual blocks concatenated on lanes)
    eye = jnp.eye(HIDDEN, dtype=jnp.float32)
    wh_list, wx_cols = [], []
    for l in range(NUM_LAYERS):
        beta = BETAS[l]
        wh_a = (1.0 - ALPHA) * ((1.0 - beta) * eye + beta * raw["convs_w1"][l])
        wh_b = (1.0 - ALPHA) * ((1.0 - beta) * eye + beta * raw["convs1_w1"][l])
        wx_a = ALPHA * ((1.0 - beta) * eye + beta * raw["convs_w2"][l])
        wx_b = ALPHA * ((1.0 - beta) * eye + beta * raw["convs1_w2"][l])

        wh = jnp.zeros((WIDE, WIDE), jnp.float32)
        wh = wh.at[:HIDDEN, :HIDDEN].set(wh_a)
        wh = wh.at[HIDDEN:, HIDDEN:].set(wh_b)
        wh_list.append(wh)

        wx = jnp.zeros((WIDE, WIDE), jnp.float32)
        wx = wx.at[:HIDDEN, :HIDDEN].set(wx_a)
        wx = wx.at[HIDDEN:, HIDDEN:].set(wx_b)
        wx_cols.append(wx)

    w_h = jnp.stack(wh_list, axis=0)                 # (6, 128, 128)
    w_x = jnp.concatenate(wx_cols, axis=1)           # (128, 768)

    # fused output linear: (128, 128), col 0 <- z head, col 1 <- z1 head
    w_out = jnp.zeros((WIDE, WIDE), jnp.float32)
    w_out = w_out.at[:HIDDEN, 0:1].set(raw["lout_w"])
    w_out = w_out.at[HIDDEN:, 1:2].set(raw["lout2_w"])
    b_out = jnp.zeros((1, WIDE), jnp.float32)
    b_out = b_out.at[0, 0].set(raw["lout_b"][0])
    b_out = b_out.at[0, 1].set(raw["lout2_b"][0])

    return dict(w_in=w_in, b_in=b_in, w_h=w_h, w_x=w_x, w_out=w_out, b_out=b_out)


# ------------------------------- graph / features ------------------------------
def make_graph_and_features(key):
    kadj, kx, kxs = jax.random.split(key, 3)
    # synthetic undirected graph, no self loops (add_self_loops=False)
    rand = jax.random.uniform(kadj, (N, N))
    adj = (rand + rand.T) * 0.5 > 0.9
    adj = adj & ~jnp.eye(N, dtype=bool)
    adj = adj.astype(jnp.float32)
    # gcn_norm: A_hat = D^{-1/2} A D^{-1/2}; deg==0 -> 0 (matches PyG masked_fill)
    deg = adj.sum(axis=1)
    dinv = jnp.where(deg > 0, jax.lax.rsqrt(deg), 0.0)
    a_hat = dinv[:, None] * adj * dinv[None, :]

    x = jax.random.normal(kx, (N, NUM_FEATURE), jnp.float32)        # `data`
    xs = jax.random.normal(kxs, (N, NUM_FEATURE_STR), jnp.float32)  # `data_str`
    xin = jnp.zeros((N, IN_PACK), jnp.float32)
    xin = xin.at[:, :NUM_FEATURE].set(x)
    xin = xin.at[:, 16:16 + NUM_FEATURE_STR].set(xs)
    return a_hat, x, xs, xin


# ------------------------------- pure-JAX reference ----------------------------
def reference_forward(a_hat, x, xs, raw):
    x0 = jnp.maximum(x @ raw["lin0_w"] + raw["lin0_b"], 0.0)
    x1_0 = jnp.maximum(xs @ raw["lin11_w"] + raw["lin11_b"], 0.0)

    def stack(x_init, w1, w2):
        xc = x_init
        for l in range(NUM_LAYERS):
            beta = BETAS[l]
            h = (1.0 - ALPHA) * (a_hat @ xc)
            x0s = ALPHA * x_init
            out = ((1.0 - beta) * h + beta * (h @ w1[l])
                   + (1.0 - beta) * x0s + beta * (x0s @ w2[l]))
            xc = jnp.maximum(out, 0.0)
        return xc

    xa = stack(x0, raw["convs_w1"], raw["convs_w2"])
    xb = stack(x1_0, raw["convs1_w1"], raw["convs1_w2"])
    z = xa @ raw["lout_w"] + raw["lout_b"]
    z1 = xb @ raw["lout2_w"] + raw["lout2_b"]
    return z, z1


# TODO(synk): training-mode dropout / dropout_adj (stochastic edge & feature
# masking) omitted; eval-mode forward is implemented exactly.

if __name__ == "__main__":
    key = jax.random.PRNGKey(0)
    kg, kp = jax.random.split(key)
    a_hat, x, xs, xin = make_graph_and_features(kg)
    raw = make_raw_params(kp)
    fused = fold_params(raw)

    z, z1 = jax.jit(net_forward)(a_hat, xin, fused)
    jax.block_until_ready((z, z1))
    assert z.shape == (N, 1) and z1.shape == (N, 1)

    z_ref, z1_ref = reference_forward(a_hat, x, xs, raw)
    assert jnp.allclose(z, z_ref, rtol=1e-4, atol=1e-4)
    assert jnp.allclose(z1, z1_ref, rtol=1e-4, atol=1e-4)
    print("KERNEL_OK")
</pallas_src>

<mosaic_0001>
module attributes {stable_mosaic.version = 11 : i64} {
  func.func @net_kernel(%arg0: memref<128x128xf32, #tpu.memory_space<vmem>>, %arg1: memref<128x32xf32, #tpu.memory_space<vmem>>, %arg2: memref<32x128xf32, #tpu.memory_space<vmem>>, %arg3: memref<1x128xf32, #tpu.memory_space<vmem>>, %arg4: memref<128x768xf32, #tpu.memory_space<vmem>>, %arg5: memref<128x128xf32, #tpu.memory_space<vmem>>, %arg6: memref<1x128xf32, #tpu.memory_space<vmem>>, %arg7: memref<6x128x128xf32, #tpu.memory_space<any>>, %arg8: memref<128x128xf32, #tpu.memory_space<vmem>>, %arg9: memref<2x128x128xf32, #tpu.memory_space<vmem>>, %arg10: memref<2x!tpu.dma_semaphore, #tpu.memory_space<semaphore_mem>>) attributes {dimension_semantics = [], scalar_prefetch = 0 : i64, scratch_operands = 2 : i64, tpu.core_type = #tpu.core_type<tc>} {
    %c0_i32 = arith.constant 0 : i32
    %c0_i32_0 = arith.constant 0 : i32
    %c0_i32_1 = arith.constant 0 : i32
    %c0_i32_2 = arith.constant 0 : i32
    %c0_i32_3 = arith.constant 0 : i32
    %0 = tpu.memref_slice %arg7[%c0_i32, %c0_i32_2, %c0_i32_3] : memref<6x128x128xf32, #tpu.memory_space<any>> -> memref<1x128x128xf32, #tpu.memory_space<any>>
    %1 = tpu.memref_squeeze %0 : memref<1x128x128xf32, #tpu.memory_space<any>> -> memref<128x128xf32, #tpu.memory_space<any>>
    %c0_i32_4 = arith.constant 0 : i32
    %c0_i32_5 = arith.constant 0 : i32
    %2 = tpu.memref_slice %arg9[%c0_i32_0, %c0_i32_4, %c0_i32_5] : memref<2x128x128xf32, #tpu.memory_space<vmem>> -> memref<1x128x128xf32, #tpu.memory_space<vmem>>
    %3 = tpu.memref_squeeze %2 : memref<1x128x128xf32, #tpu.memory_space<vmem>> -> memref<128x128xf32, #tpu.memory_space<vmem>>
    %4 = tpu.memref_slice %arg10[%c0_i32_1] : memref<2x!tpu.dma_semaphore, #tpu.memory_space<semaphore_mem>> -> memref<1x!tpu.dma_semaphore, #tpu.memory_space<semaphore_mem>>
    %5 = tpu.memref_squeeze %4 : memref<1x!tpu.dma_semaphore, #tpu.memory_space<semaphore_mem>> -> memref<!tpu.dma_semaphore, #tpu.memory_space<semaphore_mem>>
    tpu.enqueue_dma source(%1 : memref<128x128xf32, #tpu.memory_space<any>>) target(%3 : memref<128x128xf32, #tpu.memory_space<vmem>>) target_semaphore(%5 : memref<!tpu.dma_semaphore, #tpu.memory_space<semaphore_mem>>)
    %c0 = arith.constant 0 : index
    %c0_6 = arith.constant 0 : index
    %6 = vector.load %arg1[%c0, %c0_6] : memref<128x32xf32, #tpu.memory_space<vmem>>, vector<128x32xf32>
    %c0_7 = arith.constant 0 : index
    %c0_8 = arith.constant 0 : index
    %7 = vector.load %arg2[%c0_7, %c0_8] : memref<32x128xf32, #tpu.memory_space<vmem>>, vector<32x128xf32>
    %cst = arith.constant dense<0.000000e+00> : vector<128x128xf32>
    %8 = tpu.matmul %6, %7, %cst {dimension_numbers = #tpu.dot_dimension_numbers<[1], [0], [0], [1], [0, 0, 1, 1], [], []>} : vector<128x32xf32>, vector<32x128xf32>, vector<128x128xf32> -> vector<128x128xf32>
    %c0_9 = arith.constant 0 : index
    %c0_10 = arith.constant 0 : index
    %9 = vector.load %arg3[%c0_9, %c0_10] : memref<1x128xf32, #tpu.memory_space<vmem>>, vector<1x128xf32>
    %10 = vector.broadcast %9 : vector<1x128xf32> to vector<128x128xf32>
    %11 = arith.addf %8, %10 : vector<128x128xf32>
    %cst_11 = arith.constant 0.000000e+00 : f32
    %12 = vector.broadcast %cst_11 : f32 to vector<128x128xf32>
    %13 = arith.maximumf %11, %12 : vector<128x128xf32>
    %c0_12 = arith.constant 0 : index
    %c0_13 = arith.constant 0 : index
    %14 = vector.load %arg4[%c0_12, %c0_13] : memref<128x768xf32, #tpu.memory_space<vmem>>, vector<128x768xf32>
    %cst_14 = arith.constant dense<0.000000e+00> : vector<128x768xf32>
    %15 = tpu.matmul %13, %14, %cst_14 {dimension_numbers = #tpu.dot_dimension_numbers<[1], [0], [0], [1], [0, 0, 1, 1], [], []>} : vector<128x128xf32>, vector<128x768xf32>, vector<128x768xf32> -> vector<128x768xf32>
    %c1_i32 = arith.constant 1 : i32
    %c1_i32_15 = arith.constant 1 : i32
    %c1_i32_16 = arith.constant 1 : i32
    %c0_i32_17 = arith.constant 0 : i32
    %c0_i32_18 = arith.constant 0 : i32
    %16 = tpu.memref_slice %arg7[%c1_i32, %c0_i32_17, %c0_i32_18] : memref<6x128x128xf32, #tpu.memory_space<any>> -> memref<1x128x128xf32, #tpu.memory_space<any>>
    %17 = tpu.memref_squeeze %16 : memref<1x128x128xf32, #tpu.memory_space<any>> -> memref<128x128xf32, #tpu.memory_space<any>>
    %c0_i32_19 = arith.constant 0 : i32
    %c0_i32_20 = arith.constant 0 : i32
    %18 = tpu.memref_slice %arg9[%c1_i32_15, %c0_i32_19, %c0_i32_20] : memref<2x128x128xf32, #tpu.memory_space<vmem>> -> memref<1x128x128xf32, #tpu.memory_space<vmem>>
    %19 = tpu.memref_squeeze %18 : memref<1x128x128xf32, #tpu.memory_space<vmem>> -> memref<128x128xf32, #tpu.memory_space<vmem>>
    %20 = tpu.memref_slice %arg10[%c1_i32_16] : memref<2x!tpu.dma_semaphore, #tpu.memory_space<semaphore_mem>> -> memref<1x!tpu.dma_semaphore, #tpu.memory_space<semaphore_mem>>
    %21 = tpu.memref_squeeze %20 : memref<1x!tpu.dma_semaphore, #tpu.memory_space<semaphore_mem>> -> memref<!tpu.dma_semaphore, #tpu.memory_space<semaphore_mem>>
    tpu.enqueue_dma source(%17 : memref<128x128xf32, #tpu.memory_space<any>>) target(%19 : memref<128x128xf32, #tpu.memory_space<vmem>>) target_semaphore(%21 : memref<!tpu.dma_semaphore, #tpu.memory_space<semaphore_mem>>)
    %c0_i32_21 = arith.constant 0 : i32
    %c0_i32_22 = arith.constant 0 : i32
    %c0_i32_23 = arith.constant 0 : i32
    %c0_i32_24 = arith.constant 0 : i32
    %c0_i32_25 = arith.constant 0 : i32
    %22 = tpu.memref_slice %arg7[%c0_i32_21, %c0_i32_24, %c0_i32_25] : memref<6x128x128xf32, #tpu.memory_space<any>> -> memref<1x128x128xf32, #tpu.memory_space<any>>
    %23 = tpu.memref_squeeze %22 : memref<1x128x128xf32, #tpu.memory_space<any>> -> memref<128x128xf32, #tpu.memory_space<any>>
    %c0_i32_26 = arith.constant 0 : i32
    %c0_i32_27 = arith.constant 0 : i32
    %24 = tpu.memref_slice %arg9[%c0_i32_22, %c0_i32_26, %c0_i32_27] : memref<2x128x128xf32, #tpu.memory_space<vmem>> -> memref<1x128x128xf32, #tpu.memory_space<vmem>>
    %25 = tpu.memref_squeeze %24 : memref<1x128x128xf32, #tpu.memory_space<vmem>> -> memref<128x128xf32, #tpu.memory_space<vmem>>
    %26 = tpu.memref_slice %arg10[%c0_i32_23] : memref<2x!tpu.dma_semaphore, #tpu.memory_space<semaphore_mem>> -> memref<1x!tpu.dma_semaphore, #tpu.memory_space<semaphore_mem>>
    %27 = tpu.memref_squeeze %26 : memref<1x!tpu.dma_semaphore, #tpu.memory_space<semaphore_mem>> -> memref<!tpu.dma_semaphore, #tpu.memory_space<semaphore_mem>>
    tpu.wait_dma2 semaphore(%27 : memref<!tpu.dma_semaphore, #tpu.memory_space<semaphore_mem>>) src(%23 : memref<128x128xf32, #tpu.memory_space<any>>) dst(%25 : memref<128x128xf32, #tpu.memory_space<vmem>>)
    %c0_28 = arith.constant 0 : index
    %c0_29 = arith.constant 0 : index
    %28 = vector.load %arg0[%c0_28, %c0_29] : memref<128x128xf32, #tpu.memory_space<vmem>>, vector<128x128xf32>
    %cst_30 = arith.constant dense<0.000000e+00> : vector<128x128xf32>
    %29 = tpu.matmul %28, %13, %cst_30 {dimension_numbers = #tpu.dot_dimension_numbers<[1], [0], [0], [1], [0, 0, 1, 1], [], []>} : vector<128x128xf32>, vector<128x128xf32>, vector<128x128xf32> -> vector<128x128xf32>
    %c0_31 = arith.constant 0 : index
    %c0_32 = arith.constant 0 : index
    %c0_33 = arith.constant 0 : index
    %30 = vector.load %arg9[%c0_31, %c0_32, %c0_33] : memref<2x128x128xf32, #tpu.memory_space<vmem>>, vector<1x128x128xf32>
    %31 = vector.shape_cast %30 : vector<1x128x128xf32> to vector<128x128xf32>
    %cst_34 = arith.constant dense<0.000000e+00> : vector<128x128xf32>
    %32 = tpu.matmul %29, %31, %cst_34 {dimension_numbers = #tpu.dot_dimension_numbers<[1], [0], [0], [1], [0, 0, 1, 1], [], []>} : vector<128x128xf32>, vector<128x128xf32>, vector<128x128xf32> -> vector<128x128xf32>
    %33 = vector.extract_strided_slice %15 {offsets = [0, 0], sizes = [128, 128], strides = [1, 1]} : vector<128x768xf32> to vector<128x128xf32>
    %34 = arith.addf %32, %33 : vector<128x128xf32>
    %cst_35 = arith.constant 0.000000e+00 : f32
    %35 = vector.broadcast %cst_35 : f32 to vector<128x128xf32>
    %36 = arith.maximumf %34, %35 : vector<128x128xf32>
    %c2_i32 = arith.constant 2 : i32
    %c0_i32_36 = arith.constant 0 : i32
    %c0_i32_37 = arith.constant 0 : i32
    %c0_i32_38 = arith.constant 0 : i32
    %c0_i32_39 = arith.constant 0 : i32
    %37 = tpu.memref_slice %arg7[%c2_i32, %c0_i32_38, %c0_i32_39] : memref<6x128x128xf32, #tpu.memory_space<any>> -> memref<1x128x128xf32, #tpu.memory_space<any>>
    %38 = tpu.memref_squeeze %37 : memref<1x128x128xf32, #tpu.memory_space<any>> -> memref<128x128xf32, #tpu.memory_space<any>>
    %c0_i32_40 = arith.constant 0 : i32
    %c0_i32_41 = arith.constant 0 : i32
    %39 = tpu.memref_slice %arg9[%c0_i32_36, %c0_i32_40, %c0_i32_41] : memref<2x128x128xf32, #tpu.memory_space<vmem>> -> memref<1x128x128xf32, #tpu.memory_space<vmem>>
    %40 = tpu.memref_squeeze %39 : memref<1x128x128xf32, #tpu.memory_space<vmem>> -> memref<128x128xf32, #tpu.memory_space<vmem>>
    %41 = tpu.memref_slice %arg10[%c0_i32_37] : memref<2x!tpu.dma_semaphore, #tpu.memory_space<semaphore_mem>> -> memref<1x!tpu.dma_semaphore, #tpu.memory_space<semaphore_mem>>
    %42 = tpu.memref_squeeze %41 : memref<1x!tpu.dma_semaphore, #tpu.memory_space<semaphore_mem>> -> memref<!tpu.dma_semaphore, #tpu.memory_space<semaphore_mem>>
    tpu.enqueue_dma source(%38 : memref<128x128xf32, #tpu.memory_space<any>>) target(%40 : memref<128x128xf32, #tpu.memory_space<vmem>>) target_semaphore(%42 : memref<!tpu.dma_semaphore, #tpu.memory_space<semaphore_mem>>)
    %c1_i32_42 = arith.constant 1 : i32
    %c1_i32_43 = arith.constant 1 : i32
    %c1_i32_44 = arith.constant 1 : i32
    %c0_i32_45 = arith.constant 0 : i32
    %c0_i32_46 = arith.constant 0 : i32
    %43 = tpu.memref_slice %arg7[%c1_i32_42, %c0_i32_45, %c0_i32_46] : memref<6x128x128xf32, #tpu.memory_space<any>> -> memref<1x128x128xf32, #tpu.memory_space<any>>
    %44 = tpu.memref_squeeze %43 : memref<1x128x128xf32, #tpu.memory_space<any>> -> memref<128x128xf32, #tpu.memory_space<any>>
    %c0_i32_47 = arith.constant 0 : i32
    %c0_i32_48 = arith.constant 0 : i32
    %45 = tpu.memref_slice %arg9[%c1_i32_43, %c0_i32_47, %c0_i32_48] : memref<2x128x128xf32, #tpu.memory_space<vmem>> -> memref<1x128x128xf32, #tpu.memory_space<vmem>>
    %46 = tpu.memref_squeeze %45 : memref<1x128x128xf32, #tpu.memory_space<vmem>> -> memref<128x128xf32, #tpu.memory_space<vmem>>
    %47 = tpu.memref_slice %arg10[%c1_i32_44] : memref<2x!tpu.dma_semaphore, #tpu.memory_space<semaphore_mem>> -> memref<1x!tpu.dma_semaphore, #tpu.memory_space<semaphore_mem>>
    %48 = tpu.memref_squeeze %47 : memref<1x!tpu.dma_semaphore, #tpu.memory_space<semaphore_mem>> -> memref<!tpu.dma_semaphore, #tpu.memory_space<semaphore_mem>>
    tpu.wait_dma2 semaphore(%48 : memref<!tpu.dma_semaphore, #tpu.memory_space<semaphore_mem>>) src(%44 : memref<128x128xf32, #tpu.memory_space<any>>) dst(%46 : memref<128x128xf32, #tpu.memory_space<vmem>>)
    %c0_49 = arith.constant 0 : index
    %c0_50 = arith.constant 0 : index
    %49 = vector.load %arg0[%c0_49, %c0_50] : memref<128x128xf32, #tpu.memory_space<vmem>>, vector<128x128xf32>
    %cst_51 = arith.constant dense<0.000000e+00> : vector<128x128xf32>
    %50 = tpu.matmul %49, %36, %cst_51 {dimension_numbers = #tpu.dot_dimension_numbers<[1], [0], [0], [1], [0, 0, 1, 1], [], []>} : vector<128x128xf32>, vector<128x128xf32>, vector<128x128xf32> -> vector<128x128xf32>
    %c1 = arith.constant 1 : index
    %c0_52 = arith.constant 0 : index
    %c0_53 = arith.constant 0 : index
    %51 = vector.load %arg9[%c1, %c0_52, %c0_53] : memref<2x128x128xf32, #tpu.memory_space<vmem>>, vector<1x128x128xf32>
    %52 = vector.shape_cast %51 : vector<1x128x128xf32> to vector<128x128xf32>
    %cst_54 = arith.constant dense<0.000000e+00> : vector<128x128xf32>
    %53 = tpu.matmul %50, %52, %cst_54 {dimension_numbers = #tpu.dot_dimension_numbers<[1], [0], [0], [1], [0, 0, 1, 1], [], []>} : vector<128x128xf32>, vector<128x128xf32>, vector<128x128xf32> -> vector<128x128xf32>
    %54 = vector.extract_strided_slice %15 {offsets = [0, 128], sizes = [128, 128], strides = [1, 1]} : vector<128x768xf32> to vector<128x128xf32>
    %55 = arith.addf %53, %54 : vector<128x128xf32>
    %cst_55 = arith.constant 0.000000e+00 : f32
    %56 = vector.broadcast %cst_55 : f32 to vector<128x128xf32>
    %57 = arith.maximumf %55, %56 : vector<128x128xf32>
    %c3_i32 = arith.constant 3 : i32
    %c1_i32_56 = arith.constant 1 : i32
    %c1_i32_57 = arith.constant 1 : i32
    %c0_i32_58 = arith.constant 0 : i32
    %c0_i32_59 = arith.constant 0 : i32
    %58 = tpu.memref_slice %arg7[%c3_i32, %c0_i32_58, %c0_i32_59] : memref<6x128x128xf32, #tpu.memory_space<any>> -> memref<1x128x128xf32, #tpu.memory_space<any>>
    %59 = tpu.memref_squeeze %58 : memref<1x128x128xf32, #tpu.memory_space<any>> -> memref<128x128xf32, #tpu.memory_space<any>>
    %c0_i32_60 = arith.constant 0 : i32
    %c0_i32_61 = arith.constant 0 : i32
    %60 = tpu.memref_slice %arg9[%c1_i32_56, %c0_i32_60, %c0_i32_61] : memref<2x128x128xf32, #tpu.memory_space<vmem>> -> memref<1x128x128xf32, #tpu.memory_space<vmem>>
    %61 = tpu.memref_squeeze %60 : memref<1x128x128xf32, #tpu.memory_space<vmem>> -> memref<128x128xf32, #tpu.memory_space<vmem>>
    %62 = tpu.memref_slice %arg10[%c1_i32_57] : memref<2x!tpu.dma_semaphore, #tpu.memory_space<semaphore_mem>> -> memref<1x!tpu.dma_semaphore, #tpu.memory_space<semaphore_mem>>
    %63 = tpu.memref_squeeze %62 : memref<1x!tpu.dma_semaphore, #tpu.memory_space<semaphore_mem>> -> memref<!tpu.dma_semaphore, #tpu.memory_space<semaphore_mem>>
    tpu.enqueue_dma source(%59 : memref<128x128xf32, #tpu.memory_space<any>>) target(%61 : memref<128x128xf32, #tpu.memory_space<vmem>>) target_semaphore(%63 : memref<!tpu.dma_semaphore, #tpu.memory_space<semaphore_mem>>)
    %c2_i32_62 = arith.constant 2 : i32
    %c0_i32_63 = arith.constant 0 : i32
    %c0_i32_64 = arith.constant 0 : i32
    %c0_i32_65 = arith.constant 0 : i32
    %c0_i32_66 = arith.constant 0 : i32
    %64 = tpu.memref_slice %arg7[%c2_i32_62, %c0_i32_65, %c0_i32_66] : memref<6x128x128xf32, #tpu.memory_space<any>> -> memref<1x128x128xf32, #tpu.memory_space<any>>
    %65 = tpu.memref_squeeze %64 : memref<1x128x128xf32, #tpu.memory_space<any>> -> memref<128x128xf32, #tpu.memory_space<any>>
    %c0_i32_67 = arith.constant 0 : i32
    %c0_i32_68 = arith.constant 0 : i32
    %66 = tpu.memref_slice %arg9[%c0_i32_63, %c0_i32_67, %c0_i32_68] : memref<2x128x128xf32, #tpu.memory_space<vmem>> -> memref<1x128x128xf32, #tpu.memory_space<vmem>>
    %67 = tpu.memref_squeeze %66 : memref<1x128x128xf32, #tpu.memory_space<vmem>> -> memref<128x128xf32, #tpu.memory_space<vmem>>
    %68 = tpu.memref_slice %arg10[%c0_i32_64] : memref<2x!tpu.dma_semaphore, #tpu.memory_space<semaphore_mem>> -> memref<1x!tpu.dma_semaphore, #tpu.memory_space<semaphore_mem>>
    %69 = tpu.memref_squeeze %68 : memref<1x!tpu.dma_semaphore, #tpu.memory_space<semaphore_mem>> -> memref<!tpu.dma_semaphore, #tpu.memory_space<semaphore_mem>>
    tpu.wait_dma2 semaphore(%69 : memref<!tpu.dma_semaphore, #tpu.memory_space<semaphore_mem>>) src(%65 : memref<128x128xf32, #tpu.memory_space<any>>) dst(%67 : memref<128x128xf32, #tpu.memory_space<vmem>>)
    %c0_69 = arith.constant 0 : index
    %c0_70 = arith.constant 0 : index
    %70 = vector.load %arg0[%c0_69, %c0_70] : memref<128x128xf32, #tpu.memory_space<vmem>>, vector<128x128xf32>
    %cst_71 = arith.constant dense<0.000000e+00> : vector<128x128xf32>
    %71 = tpu.matmul %70, %57, %cst_71 {dimension_numbers = #tpu.dot_dimension_numbers<[1], [0], [0], [1], [0, 0, 1, 1], [], []>} : vector<128x128xf32>, vector<128x128xf32>, vector<128x128xf32> -> vector<128x128xf32>
    %c0_72 = arith.constant 0 : index
    %c0_73 = arith.constant 0 : index
    %c0_74 = arith.constant 0 : index
    %72 = vector.load %arg9[%c0_72, %c0_73, %c0_74] : memref<2x128x128xf32, #tpu.memory_space<vmem>>, vector<1x128x128xf32>
    %73 = vector.shape_cast %72 : vector<1x128x128xf32> to vector<128x128xf32>
    %cst_75 = arith.constant dense<0.000000e+00> : vector<128x128xf32>
    %74 = tpu.matmul %71, %73, %cst_75 {dimension_numbers = #tpu.dot_dimension_numbers<[1], [0], [0], [1], [0, 0, 1, 1], [], []>} : vector<128x128xf32>, vector<128x128xf32>, vector<128x128xf32> -> vector<128x128xf32>
    %75 = vector.extract_strided_slice %15 {offsets = [0, 256], sizes = [128, 128], strides = [1, 1]} : vector<128x768xf32> to vector<128x128xf32>
    %76 = arith.addf %74, %75 : vector<128x128xf32>
    %cst_76 = arith.constant 0.000000e+00 : f32
    %77 = vector.broadcast %cst_76 : f32 to vector<128x128xf32>
    %78 = arith.maximumf %76, %77 : vector<128x128xf32>
    %c4_i32 = arith.constant 4 : i32
    %c0_i32_77 = arith.constant 0 : i32
    %c0_i32_78 = arith.constant 0 : i32
    %c0_i32_79 = arith.constant 0 : i32
    %c0_i32_80 = arith.constant 0 : i32
    %79 = tpu.memref_slice %arg7[%c4_i32, %c0_i32_79, %c0_i32_80] : memref<6x128x128xf32, #tpu.memory_space<any>> -> memref<1x128x128xf32, #tpu.memory_space<any>>
    %80 = tpu.memref_squeeze %79 : memref<1x128x128xf32, #tpu.memory_space<any>> -> memref<128x128xf32, #tpu.memory_space<any>>
    %c0_i32_81 = arith.constant 0 : i32
    %c0_i32_82 = arith.constant 0 : i32
    %81 = tpu.memref_slice %arg9[%c0_i32_77, %c0_i32_81, %c0_i32_82] : memref<2x128x128xf32, #tpu.memory_space<vmem>> -> memref<1x128x128xf32, #tpu.memory_space<vmem>>
    %82 = tpu.memref_squeeze %81 : memref<1x128x128xf32, #tpu.memory_space<vmem>> -> memref<128x128xf32, #tpu.memory_space<vmem>>
    %83 = tpu.memref_slice %arg10[%c0_i32_78] : memref<2x!tpu.dma_semaphore, #tpu.memory_space<semaphore_mem>> -> memref<1x!tpu.dma_semaphore, #tpu.memory_space<semaphore_mem>>
    %84 = tpu.memref_squeeze %83 : memref<1x!tpu.dma_semaphore, #tpu.memory_space<semaphore_mem>> -> memref<!tpu.dma_semaphore, #tpu.memory_space<semaphore_mem>>
    tpu.enqueue_dma source(%80 : memref<128x128xf32, #tpu.memory_space<any>>) target(%82 : memref<128x128xf32, #tpu.memory_space<vmem>>) target_semaphore(%84 : memref<!tpu.dma_semaphore, #tpu.memory_space<semaphore_mem>>)
    %c3_i32_83 = arith.constant 3 : i32
    %c1_i32_84 = arith.constant 1 : i32
    %c1_i32_85 = arith.constant 1 : i32
    %c0_i32_86 = arith.constant 0 : i32
    %c0_i32_87 = arith.constant 0 : i32
    %85 = tpu.memref_slice %arg7[%c3_i32_83, %c0_i32_86, %c0_i32_87] : memref<6x128x128xf32, #tpu.memory_space<any>> -> memref<1x128x128xf32, #tpu.memory_space<any>>
    %86 = tpu.memref_squeeze %85 : memref<1x128x128xf32, #tpu.memory_space<any>> -> memref<128x128xf32, #tpu.memory_space<any>>
    %c0_i32_88 = arith.constant 0 : i32
    %c0_i32_89 = arith.constant 0 : i32
    %87 = tpu.memref_slice %arg9[%c1_i32_84, %c0_i32_88, %c0_i32_89] : memref<2x128x128xf32, #tpu.memory_space<vmem>> -> memref<1x128x128xf32, #tpu.memory_space<vmem>>
    %88 = tpu.memref_squeeze %87 : memref<1x128x128xf32, #tpu.memory_space<vmem>> -> memref<128x128xf32, #tpu.memory_space<vmem>>
    %89 = tpu.memref_slice %arg10[%c1_i32_85] : memref<2x!tpu.dma_semaphore, #tpu.memory_space<semaphore_mem>> -> memref<1x!tpu.dma_semaphore, #tpu.memory_space<semaphore_mem>>
    %90 = tpu.memref_squeeze %89 : memref<1x!tpu.dma_semaphore, #tpu.memory_space<semaphore_mem>> -> memref<!tpu.dma_semaphore, #tpu.memory_space<semaphore_mem>>
    tpu.wait_dma2 semaphore(%90 : memref<!tpu.dma_semaphore, #tpu.memory_space<semaphore_mem>>) src(%86 : memref<128x128xf32, #tpu.memory_space<any>>) dst(%88 : memref<128x128xf32, #tpu.memory_space<vmem>>)
    %c0_90 = arith.constant 0 : index
    %c0_91 = arith.constant 0 : index
    %91 = vector.load %arg0[%c0_90, %c0_91] : memref<128x128xf32, #tpu.memory_space<vmem>>, vector<128x128xf32>
    %cst_92 = arith.constant dense<0.000000e+00> : vector<128x128xf32>
    %92 = tpu.matmul %91, %78, %cst_92 {dimension_numbers = #tpu.dot_dimension_numbers<[1], [0], [0], [1], [0, 0, 1, 1], [], []>} : vector<128x128xf32>, vector<128x128xf32>, vector<128x128xf32> -> vector<128x128xf32>
    %c1_93 = arith.constant 1 : index
    %c0_94 = arith.constant 0 : index
    %c0_95 = arith.constant 0 : index
    %93 = vector.load %arg9[%c1_93, %c0_94, %c0_95] : memref<2x128x128xf32, #tpu.memory_space<vmem>>, vector<1x128x128xf32>
    %94 = vector.shape_cast %93 : vector<1x128x128xf32> to vector<128x128xf32>
    %cst_96 = arith.constant dense<0.000000e+00> : vector<128x128xf32>
    %95 = tpu.matmul %92, %94, %cst_96 {dimension_numbers = #tpu.dot_dimension_numbers<[1], [0], [0], [1], [0, 0, 1, 1], [], []>} : vector<128x128xf32>, vector<128x128xf32>, vector<128x128xf32> -> vector<128x128xf32>
    %96 = vector.extract_strided_slice %15 {offsets = [0, 384], sizes = [128, 128], strides = [1, 1]} : vector<128x768xf32> to vector<128x128xf32>
    %97 = arith.addf %95, %96 : vector<128x128xf32>
    %cst_97 = arith.constant 0.000000e+00 : f32
    %98 = vector.broadcast %cst_97 : f32 to vector<128x128xf32>
    %99 = arith.maximumf %97, %98 : vector<128x128xf32>
    %c5_i32 = arith.constant 5 : i32
    %c1_i32_98 = arith.constant 1 : i32
    %c1_i32_99 = arith.constant 1 : i32
    %c0_i32_100 = arith.constant 0 : i32
    %c0_i32_101 = arith.constant 0 : i32
    %100 = tpu.memref_slice %arg7[%c5_i32, %c0_i32_100, %c0_i32_101] : memref<6x128x128xf32, #tpu.memory_space<any>> -> memref<1x128x128xf32, #tpu.memory_space<any>>
    %101 = tpu.memref_squeeze %100 : memref<1x128x128xf32, #tpu.memory_space<any>> -> memref<128x128xf32, #tpu.memory_space<any>>
    %c0_i32_102 = arith.constant 0 : i32
    %c0_i32_103 = arith.constant 0 : i32
    %102 = tpu.memref_slice %arg9[%c1_i32_98, %c0_i32_102, %c0_i32_103] : memref<2x128x128xf32, #tpu.memory_space<vmem>> -> memref<1x128x128xf32, #tpu.memory_space<vmem>>
    %103 = tpu.memref_squeeze %102 : memref<1x128x128xf32, #tpu.memory_space<vmem>> -> memref<128x128xf32, #tpu.memory_space<vmem>>
    %104 = tpu.memref_slice %arg10[%c1_i32_99] : memref<2x!tpu.dma_semaphore, #tpu.memory_space<semaphore_mem>> -> memref<1x!tpu.dma_semaphore, #tpu.memory_space<semaphore_mem>>
    %105 = tpu.memref_squeeze %104 : memref<1x!tpu.dma_semaphore, #tpu.memory_space<semaphore_mem>> -> memref<!tpu.dma_semaphore, #tpu.memory_space<semaphore_mem>>
    tpu.enqueue_dma source(%101 : memref<128x128xf32, #tpu.memory_space<any>>) target(%103 : memref<128x128xf32, #tpu.memory_space<vmem>>) target_semaphore(%105 : memref<!tpu.dma_semaphore, #tpu.memory_space<semaphore_mem>>)
    %c4_i32_104 = arith.constant 4 : i32
    %c0_i32_105 = arith.constant 0 : i32
    %c0_i32_106 = arith.constant 0 : i32
    %c0_i32_107 = arith.constant 0 : i32
    %c0_i32_108 = arith.constant 0 : i32
    %106 = tpu.memref_slice %arg7[%c4_i32_104, %c0_i32_107, %c0_i32_108] : memref<6x128x128xf32, #tpu.memory_space<any>> -> memref<1x128x128xf32, #tpu.memory_space<any>>
    %107 = tpu.memref_squeeze %106 : memref<1x128x128xf32, #tpu.memory_space<any>> -> memref<128x128xf32, #tpu.memory_space<any>>
    %c0_i32_109 = arith.constant 0 : i32
    %c0_i32_110 = arith.constant 0 : i32
    %108 = tpu.memref_slice %arg9[%c0_i32_105, %c0_i32_109, %c0_i32_110] : memref<2x128x128xf32, #tpu.memory_space<vmem>> -> memref<1x128x128xf32, #tpu.memory_space<vmem>>
    %109 = tpu.memref_squeeze %108 : memref<1x128x128xf32, #tpu.memory_space<vmem>> -> memref<128x128xf32, #tpu.memory_space<vmem>>
    %110 = tpu.memref_slice %arg10[%c0_i32_106] : memref<2x!tpu.dma_semaphore, #tpu.memory_space<semaphore_mem>> -> memref<1x!tpu.dma_semaphore, #tpu.memory_space<semaphore_mem>>
    %111 = tpu.memref_squeeze %110 : memref<1x!tpu.dma_semaphore, #tpu.memory_space<semaphore_mem>> -> memref<!tpu.dma_semaphore, #tpu.memory_space<semaphore_mem>>
    tpu.wait_dma2 semaphore(%111 : memref<!tpu.dma_semaphore, #tpu.memory_space<semaphore_mem>>) src(%107 : memref<128x128xf32, #tpu.memory_space<any>>) dst(%109 : memref<128x128xf32, #tpu.memory_space<vmem>>)
    %c0_111 = arith.constant 0 : index
    %c0_112 = arith.constant 0 : index
    %112 = vector.load %arg0[%c0_111, %c0_112] : memref<128x128xf32, #tpu.memory_space<vmem>>, vector<128x128xf32>
    %cst_113 = arith.constant dense<0.000000e+00> : vector<128x128xf32>
    %113 = tpu.matmul %112, %99, %cst_113 {dimension_numbers = #tpu.dot_dimension_numbers<[1], [0], [0], [1], [0, 0, 1, 1], [], []>} : vector<128x128xf32>, vector<128x128xf32>, vector<128x128xf32> -> vector<128x128xf32>
    %c0_114 = arith.constant 0 : index
    %c0_115 = arith.constant 0 : index
    %c0_116 = arith.constant 0 : index
    %114 = vector.load %arg9[%c0_114, %c0_115, %c0_116] : memref<2x128x128xf32, #tpu.memory_space<vmem>>, vector<1x128x128xf32>
    %115 = vector.shape_cast %114 : vector<1x128x128xf32> to vector<128x128xf32>
    %cst_117 = arith.constant dense<0.000000e+00> : vector<128x128xf32>
    %116 = tpu.matmul %113, %115, %cst_117 {dimension_numbers = #tpu.dot_dimension_numbers<[1], [0], [0], [1], [0, 0, 1, 1], [], []>} : vector<128x128xf32>, vector<128x128xf32>, vector<128x128xf32> -> vector<128x128xf32>
    %117 = vector.extract_strided_slice %15 {offsets = [0, 512], sizes = [128, 128], strides = [1, 1]} : vector<128x768xf32> to vector<128x128xf32>
    %118 = arith.addf %116, %117 : vector<128x128xf32>
    %cst_118 = arith.constant 0.000000e+00 : f32
    %119 = vector.broadcast %cst_118 : f32 to vector<128x128xf32>
    %120 = arith.maximumf %118, %119 : vector<128x128xf32>
    %c5_i32_119 = arith.constant 5 : i32
    %c1_i32_120 = arith.constant 1 : i32
    %c1_i32_121 = arith.constant 1 : i32
    %c0_i32_122 = arith.constant 0 : i32
    %c0_i32_123 = arith.constant 0 : i32
    %121 = tpu.memref_slice %arg7[%c5_i32_119, %c0_i32_122, %c0_i32_123] : memref<6x128x128xf32, #tpu.memory_space<any>> -> memref<1x128x128xf32, #tpu.memory_space<any>>
    %122 = tpu.memref_squeeze %121 : memref<1x128x128xf32, #tpu.memory_space<any>> -> memref<128x128xf32, #tpu.memory_space<any>>
    %c0_i32_124 = arith.constant 0 : i32
    %c0_i32_125 = arith.constant 0 : i32
    %123 = tpu.memref_slice %arg9[%c1_i32_120, %c0_i32_124, %c0_i32_125] : memref<2x128x128xf32, #tpu.memory_space<vmem>> -> memref<1x128x128xf32, #tpu.memory_space<vmem>>
    %124 = tpu.memref_squeeze %123 : memref<1x128x128xf32, #tpu.memory_space<vmem>> -> memref<128x128xf32, #tpu.memory_space<vmem>>
    %125 = tpu.memref_slice %arg10[%c1_i32_121] : memref<2x!tpu.dma_semaphore, #tpu.memory_space<semaphore_mem>> -> memref<1x!tpu.dma_semaphore, #tpu.memory_space<semaphore_mem>>
    %126 = tpu.memref_squeeze %125 : memref<1x!tpu.dma_semaphore, #tpu.memory_space<semaphore_mem>> -> memref<!tpu.dma_semaphore, #tpu.memory_space<semaphore_mem>>
    tpu.wait_dma2 semaphore(%126 : memref<!tpu.dma_semaphore, #tpu.memory_space<semaphore_mem>>) src(%122 : memref<128x128xf32, #tpu.memory_space<any>>) dst(%124 : memref<128x128xf32, #tpu.memory_space<vmem>>)
    %c0_126 = arith.constant 0 : index
    %c0_127 = arith.constant 0 : index
    %127 = vector.load %arg0[%c0_126, %c0_127] : memref<128x128xf32, #tpu.memory_space<vmem>>, vector<128x128xf32>
    %cst_128 = arith.constant dense<0.000000e+00> : vector<128x128xf32>
    %128 = tpu.matmul %127, %120, %cst_128 {dimension_numbers = #tpu.dot_dimension_numbers<[1], [0], [0], [1], [0, 0, 1, 1], [], []>} : vector<128x128xf32>, vector<128x128xf32>, vector<128x128xf32> -> vector<128x128xf32>
    %c1_129 = arith.constant 1 : index
    %c0_130 = arith.constant 0 : index
    %c0_131 = arith.constant 0 : index
    %129 = vector.load %arg9[%c1_129, %c0_130, %c0_131] : memref<2x128x128xf32, #tpu.memory_space<vmem>>, vector<1x128x128xf32>
    %130 = vector.shape_cast %129 : vector<1x128x128xf32> to vector<128x128xf32>
    %cst_132 = arith.constant dense<0.000000e+00> : vector<128x128xf32>
    %131 = tpu.matmul %128, %130, %cst_132 {dimension_numbers = #tpu.dot_dimension_numbers<[1], [0], [0], [1], [0, 0, 1, 1], [], []>} : vector<128x128xf32>, vector<128x128xf32>, vector<128x128xf32> -> vector<128x128xf32>
    %132 = vector.extract_strided_slice %15 {offsets = [0, 640], sizes = [128, 128], strides = [1, 1]} : vector<128x768xf32> to vector<128x128xf32>
    %133 = arith.addf %131, %132 : vector<128x128xf32>
    %cst_133 = arith.constant 0.000000e+00 : f32
    %134 = vector.broadcast %cst_133 : f32 to vector<128x128xf32>
    %135 = arith.maximumf %133, %134 : vector<128x128xf32>
    %c0_134 = arith.constant 0 : index
    %c0_135 = arith.constant 0 : index
    %136 = vector.load %arg5[%c0_134, %c0_135] : memref<128x128xf32, #tpu.memory_space<vmem>>, vector<128x128xf32>
    %cst_136 = arith.constant dense<0.000000e+00> : vector<128x128xf32>
    %137 = tpu.matmul %135, %136, %cst_136 {dimension_numbers = #tpu.dot_dimension_numbers<[1], [0], [0], [1], [0, 0, 1, 1], [], []>} : vector<128x128xf32>, vector<128x128xf32>, vector<128x128xf32> -> vector<128x128xf32>
    %c0_137 = arith.constant 0 : index
    %c0_138 = arith.constant 0 : index
    %138 = vector.load %arg6[%c0_137, %c0_138] : memref<1x128xf32, #tpu.memory_space<vmem>>, vector<1x128xf32>
    %139 = vector.broadcast %138 : vector<1x128xf32> to vector<128x128xf32>
    %140 = arith.addf %137, %139 : vector<128x128xf32>
    %c0_139 = arith.constant 0 : index
    %c0_140 = arith.constant 0 : index
    %141 = vector.load %arg8[%c0_139, %c0_140] : memref<128x128xf32, #tpu.memory_space<vmem>>, vector<128x128xf32>
    tpu.vector_store %arg8[%c0_139, %c0_140], %140 {strides = array<i32>} : memref<128x128xf32, #tpu.memory_space<vmem>>, vector<128x128xf32>,
    return
  }
}

</mosaic_0001>

<llo_original>
// kernel: net_forward.1
$region0: #{net_forward.1}
  #allocation0 [shape = 'u32[]', space=smem, size = 0x4, offset = 0x4, fixed_abs, tag = 'smem constant byte address 0x4 - core index']
  #allocation1 [shape = 'u32[144,128]{1,0:T(1,128)}', space=vmem, size = 0x12000, scoped, tag = 'internal scratch']
  #allocation2 [shape = 'f32[2,128,128]{2,1,0:T(8,128)}', space=vmem, size = 0x20000, scoped, tag = 'scratch operand']
  #allocation3 [shape = 's32[2]{0}', space=sflag, size = 0x8, scoped, tag = 'scratch operand']
  #allocation8 [shape = 's32[]', space=sflag, size = 0x4, offset = 0, fixed_abs, tag = 'sflag constant byte address 0x0 - dummy sync flag']
  #allocation9 [shape = 's32[]', space=sflag, size = 0x4, offset = 0, fixed_abs, tag = 'sflag constant byte address 0x0 - dummy sync flag']
  #allocation10 [shape = 'u32[]', space=smem, size = 0x4, offset = 0x44, fixed_abs, tag = 'smem constant byte address 0x44 - assertion arg 0']
  #allocation11 [shape = 'u32[]', space=smem, size = 0x4, offset = 0x48, fixed_abs, tag = 'smem constant byte address 0x48 - assertion arg 1']
  #allocation12 [shape = 's32[]', space=sflag, size = 0x4, offset = 0, fixed_abs, tag = 'sflag constant byte address 0x0 - dummy sync flag']
  #allocation13 [shape = 's32[]', space=sflag, size = 0x4, offset = 0, fixed_abs, tag = 'sflag constant byte address 0x0 - dummy sync flag']
  #allocation14 [shape = 's32[]', space=sflag, size = 0x4, offset = 0, fixed_abs, tag = 'sflag constant byte address 0x0 - dummy sync flag']
  #allocation15 [shape = 's32[]', space=sflag, size = 0x4, offset = 0, fixed_abs, tag = 'sflag constant byte address 0x0 - dummy sync flag']
  #allocation16 [shape = 's32[]', space=sflag, size = 0x4, offset = 0, fixed_abs, tag = 'sflag constant byte address 0x0 - dummy sync flag']
  #allocation17 [shape = 's32[]', space=sflag, size = 0x4, offset = 0, fixed_abs, tag = 'sflag constant byte address 0x0 - dummy sync flag']
  #allocation18 [shape = 's32[]', space=sflag, size = 0x4, offset = 0, fixed_abs, tag = 'sflag constant byte address 0x0 - dummy sync flag']
  #allocation19 [shape = 's32[]', space=sflag, size = 0x4, offset = 0, fixed_abs, tag = 'sflag constant byte address 0x0 - dummy sync flag']
  #allocation20 [shape = 's32[]', space=sflag, size = 0x4, offset = 0, fixed_abs, tag = 'sflag constant byte address 0x0 - dummy sync flag']
  #allocation21 [shape = 's32[]', space=sflag, size = 0x4, offset = 0, fixed_abs, tag = 'sflag constant byte address 0x0 - dummy sync flag']
  %s0 = inlined_call_operand.vmem [shape: f32[128,128], index: 0, kind: input, shape index: {}]
  %s1 = inlined_call_operand.vmem [shape: f32[128,32], index: 1, kind: input, shape index: {}]
  %s2 = inlined_call_operand.vmem [shape: f32[32,128], index: 2, kind: input, shape index: {}]
  %s3 = inlined_call_operand.vmem [shape: f32[1,128], index: 3, kind: input, shape index: {}]
  %s4 = inlined_call_operand.hbm [shape: f32[128,768], index: 4, kind: input, shape index: {}]
  %s5 = inlined_call_operand.hbm [shape: f32[128,128], index: 5, kind: input, shape index: {}]
  %s6 = inlined_call_operand.vmem [shape: f32[1,128], index: 6, kind: input, shape index: {}]
  %s7 = inlined_call_operand.hbm [shape: f32[6,128,128], index: 7, kind: input, shape index: {}]
  %s8 = inlined_call_operand.vmem [shape: f32[128,128], index: 8, kind: output, shape index: {}]
  %s9 = sld [smem:[#allocation0]]
  $region70: #{net_forward.1} parent=0
    _
  %s11 = ssub.s32 1, %s9
  %s12 = scalar_select 0, %s11, %s9
  $region1: #{net_forward.1} parent=0
    #allocation4 [shape = 'u8[393216]{0}', space=vmem, size = 0x60000, scoped, tag = 'input window, operand 4, single buffered']
    #allocation5 [shape = 's32[1]{0}', space=sflag, size = 0x4, scoped, tag = 'scoped memory for net_forward.1']
    #allocation6 [shape = 'u8[65536]{0}', space=vmem, size = 0x10000, scoped, tag = 'input window, operand 5, single buffered']
    #allocation7 [shape = 's32[1]{0}', space=sflag, size = 0x4, scoped, tag = 'scoped memory for net_forward.1']
    %13 = vsyncpa [#allocation5], 0
    %14 = vsyncpa [#allocation7], 0
    // Predicated region
    $region2: #{net_forward.1} parent=1 // pred_check
      _
    $region3: #{net_forward.1} parent=1 // pred_check_branch
      %16 = sbr.rel (0) target = $region5
    $region4: #{net_forward.1} parent=1 // pred_region
      _
    $region5: #{net_forward.1} parent=1 // pred_fallthru
      _
    // Predicated region
    $region6: #{net_forward.1} parent=1 // pred_check
      _
    $region7: #{net_forward.1} parent=1 // pred_check_branch
      %18 = sbr.rel (0) target = $region9
    $region8: #{net_forward.1} parent=1 // pred_region
      _
    $region9: #{net_forward.1} parent=1 // pred_fallthru
      _
    // Predicated region
    $region10: #{net_forward.1} parent=1 // pred_check
      _
    $region11: #{net_forward.1} parent=1 // pred_check_branch
      %20 = sbr.rel (0) target = $region13
    $region12: #{net_forward.1} parent=1 // pred_region
      _
    $region13: #{net_forward.1} parent=1 // pred_fallthru
      _
    // Predicated region
    $region14: #{net_forward.1} parent=1 // pred_check
      _
    $region15: #{net_forward.1} parent=1 // pred_check_branch
      %22 = sbr.rel (0) target = $region17
    $region16: #{net_forward.1} parent=1 // pred_region
      _
    $region17: #{net_forward.1} parent=1 // pred_fallthru
      _
    // Predicated region
    $region18: #{net_forward.1} parent=1 // pred_check
      _
    $region19: #{net_forward.1} parent=1 // pred_check_branch
      %24 = sbr.rel (0) target = $region21
    $region20: #{net_forward.1} parent=1 // pred_region
      %s26 = ssub.s32 12288, 12288
      %27 = vsyncadd [#allocation5], %s26
      %s28 = sshll.u32 [#allocation4], 4
      %s29 = int_to_ptr.vmem [resolvable:$true] %s28
      %34 = dma.hbm_to_vmem [thread:$0]  %s4, 12288, %s29, [#allocation5], 768, 768, 48
    $region21: #{net_forward.1} parent=1 // pred_fallthru
      _
    // Predicated region
    $region22: #{net_forward.1} parent=1 // pred_check
      _
    $region23: #{net_forward.1} parent=1 // pred_check_branch
      %36 = sbr.rel (0) target = $region25
    $region24: #{net_forward.1} parent=1 // pred_region
      %s38 = ssub.s32 2048, 2048
      %39 = vsyncadd [#allocation7], %s38
      %s40 = sshll.u32 [#allocation6], 4
      %s41 = int_to_ptr.vmem [resolvable:$true] %s40
      %46 = dma.hbm_to_vmem [thread:$0]  %s5, 2048, %s41, [#allocation7], 128, 128, 8
    $region25: #{net_forward.1} parent=1 // pred_fallthru
      _
    // Predicated region
    $region26: #{net_forward.1} parent=1 // pred_check
      _
    $region27: #{net_forward.1} parent=1 // pred_check_branch
      %48 = sbr.rel (0) target = $region29
    $region28: #{net_forward.1} parent=1 // pred_region
      _
    $region29: #{net_forward.1} parent=1 // pred_fallthru
      _
    // Predicated region
    $region30: #{net_forward.1} parent=1 // pred_check
      _
    $region31: #{net_forward.1} parent=1 // pred_check_branch
      %50 = sbr.rel (0) target = $region33
    $region32: #{net_forward.1} parent=1 // pred_region
      %51 = dma.done [#allocation5], 12288
    $region33: #{net_forward.1} parent=1 // pred_fallthru
      _
    // Predicated region
    $region34: #{net_forward.1} parent=1 // pred_check
      _
    $region35: #{net_forward.1} parent=1 // pred_check_branch
      %53 = sbr.rel (0) target = $region37
    $region36: #{net_forward.1} parent=1 // pred_region
      %54 = dma.done [#allocation7], 2048
    $region37: #{net_forward.1} parent=1 // pred_fallthru
      _
    // Predicated region
    $region38: #{net_forward.1} parent=1 // pred_check
      _
    $region39: #{net_forward.1} parent=1 // pred_check_branch
      %56 = sbr.rel target = $region41
    $region40: #{net_forward.1} parent=1 // pred_region
      %57 = sst [smem:[#allocation10]] [#allocation9]
      %58 = sst [smem:[#allocation11]] [#allocation8]
    $region41: #{net_forward.1} parent=1 // pred_fallthru
      _
    %60 = shalt.err (0)
    %s62 = sshll.u32 [#allocation2], 4
    %s63 = int_to_ptr.vmem [resolvable:$true] %s62
    %65 = dma.hbm_to_vmem [thread:$0]  %s7, 2048, %s63, [#allocation3]
    %v66 = vld [vmem:[%s1] sm:$0xff]
    %v67 = vld [vmem:[%s1 + $0x8] sm:$0xff]
    %v68 = vld [vmem:[%s1 + $0x10] sm:$0xff]
    %v69 = vld [vmem:[%s1 + $0x18] sm:$0xff]
    %v70 = vld [vmem:[%s1 + $0x20] sm:$0xff]
    %v71 = vld [vmem:[%s1 + $0x28] sm:$0xff]
    %v72 = vld [vmem:[%s1 + $0x30] sm:$0xff]
    %v73 = vld [vmem:[%s1 + $0x38] sm:$0xff]
    %v74 = vld [vmem:[%s1 + $0x40] sm:$0xff]
    %v75 = vld [vmem:[%s1 + $0x48] sm:$0xff]
    %v76 = vld [vmem:[%s1 + $0x50] sm:$0xff]
    %v77 = vld [vmem:[%s1 + $0x58] sm:$0xff]
    %v78 = vld [vmem:[%s1 + $0x60] sm:$0xff]
    %v79 = vld [vmem:[%s1 + $0x68] sm:$0xff]
    %v80 = vld [vmem:[%s1 + $0x70] sm:$0xff]
    %v81 = vld [vmem:[%s1 + $0x78] sm:$0xff]
    %v82 = vld [vmem:[%s2] sm:$0xff]
    %v83 = vld [vmem:[%s2 + $0x8] sm:$0xff]
    %v84 = vld [vmem:[%s2 + $0x10] sm:$0xff]
    %v85 = vld [vmem:[%s2 + $0x18] sm:$0xff]
    %v86 = vld [vmem:[%s3] sm:$0x1]
    %v88 = vlaneseq
    %v89 = vshrl.u32 %v88, 7
    %v90 = vsub.s32 0, %v89
    %v91 = vrot.slane %v86, %v90
    %vm93 = vcmask 261120
    %v95 = vsel %vm93, %v66, 0
    %v98 = vsel %vm93, %v67, 0
    %v101 = vsel %vm93, %v68, 0
    %v104 = vsel %vm93, %v69, 0
    %v107 = vsel %vm93, %v70, 0
    %v110 = vsel %vm93, %v71, 0
    %v113 = vsel %vm93, %v72, 0
    %v116 = vsel %vm93, %v73, 0
    %v119 = vsel %vm93, %v74, 0
    %v122 = vsel %vm93, %v75, 0
    %v125 = vsel %vm93, %v76, 0
    %v128 = vsel %vm93, %v77, 0
    %v131 = vsel %vm93, %v78, 0
    %v134 = vsel %vm93, %v79, 0
    %v137 = vsel %vm93, %v80, 0
    %v140 = vsel %vm93, %v81, 0
    %142 = vmatprep.subr.mxu0 0.0
    %143 = vmatpush1.msra.mxu0 %v82
    %144 = vmatprep.subr.mxu0 0.0
    %145 = vmatpush1.msra.mxu0 %v83
    %146 = vmatprep.subr.mxu0 0.0
    %147 = vmatpush1.msra.mxu0 %v84
    %148 = vmatprep.subr.mxu0 0.0
    %149 = vmatpush1.msra.mxu0 %v85
    %150 = vmatprep.subr.mxu0 0.0
    %151 = vmatpush1.msra.mxu0 0.0
    %152 = vmatprep.subr.mxu0 0.0
    %153 = vmatpush1.msra.mxu0 0.0
    %154 = vmatprep.subr.mxu0 0.0
    %155 = vmatpush1.msra.mxu0 0.0
    %156 = vmatprep.subr.mxu0 0.0
    %157 = vmatpush1.msra.mxu0 0.0
    %158 = vmatprep.subr.mxu0 0.0
    %159 = vmatpush1.msra.mxu0 0.0
    %160 = vmatprep.subr.mxu0 0.0
    %161 = vmatpush1.msra.mxu0 0.0
    %162 = vmatprep.subr.mxu0 0.0
    %163 = vmatpush1.msra.mxu0 0.0
    %164 = vmatprep.subr.mxu0 0.0
    %165 = vmatpush1.msra.mxu0 0.0
    %166 = vmatprep.subr.mxu0 0.0
    %167 = vmatpush1.msra.mxu0 0.0
    %168 = vmatprep.subr.mxu0 0.0
    %169 = vmatpush1.msra.mxu0 0.0
    %170 = vmatprep.subr.mxu0 0.0
    %171 = vmatpush1.msra.mxu0 0.0
    %172 = vmatprep.subr.mxu0 0.0
    %173 = vmatpush1.msra.mxu0 0.0
    %174 = vmatprep.subr.mxu0 0.0
    %175 = vmatpush1.msra.mxu0 0.0
    %176 = vmatprep.subr.mxu0 0.0
    %177 = vmatpush1.msra.mxu0 0.0
    %178 = vmatprep.subr.mxu0 0.0
    %179 = vmatpush1.msra.mxu0 0.0
    %180 = vmatprep.subr.mxu0 0.0
    %181 = vmatpush1.msra.mxu0 0.0
    %182 = vmatprep.subr.mxu0 0.0
    %183 = vmatpush1.msra.mxu0 0.0
    %184 = vmatprep.subr.mxu0 0.0
    %185 = vmatpush1.msra.mxu0 0.0
    %186 = vmatprep.subr.mxu0 0.0
    %187 = vmatpush1.msra.mxu0 0.0
    %188 = vmatprep.subr.mxu0 0.0
    %189 = vmatpush1.msra.mxu0 0.0
    %190 = vmatprep.subr.mxu0 0.0
    %191 = vmatpush1.msra.mxu0 0.0
    %192 = vmatprep.subr.mxu0 0.0
    %193 = vmatpush1.msra.mxu0 0.0
    %194 = vmatprep.subr.mxu0 0.0
    %195 = vmatpush1.msra.mxu0 0.0
    %196 = vmatprep.subr.mxu0 0.0
    %197 = vmatpush1.msra.mxu0 0.0
    %198 = vmatprep.subr.mxu0 0.0
    %199 = vmatpush1.msra.mxu0 0.0
    %200 = vmatprep.subr.mxu0 0.0
    %201 = vmatpush1.msra.mxu0 0.0
    %202 = vmatprep.subr.mxu0 0.0
    %203 = vmatpush1.msra.mxu0 0.0
    %204 = vmatprep.subr.mxu0 0.0
    %205 = vmatpush1.msra.mxu0 0.0
    %206 = vmatprep.mubr.f32.mxu0 0.0
    %207 = vmatmul.mubr.f32.gmra.mrb[0].mxu0 %v95
    %v208 = vpop.f32.mrb[0].mxu0
    %v209 = vadd.f32 %v91, %v208
    %v210 = vpop.f32.mrb[0].mxu0
    %211 = vmatprep.mubr.f32.mxu0 0.0
    %212 = vmatmul.mubr.f32.gmra.mrb[0].mxu0 %v98
    %v213 = vpop.f32.mrb[0].mxu0
    %v214 = vadd.f32 %v91, %v213
    %v215 = vpop.f32.mrb[0].mxu0
    %216 = vmatprep.mubr.f32.mxu0 0.0
    %217 = vmatmul.mubr.f32.gmra.mrb[0].mxu0 %v101
    %v218 = vpop.f32.mrb[0].mxu0
    %v219 = vadd.f32 %v91, %v218
    %v220 = vpop.f32.mrb[0].mxu0
    %221 = vmatprep.mubr.f32.mxu0 0.0
    %222 = vmatmul.mubr.f32.gmra.mrb[0].mxu0 %v104
    %v223 = vpop.f32.mrb[0].mxu0
    %v224 = vadd.f32 %v91, %v223
    %v225 = vpop.f32.mrb[0].mxu0
    %226 = vmatprep.mubr.f32.mxu0 0.0
    %227 = vmatmul.mubr.f32.gmra.mrb[0].mxu0 %v107
    %v228 = vpop.f32.mrb[0].mxu0
    %v229 = vadd.f32 %v91, %v228
    %v230 = vpop.f32.mrb[0].mxu0
    %231 = vmatprep.mubr.f32.mxu0 0.0
    %232 = vmatmul.mubr.f32.gmra.mrb[0].mxu0 %v110
    %v233 = vpop.f32.mrb[0].mxu0
    %v234 = vadd.f32 %v91, %v233
    %v235 = vpop.f32.mrb[0].mxu0
    %236 = vmatprep.mubr.f32.mxu0 0.0
    %237 = vmatmul.mubr.f32.gmra.mrb[0].mxu0 %v113
    %v238 = vpop.f32.mrb[0].mxu0
    %v239 = vadd.f32 %v91, %v238
    %v240 = vpop.f32.mrb[0].mxu0
    %241 = vmatprep.mubr.f32.mxu0 0.0
    %242 = vmatmul.mubr.f32.gmra.mrb[0].mxu0 %v116
    %v243 = vpop.f32.mrb[0].mxu0
    %v244 = vadd.f32 %v91, %v243
    %v245 = vpop.f32.mrb[0].mxu0
    %246 = vmatprep.mubr.f32.mxu0 0.0
    %247 = vmatmul.mubr.f32.gmra.mrb[0].mxu0 %v119
    %v248 = vpop.f32.mrb[0].mxu0
    %v249 = vadd.f32 %v91, %v248
    %v250 = vpop.f32.mrb[0].mxu0
    %251 = vmatprep.mubr.f32.mxu0 0.0
    %252 = vmatmul.mubr.f32.gmra.mrb[0].mxu0 %v122
    %v253 = vpop.f32.mrb[0].mxu0
    %v254 = vadd.f32 %v91, %v253
    %v255 = vpop.f32.mrb[0].mxu0
    %256 = vmatprep.mubr.f32.mxu0 0.0
    %257 = vmatmul.mubr.f32.gmra.mrb[0].mxu0 %v125
    %v258 = vpop.f32.mrb[0].mxu0
    %v259 = vadd.f32 %v91, %v258
    %v260 = vpop.f32.mrb[0].mxu0
    %261 = vmatprep.mubr.f32.mxu0 0.0
    %262 = vmatmul.mubr.f32.gmra.mrb[0].mxu0 %v128
    %v263 = vpop.f32.mrb[0].mxu0
    %v264 = vadd.f32 %v91, %v263
    %v265 = vpop.f32.mrb[0].mxu0
    %266 = vmatprep.mubr.f32.mxu0 0.0
    %267 = vmatmul.mubr.f32.gmra.mrb[0].mxu0 %v131
    %v268 = vpop.f32.mrb[0].mxu0
    %v269 = vadd.f32 %v91, %v268
    %v270 = vpop.f32.mrb[0].mxu0
    %271 = vmatprep.mubr.f32.mxu0 0.0
    %272 = vmatmul.mubr.f32.gmra.mrb[0].mxu0 %v134
    %v273 = vpop.f32.mrb[0].mxu0
    %v274 = vadd.f32 %v91, %v273
    %v275 = vpop.f32.mrb[0].mxu0
    %276 = vmatprep.mubr.f32.mxu0 0.0
    %277 = vmatmul.mubr.f32.gmra.mrb[0].mxu0 %v137
    %v278 = vpop.f32.mrb[0].mxu0
    %v279 = vadd.f32 %v91, %v278
    %v280 = vpop.f32.mrb[0].mxu0
    %281 = vmatprep.mubr.f32.mxu0 0.0
    %282 = vmatmul.mubr.f32.gmra.mrb[0].mxu0 %v140
    %v283 = vpop.f32.mrb[0].mxu0
    %v284 = vadd.f32 %v91, %v283
    %v285 = vpop.f32.mrb[0].mxu0
    %286 = vdwg.mxu0
    %v287 = vmax.f32 %v209, 0.0
    %v288 = vmax.f32 %v214, 0.0
    %v289 = vmax.f32 %v219, 0.0
    %v290 = vmax.f32 %v224, 0.0
    %v291 = vmax.f32 %v229, 0.0
    %v292 = vmax.f32 %v234, 0.0
    %v293 = vmax.f32 %v239, 0.0
    %v294 = vmax.f32 %v244, 0.0
    %v295 = vmax.f32 %v249, 0.0
    %v296 = vmax.f32 %v254, 0.0
    %v297 = vmax.f32 %v259, 0.0
    %v298 = vmax.f32 %v264, 0.0
    %v299 = vmax.f32 %v269, 0.0
    %v300 = vmax.f32 %v274, 0.0
    %v301 = vmax.f32 %v279, 0.0
    %v302 = vmax.f32 %v284, 0.0
    %v303 = vld [vmem:[#allocation4] sm:$0xff]
    %v304 = vld [vmem:[#allocation4 + $0x8] sm:$0xff]
    %v305 = vld [vmem:[#allocation4 + $0x10] sm:$0xff]
    %v306 = vld [vmem:[#allocation4 + $0x18] sm:$0xff]
    %v307 = vld [vmem:[#allocation4 + $0x20] sm:$0xff]
    %v308 = vld [vmem:[#allocation4 + $0x28] sm:$0xff]
    %v309 = vld [vmem:[#allocation4 + $0x30] sm:$0xff]
    %v310 = vld [vmem:[#allocation4 + $0x38] sm:$0xff]
    %v311 = vld [vmem:[#allocation4 + $0x40] sm:$0xff]
    %v312 = vld [vmem:[#allocation4 + $0x48] sm:$0xff]
    %v313 = vld [vmem:[#allocation4 + $0x50] sm:$0xff]
    %v314 = vld [vmem:[#allocation4 + $0x58] sm:$0xff]
    %v315 = vld [vmem:[#allocation4 + $0x60] sm:$0xff]
    %v316 = vld [vmem:[#allocation4 + $0x68] sm:$0xff]
    %v317 = vld [vmem:[#allocation4 + $0x70] sm:$0xff]
    %v318 = vld [vmem:[#allocation4 + $0x78] sm:$0xff]
    %v319 = vld [vmem:[#allocation4 + $0x80] sm:$0xff]
    %v320 = vld [vmem:[#allocation4 + $0x88] sm:$0xff]
    %v321 = vld [vmem:[#allocation4 + $0x90] sm:$0xff]
    %v322 = vld [vmem:[#allocation4 + $0x98] sm:$0xff]
    %v323 = vld [vmem:[#allocation4 + $0xa0] sm:$0xff]
    %v324 = vld [vmem:[#allocation4 + $0xa8] sm:$0xff]
    %v325 = vld [vmem:[#allocation4 + $0xb0] sm:$0xff]
    %v326 = vld [vmem:[#allocation4 + $0xb8] sm:$0xff]
    %v327 = vld [vmem:[#allocation4 + $0xc0] sm:$0xff]
    %v328 = vld [vmem:[#allocation4 + $0xc8] sm:$0xff]
    %v329 = vld [vmem:[#allocation4 + $0xd0] sm:$0xff]
    %v330 = vld [vmem:[#allocation4 + $0xd8] sm:$0xff]
    %v331 = vld [vmem:[#allocation4 + $0xe0] sm:$0xff]
    %v332 = vld [vmem:[#allocation4 + $0xe8] sm:$0xff]
    %v333 = vld [vmem:[#allocation4 + $0xf0] sm:$0xff]
    %v334 = vld [vmem:[#allocation4 + $0xf8] sm:$0xff]
    %v335 = vld [vmem:[#allocation4 + $0x100] sm:$0xff]
    %v336 = vld [vmem:[#allocation4 + $0x108] sm:$0xff]
    %v337 = vld [vmem:[#allocation4 + $0x110] sm:$0xff]
    %v338 = vld [vmem:[#allocation4 + $0x118] sm:$0xff]
    %v339 = vld [vmem:[#allocation4 + $0x120] sm:$0xff]
    %v340 = vld [vmem:[#allocation4 + $0x128] sm:$0xff]
    %v341 = vld [vmem:[#allocation4 + $0x130] sm:$0xff]
    %v342 = vld [vmem:[#allocation4 + $0x138] sm:$0xff]
    %v343 = vld [vmem:[#allocation4 + $0x140] sm:$0xff]
    %v344 = vld [vmem:[#allocation4 + $0x148] sm:$0xff]
    %v345 = vld [vmem:[#allocation4 + $0x150] sm:$0xff]
    %v346 = vld [vmem:[#allocation4 + $0x158] sm:$0xff]
    %v347 = vld [vmem:[#allocation4 + $0x160] sm:$0xff]
    %v348 = vld [vmem:[#allocation4 + $0x168] sm:$0xff]
    %v349 = vld [vmem:[#allocation4 + $0x170] sm:$0xff]
    %v350 = vld [vmem:[#allocation4 + $0x178] sm:$0xff]
    %v351 = vld [vmem:[#allocation4 + $0x180] sm:$0xff]
    %v352 = vld [vmem:[#allocation4 + $0x188] sm:$0xff]
    %v353 = vld [vmem:[#allocation4 + $0x190] sm:$0xff]
    %v354 = vld [vmem:[#allocation4 + $0x198] sm:$0xff]
    %v355 = vld [vmem:[#allocation4 + $0x1a0] sm:$0xff]
    %v356 = vld [vmem:[#allocation4 + $0x1a8] sm:$0xff]
    %v357 = vld [vmem:[#allocation4 + $0x1b0] sm:$0xff]
    %v358 = vld [vmem:[#allocation4 + $0x1b8] sm:$0xff]
    %v359 = vld [vmem:[#allocation4 + $0x1c0] sm:$0xff]
    %v360 = vld [vmem:[#allocation4 + $0x1c8] sm:$0xff]
    %v361 = vld [vmem:[#allocation4 + $0x1d0] sm:$0xff]
    %v362 = vld [vmem:[#allocation4 + $0x1d8] sm:$0xff]
    %v363 = vld [vmem:[#allocation4 + $0x1e0] sm:$0xff]
    %v364 = vld [vmem:[#allocation4 + $0x1e8] sm:$0xff]
    %v365 = vld [vmem:[#allocation4 + $0x1f0] sm:$0xff]
    %v366 = vld [vmem:[#allocation4 + $0x1f8] sm:$0xff]
    %v367 = vld [vmem:[#allocation4 + $0x200] sm:$0xff]
    %v368 = vld [vmem:[#allocation4 + $0x208] sm:$0xff]
    %v369 = vld [vmem:[#allocation4 + $0x210] sm:$0xff]
    %v370 = vld [vmem:[#allocation4 + $0x218] sm:$0xff]
    %v371 = vld [vmem:[#allocation4 + $0x220] sm:$0xff]
    %v372 = vld [vmem:[#allocation4 + $0x228] sm:$0xff]
    %v373 = vld [vmem:[#allocation4 + $0x230] sm:$0xff]
    %v374 = vld [vmem:[#allocation4 + $0x238] sm:$0xff]
    %v375 = vld [vmem:[#allocation4 + $0x240] sm:$0xff]
    %v376 = vld [vmem:[#allocation4 + $0x248] sm:$0xff]
    %v377 = vld [vmem:[#allocation4 + $0x250] sm:$0xff]
    %v378 = vld [vmem:[#allocation4 + $0x258] sm:$0xff]
    %v379 = vld [vmem:[#allocation4 + $0x260] sm:$0xff]
    %v380 = vld [vmem:[#allocation4 + $0x268] sm:$0xff]
    %v381 = vld [vmem:[#allocation4 + $0x270] sm:$0xff]
    %v382 = vld [vmem:[#allocation4 + $0x278] sm:$0xff]
    %v383 = vld [vmem:[#allocation4 + $0x280] sm:$0xff]
    %v384 = vld [vmem:[#allocation4 + $0x288] sm:$0xff]
    %v385 = vld [vmem:[#allocation4 + $0x290] sm:$0xff]
    %v386 = vld [vmem:[#allocation4 + $0x298] sm:$0xff]
    %v387 = vld [vmem:[#allocation4 + $0x2a0] sm:$0xff]
    %v388 = vld [vmem:[#allocation4 + $0x2a8] sm:$0xff]
    %v389 = vld [vmem:[#allocation4 + $0x2b0] sm:$0xff]
    %v390 = vld [vmem:[#allocation4 + $0x2b8] sm:$0xff]
    %v391 = vld [vmem:[#allocation4 + $0x2c0] sm:$0xff]
    %v392 = vld [vmem:[#allocation4 + $0x2c8] sm:$0xff]
    %v393 = vld [vmem:[#allocation4 + $0x2d0] sm:$0xff]
    %v394 = vld [vmem:[#allocation4 + $0x2d8] sm:$0xff]
    %v395 = vld [vmem:[#allocation4 + $0x2e0] sm:$0xff]
    %v396 = vld [vmem:[#allocation4 + $0x2e8] sm:$0xff]
    %v397 = vld [vmem:[#allocation4 + $0x2f0] sm:$0xff]
    %v398 = vld [vmem:[#allocation4 + $0x2f8] sm:$0xff]
    %399 = vmatprep.subr.mxu0 %v304
    %400 = vmatpush1.msra.mxu0 %v303
    %401 = vmatprep.subr.mxu0 %v310
    %402 = vmatpush1.msra.mxu0 %v309
    %403 = vmatprep.subr.mxu0 %v316
    %404 = vmatpush1.msra.mxu0 %v315
    %405 = vmatprep.subr.mxu0 %v322
    %406 = vmatpush1.msra.mxu0 %v321
    %407 = vmatprep.subr.mxu0 %v328
    %408 = vmatpush1.msra.mxu0 %v327
    %409 = vmatprep.subr.mxu0 %v334
    %410 = vmatpush1.msra.mxu0 %v333
    %411 = vmatprep.subr.mxu0 %v340
    %412 = vmatpush1.msra.mxu0 %v339
    %413 = vmatprep.subr.mxu0 %v346
    %414 = vmatpush1.msra.mxu0 %v345
    %415 = vmatprep.subr.mxu0 %v352
    %416 = vmatpush1.msra.mxu0 %v351
    %417 = vmatprep.subr.mxu0 %v358
    %418 = vmatpush1.msra.mxu0 %v357
    %419 = vmatprep.subr.mxu0 %v364
    %420 = vmatpush1.msra.mxu0 %v363
    %421 = vmatprep.subr.mxu0 %v370
    %422 = vmatpush1.msra.mxu0 %v369
    %423 = vmatprep.subr.mxu0 %v376
    %424 = vmatpush1.msra.mxu0 %v375
    %425 = vmatprep.subr.mxu0 %v382
    %426 = vmatpush1.msra.mxu0 %v381
    %427 = vmatprep.subr.mxu0 %v388
    %428 = vmatpush1.msra.mxu0 %v387
    %429 = vmatprep.subr.mxu0 %v394
    %430 = vmatpush1.msra.mxu0 %v393
    %431 = vmatprep.subr.mxu0 0.0
    %432 = vmatpush1.msra.mxu0 0.0
    %433 = vmatprep.subr.mxu0 0.0
    %434 = vmatpush1.msra.mxu0 0.0
    %435 = vmatprep.subr.mxu0 0.0
    %436 = vmatpush1.msra.mxu0 0.0
    %437 = vmatprep.subr.mxu0 0.0
    %438 = vmatpush1.msra.mxu0 0.0
    %439 = vmatprep.subr.mxu0 0.0
    %440 = vmatpush1.msra.mxu0 0.0
    %441 = vmatprep.subr.mxu0 0.0
    %442 = vmatpush1.msra.mxu0 0.0
    %443 = vmatprep.subr.mxu0 0.0
    %444 = vmatpush1.msra.mxu0 0.0
    %445 = vmatprep.subr.mxu0 0.0
    %446 = vmatpush1.msra.mxu0 0.0
    %447 = vmatprep.subr.mxu0 0.0
    %448 = vmatpush1.msra.mxu0 0.0
    %449 = vmatprep.subr.mxu0 0.0
    %450 = vmatpush1.msra.mxu0 0.0
    %451 = vmatprep.subr.mxu0 0.0
    %452 = vmatpush1.msra.mxu0 0.0
    %453 = vmatprep.subr.mxu0 0.0
    %454 = vmatpush1.msra.mxu0 0.0
    %455 = vmatprep.subr.mxu0 0.0
    %456 = vmatpush1.msra.mxu0 0.0
    %457 = vmatprep.subr.mxu0 0.0
    %458 = vmatpush1.msra.mxu0 0.0
    %459 = vmatprep.subr.mxu0 0.0
    %460 = vmatpush1.msra.mxu0 0.0
    %461 = vmatprep.subr.mxu0 0.0
    %462 = vmatpush1.msra.mxu0 0.0
    %463 = vmatprep.mubr.f32.mxu0 0.0
    %464 = vmatmul.mubr.f32.gmra.mrb[0].mxu0 %v287
    %v465 = vpop.f32.mrb[0].mxu0
    %v466 = vadd.f32 0.0, %v465
    %v467 = vpop.f32.mrb[0].mxu0
    %v468 = vadd.f32 0.0, %v467
    %469 = vmatprep.mubr.f32.mxu0 0.0
    %470 = vmatmul.mubr.f32.gmra.mrb[0].mxu0 %v288
    %v471 = vpop.f32.mrb[0].mxu0
    %v472 = vadd.f32 0.0, %v471
    %v473 = vpop.f32.mrb[0].mxu0
    %v474 = vadd.f32 0.0, %v473
    %475 = vmatprep.mubr.f32.mxu0 0.0
    %476 = vmatmul.mubr.f32.gmra.mrb[0].mxu0 %v289
    %v477 = vpop.f32.mrb[0].mxu0
    %v478 = vadd.f32 0.0, %v477
    %v479 = vpop.f32.mrb[0].mxu0
    %v480 = vadd.f32 0.0, %v479
    %481 = vmatprep.mubr.f32.mxu0 0.0
    %482 = vmatmul.mubr.f32.gmra.mrb[0].mxu0 %v290
    %v483 = vpop.f32.mrb[0].mxu0
    %v484 = vadd.f32 0.0, %v483
    %v485 = vpop.f32.mrb[0].mxu0
    %v486 = vadd.f32 0.0, %v485
    %487 = vmatprep.mubr.f32.mxu0 0.0
    %488 = vmatmul.mubr.f32.gmra.mrb[0].mxu0 %v291
    %v489 = vpop.f32.mrb[0].mxu0
    %v490 = vadd.f32 0.0, %v489
    %v491 = vpop.f32.mrb[0].mxu0
    %v492 = vadd.f32 0.0, %v491
    %493 = vmatprep.mubr.f32.mxu0 0.0
    %494 = vmatmul.mubr.f32.gmra.mrb[0].mxu0 %v292
    %v495 = vpop.f32.mrb[0].mxu0
    %v496 = vadd.f32 0.0, %v495
    %v497 = vpop.f32.mrb[0].mxu0
    %v498 = vadd.f32 0.0, %v497
    %499 = vmatprep.mubr.f32.mxu0 0.0
    %500 = vmatmul.mubr.f32.gmra.mrb[0].mxu0 %v293
    %v501 = vpop.f32.mrb[0].mxu0
    %v502 = vadd.f32 0.0, %v501
    %v503 = vpop.f32.mrb[0].mxu0
    %v504 = vadd.f32 0.0, %v503
    %505 = vmatprep.mubr.f32.mxu0 0.0
    %506 = vmatmul.mubr.f32.gmra.mrb[0].mxu0 %v294
    %v507 = vpop.f32.mrb[0].mxu0
    %v508 = vadd.f32 0.0, %v507
    %v509 = vpop.f32.mrb[0].mxu0
    %v510 = vadd.f32 0.0, %v509
    %511 = vmatprep.mubr.f32.mxu0 0.0
    %512 = vmatmul.mubr.f32.gmra.mrb[0].mxu0 %v295
    %v513 = vpop.f32.mrb[0].mxu0
    %v514 = vadd.f32 0.0, %v513
    %v515 = vpop.f32.mrb[0].mxu0
    %v516 = vadd.f32 0.0, %v515
    %517 = vmatprep.mubr.f32.mxu0 0.0
    %518 = vmatmul.mubr.f32.gmra.mrb[0].mxu0 %v296
    %v519 = vpop.f32.mrb[0].mxu0
    %v520 = vadd.f32 0.0, %v519
    %v521 = vpop.f32.mrb[0].mxu0
    %v522 = vadd.f32 0.0, %v521
    %523 = vmatprep.mubr.f32.mxu0 0.0
    %524 = vmatmul.mubr.f32.gmra.mrb[0].mxu0 %v297
    %v525 = vpop.f32.mrb[0].mxu0
    %v526 = vadd.f32 0.0, %v525
    %v527 = vpop.f32.mrb[0].mxu0
    %v528 = vadd.f32 0.0, %v527
    %529 = vmatprep.mubr.f32.mxu0 0.0
    %530 = vmatmul.mubr.f32.gmra.mrb[0].mxu0 %v298
    %v531 = vpop.f32.mrb[0].mxu0
    %v532 = vadd.f32 0.0, %v531
    %v533 = vpop.f32.mrb[0].mxu0
    %v534 = vadd.f32 0.0, %v533
    %535 = vmatprep.mubr.f32.mxu0 0.0
    %536 = vmatmul.mubr.f32.gmra.mrb[0].mxu0 %v299
    %v537 = vpop.f32.mrb[0].mxu0
    %v538 = vadd.f32 0.0, %v537
    %v539 = vpop.f32.mrb[0].mxu0
    %v540 = vadd.f32 0.0, %v539
    %541 = vmatprep.mubr.f32.mxu0 0.0
    %542 = vmatmul.mubr.f32.gmra.mrb[0].mxu0 %v300
    %v543 = vpop.f32.mrb[0].mxu0
    %v544 = vadd.f32 0.0, %v543
    %v545 = vpop.f32.mrb[0].mxu0
    %v546 = vadd.f32 0.0, %v545
    %547 = vmatprep.mubr.f32.mxu0 0.0
    %548 = vmatmul.mubr.f32.gmra.mrb[0].mxu0 %v301
    %v549 = vpop.f32.mrb[0].mxu0
    %v550 = vadd.f32 0.0, %v549
    %v551 = vpop.f32.mrb[0].mxu0
    %v552 = vadd.f32 0.0, %v551
    %553 = vmatprep.mubr.f32.mxu0 0.0
    %554 = vmatmul.mubr.f32.gmra.mrb[0].mxu0 %v302
    %v555 = vpop.f32.mrb[0].mxu0
    %v556 = vadd.f32 0.0, %v555
    %v557 = vpop.f32.mrb[0].mxu0
    %v558 = vadd.f32 0.0, %v557
    %559 = vdwg.mxu0
    %560 = vmatprep.subr.mxu0 %v306
    %561 = vmatpush1.msra.mxu0 %v305
    %562 = vmatprep.subr.mxu0 %v312
    %563 = vmatpush1.msra.mxu0 %v311
    %564 = vmatprep.subr.mxu0 %v318
    %565 = vmatpush1.msra.mxu0 %v317
    %566 = vmatprep.subr.mxu0 %v324
    %567 = vmatpush1.msra.mxu0 %v323
    %568 = vmatprep.subr.mxu0 %v330
    %569 = vmatpush1.msra.mxu0 %v329
    %570 = vmatprep.subr.mxu0 %v336
    %571 = vmatpush1.msra.mxu0 %v335
    %572 = vmatprep.subr.mxu0 %v342
    %573 = vmatpush1.msra.mxu0 %v341
    %574 = vmatprep.subr.mxu0 %v348
    %575 = vmatpush1.msra.mxu0 %v347
    %576 = vmatprep.subr.mxu0 %v354
    %577 = vmatpush1.msra.mxu0 %v353
    %578 = vmatprep.subr.mxu0 %v360
    %579 = vmatpush1.msra.mxu0 %v359
    %580 = vmatprep.subr.mxu0 %v366
    %581 = vmatpush1.msra.mxu0 %v365
    %582 = vmatprep.subr.mxu0 %v372
    %583 = vmatpush1.msra.mxu0 %v371
    %584 = vmatprep.subr.mxu0 %v378
    %585 = vmatpush1.msra.mxu0 %v377
    %586 = vmatprep.subr.mxu0 %v384
    %587 = vmatpush1.msra.mxu0 %v383
    %588 = vmatprep.subr.mxu0 %v390
    %589 = vmatpush1.msra.mxu0 %v389
    %590 = vmatprep.subr.mxu0 %v396
    %591 = vmatpush1.msra.mxu0 %v395
    %592 = vmatprep.subr.mxu0 0.0
    %593 = vmatpush1.msra.mxu0 0.0
    %594 = vmatprep.subr.mxu0 0.0
    %595 = vmatpush1.msra.mxu0 0.0
    %596 = vmatprep.subr.mxu0 0.0
    %597 = vmatpush1.msra.mxu0 0.0
    %598 = vmatprep.subr.mxu0 0.0
    %599 = vmatpush1.msra.mxu0 0.0
    %600 = vmatprep.subr.mxu0 0.0
    %601 = vmatpush1.msra.mxu0 0.0
    %602 = vmatprep.subr.mxu0 0.0
    %603 = vmatpush1.msra.mxu0 0.0
    %604 = vmatprep.subr.mxu0 0.0
    %605 = vmatpush1.msra.mxu0 0.0
    %606 = vmatprep.subr.mxu0 0.0
    %607 = vmatpush1.msra.mxu0 0.0
    %608 = vmatprep.subr.mxu0 0.0
    %609 = vmatpush1.msra.mxu0 0.0
    %610 = vmatprep.subr.mxu0 0.0
    %611 = vmatpush1.msra.mxu0 0.0
    %612 = vmatprep.subr.mxu0 0.0
    %613 = vmatpush1.msra.mxu0 0.0
    %614 = vmatprep.subr.mxu0 0.0
    %615 = vmatpush1.msra.mxu0 0.0
    %616 = vmatprep.subr.mxu0 0.0
    %617 = vmatpush1.msra.mxu0 0.0
    %618 = vmatprep.subr.mxu0 0.0
    %619 = vmatpush1.msra.mxu0 0.0
    %620 = vmatprep.subr.mxu0 0.0
    %621 = vmatpush1.msra.mxu0 0.0
    %622 = vmatprep.subr.mxu0 0.0
    %623 = vmatpush1.msra.mxu0 0.0
    %624 = vmatprep.mubr.f32.mxu0 0.0
    %625 = vmatmul.mubr.f32.gmra.mrb[0].mxu0 %v287
    %v626 = vpop.f32.mrb[0].mxu0
    %v627 = vadd.f32 0.0, %v626
    %v628 = vpop.f32.mrb[0].mxu0
    %v629 = vadd.f32 0.0, %v628
    %630 = vmatprep.mubr.f32.mxu0 0.0
    %631 = vmatmul.mubr.f32.gmra.mrb[0].mxu0 %v288
    %v632 = vpop.f32.mrb[0].mxu0
    %v633 = vadd.f32 0.0, %v632
    %v634 = vpop.f32.mrb[0].mxu0
    %v635 = vadd.f32 0.0, %v634
    %636 = vmatprep.mubr.f32.mxu0 0.0
    %637 = vmatmul.mubr.f32.gmra.mrb[0].mxu0 %v289
    %v638 = vpop.f32.mrb[0].mxu0
    %v639 = vadd.f32 0.0, %v638
    %v640 = vpop.f32.mrb[0].mxu0
    %v641 = vadd.f32 0.0, %v640
    %642 = vmatprep.mubr.f32.mxu0 0.0
    %643 = vmatmul.mubr.f32.gmra.mrb[0].mxu0 %v290
    %v644 = vpop.f32.mrb[0].mxu0
    %v645 = vadd.f32 0.0, %v644
    %v646 = vpop.f32.mrb[0].mxu0
    %v647 = vadd.f32 0.0, %v646
    %648 = vmatprep.mubr.f32.mxu0 0.0
    %649 = vmatmul.mubr.f32.gmra.mrb[0].mxu0 %v291
    %v650 = vpop.f32.mrb[0].mxu0
    %v651 = vadd.f32 0.0, %v650
    %v652 = vpop.f32.mrb[0].mxu0
    %v653 = vadd.f32 0.0, %v652
    %654 = vmatprep.mubr.f32.mxu0 0.0
    %655 = vmatmul.mubr.f32.gmra.mrb[0].mxu0 %v292
    %v656 = vpop.f32.mrb[0].mxu0
    %v657 = vadd.f32 0.0, %v656
    %v658 = vpop.f32.mrb[0].mxu0
    %v659 = vadd.f32 0.0, %v658
    %660 = vmatprep.mubr.f32.mxu0 0.0
    %661 = vmatmul.mubr.f32.gmra.mrb[0].mxu0 %v293
    %v662 = vpop.f32.mrb[0].mxu0
    %v663 = vadd.f32 0.0, %v662
    %v664 = vpop.f32.mrb[0].mxu0
    %v665 = vadd.f32 0.0, %v664
    %666 = vmatprep.mubr.f32.mxu0 0.0
    %667 = vmatmul.mubr.f32.gmra.mrb[0].mxu0 %v294
    %v668 = vpop.f32.mrb[0].mxu0
    %v669 = vadd.f32 0.0, %v668
    %v670 = vpop.f32.mrb[0].mxu0
    %v671 = vadd.f32 0.0, %v670
    %672 = vmatprep.mubr.f32.mxu0 0.0
    %673 = vmatmul.mubr.f32.gmra.mrb[0].mxu0 %v295
    %v674 = vpop.f32.mrb[0].mxu0
    %v675 = vadd.f32 0.0, %v674
    %v676 = vpop.f32.mrb[0].mxu0
    %v677 = vadd.f32 0.0, %v676
    %678 = vmatprep.mubr.f32.mxu0 0.0
    %679 = vmatmul.mubr.f32.gmra.mrb[0].mxu0 %v296
    %v680 = vpop.f32.mrb[0].mxu0
    %v681 = vadd.f32 0.0, %v680
    %v682 = vpop.f32.mrb[0].mxu0
    %v683 = vadd.f32 0.0, %v682
    %684 = vmatprep.mubr.f32.mxu0 0.0
    %685 = vmatmul.mubr.f32.gmra.mrb[0].mxu0 %v297
    %v686 = vpop.f32.mrb[0].mxu0
    %v687 = vadd.f32 0.0, %v686
    %v688 = vpop.f32.mrb[0].mxu0
    %v689 = vadd.f32 0.0, %v688
    %690 = vmatprep.mubr.f32.mxu0 0.0
    %691 = vmatmul.mubr.f32.gmra.mrb[0].mxu0 %v298
    %v692 = vpop.f32.mrb[0].mxu0
    %v693 = vadd.f32 0.0, %v692
    %v694 = vpop.f32.mrb[0].mxu0
    %v695 = vadd.f32 0.0, %v694
    %696 = vmatprep.mubr.f32.mxu0 0.0
    %697 = vmatmul.mubr.f32.gmra.mrb[0].mxu0 %v299
    %v698 = vpop.f32.mrb[0].mxu0
    %v699 = vadd.f32 0.0, %v698
    %v700 = vpop.f32.mrb[0].mxu0
    %v701 = vadd.f32 0.0, %v700
    %702 = vmatprep.mubr.f32.mxu0 0.0
    %703 = vmatmul.mubr.f32.gmra.mrb[0].mxu0 %v300
    %v704 = vpop.f32.mrb[0].mxu0
    %v705 = vadd.f32 0.0, %v704
    %v706 = vpop.f32.mrb[0].mxu0
    %v707 = vadd.f32 0.0, %v706
    %708 = vmatprep.mubr.f32.mxu0 0.0
    %709 = vmatmul.mubr.f32.gmra.mrb[0].mxu0 %v301
    %v710 = vpop.f32.mrb[0].mxu0
    %v711 = vadd.f32 0.0, %v710
    %v712 = vpop.f32.mrb[0].mxu0
    %v713 = vadd.f32 0.0, %v712
    %714 = vmatprep.mubr.f32.mxu0 0.0
    %715 = vmatmul.mubr.f32.gmra.mrb[0].mxu0 %v302
    %v716 = vpop.f32.mrb[0].mxu0
    %v717 = vadd.f32 0.0, %v716
    %v718 = vpop.f32.mrb[0].mxu0
    %v719 = vadd.f32 0.0, %v718
    %720 = vdwg.mxu0
    %721 = vmatprep.subr.mxu0 %v308
    %722 = vmatpush1.msra.mxu0 %v307
    %723 = vmatprep.subr.mxu0 %v314
    %724 = vmatpush1.msra.mxu0 %v313
    %725 = vmatprep.subr.mxu0 %v320
    %726 = vmatpush1.msra.mxu0 %v319
    %727 = vmatprep.subr.mxu0 %v326
    %728 = vmatpush1.msra.mxu0 %v325
    %729 = vmatprep.subr.mxu0 %v332
    %730 = vmatpush1.msra.mxu0 %v331
    %731 = vmatprep.subr.mxu0 %v338
    %732 = vmatpush1.msra.mxu0 %v337
    %733 = vmatprep.subr.mxu0 %v344
    %734 = vmatpush1.msra.mxu0 %v343
    %735 = vmatprep.subr.mxu0 %v350
    %736 = vmatpush1.msra.mxu0 %v349
    %737 = vmatprep.subr.mxu0 %v356
    %738 = vmatpush1.msra.mxu0 %v355
    %739 = vmatprep.subr.mxu0 %v362
    %740 = vmatpush1.msra.mxu0 %v361
    %741 = vmatprep.subr.mxu0 %v368
    %742 = vmatpush1.msra.mxu0 %v367
    %743 = vmatprep.subr.mxu0 %v374
    %744 = vmatpush1.msra.mxu0 %v373
    %745 = vmatprep.subr.mxu0 %v380
    %746 = vmatpush1.msra.mxu0 %v379
    %747 = vmatprep.subr.mxu0 %v386
    %748 = vmatpush1.msra.mxu0 %v385
    %749 = vmatprep.subr.mxu0 %v392
    %750 = vmatpush1.msra.mxu0 %v391
    %751 = vmatprep.subr.mxu0 %v398
    %752 = vmatpush1.msra.mxu0 %v397
    %753 = vmatprep.subr.mxu0 0.0
    %754 = vmatpush1.msra.mxu0 0.0
    %755 = vmatprep.subr.mxu0 0.0
    %756 = vmatpush1.msra.mxu0 0.0
    %757 = vmatprep.subr.mxu0 0.0
    %758 = vmatpush1.msra.mxu0 0.0
    %759 = vmatprep.subr.mxu0 0.0
    %760 = vmatpush1.msra.mxu0 0.0
    %761 = vmatprep.subr.mxu0 0.0
    %762 = vmatpush1.msra.mxu0 0.0
    %763 = vmatprep.subr.mxu0 0.0
    %764 = vmatpush1.msra.mxu0 0.0
    %765 = vmatprep.subr.mxu0 0.0
    %766 = vmatpush1.msra.mxu0 0.0
    %767 = vmatprep.subr.mxu0 0.0
    %768 = vmatpush1.msra.mxu0 0.0
    %769 = vmatprep.subr.mxu0 0.0
    %770 = vmatpush1.msra.mxu0 0.0
    %771 = vmatprep.subr.mxu0 0.0
    %772 = vmatpush1.msra.mxu0 0.0
    %773 = vmatprep.subr.mxu0 0.0
    %774 = vmatpush1.msra.mxu0 0.0
    %775 = vmatprep.subr.mxu0 0.0
    %776 = vmatpush1.msra.mxu0 0.0
    %777 = vmatprep.subr.mxu0 0.0
    %778 = vmatpush1.msra.mxu0 0.0
    %779 = vmatprep.subr.mxu0 0.0
    %780 = vmatpush1.msra.mxu0 0.0
    %781 = vmatprep.subr.mxu0 0.0
    %782 = vmatpush1.msra.mxu0 0.0
    %783 = vmatprep.subr.mxu0 0.0
    %784 = vmatpush1.msra.mxu0 0.0
    %785 = vmatprep.mubr.f32.mxu0 0.0
    %786 = vmatmul.mubr.f32.gmra.mrb[0].mxu0 %v287
    %v787 = vpop.f32.mrb[0].mxu0
    %v788 = vadd.f32 0.0, %v787
    %v789 = vpop.f32.mrb[0].mxu0
    %v790 = vadd.f32 0.0, %v789
    %791 = vmatprep.mubr.f32.mxu0 0.0
    %792 = vmatmul.mubr.f32.gmra.mrb[0].mxu0 %v288
    %v793 = vpop.f32.mrb[0].mxu0
    %v794 = vadd.f32 0.0, %v793
    %v795 = vpop.f32.mrb[0].mxu0
    %v796 = vadd.f32 0.0, %v795
    %797 = vmatprep.mubr.f32.mxu0 0.0
    %798 = vmatmul.mubr.f32.gmra.mrb[0].mxu0 %v289
    %v799 = vpop.f32.mrb[0].mxu0
    %v800 = vadd.f32 0.0, %v799
    %v801 = vpop.f32.mrb[0].mxu0
    %v802 = vadd.f32 0.0, %v801
    %803 = vmatprep.mubr.f32.mxu0 0.0
    %804 = vmatmul.mubr.f32.gmra.mrb[0].mxu0 %v290
    %v805 = vpop.f32.mrb[0].mxu0
    %v806 = vadd.f32 0.0, %v805
    %v807 = vpop.f32.mrb[0].mxu0
    %v808 = vadd.f32 0.0, %v807
    %809 = vmatprep.mubr.f32.mxu0 0.0
    %810 = vmatmul.mubr.f32.gmra.mrb[0].mxu0 %v291
    %v811 = vpop.f32.mrb[0].mxu0
    %v812 = vadd.f32 0.0, %v811
    %v813 = vpop.f32.mrb[0].mxu0
    %v814 = vadd.f32 0.0, %v813
    %815 = vmatprep.mubr.f32.mxu0 0.0
    %816 = vmatmul.mubr.f32.gmra.mrb[0].mxu0 %v292
    %v817 = vpop.f32.mrb[0].mxu0
    %v818 = vadd.f32 0.0, %v817
    %v819 = vpop.f32.mrb[0].mxu0
    %v820 = vadd.f32 0.0, %v819
    %821 = vmatprep.mubr.f32.mxu0 0.0
    %822 = vmatmul.mubr.f32.gmra.mrb[0].mxu0 %v293
    %v823 = vpop.f32.mrb[0].mxu0
    %v824 = vadd.f32 0.0, %v823
    %v825 = vpop.f32.mrb[0].mxu0
    %v826 = vadd.f32 0.0, %v825
    %827 = vmatprep.mubr.f32.mxu0 0.0
    %828 = vmatmul.mubr.f32.gmra.mrb[0].mxu0 %v294
    %v829 = vpop.f32.mrb[0].mxu0
    %v830 = vadd.f32 0.0, %v829
    %v831 = vpop.f32.mrb[0].mxu0
    %v832 = vadd.f32 0.0, %v831
    %833 = vmatprep.mubr.f32.mxu0 0.0
    %834 = vmatmul.mubr.f32.gmra.mrb[0].mxu0 %v295
    %v835 = vpop.f32.mrb[0].mxu0
    %v836 = vadd.f32 0.0, %v835
    %v837 = vpop.f32.mrb[0].mxu0
    %v838 = vadd.f32 0.0, %v837
    %839 = vmatprep.mubr.f32.mxu0 0.0
    %840 = vmatmul.mubr.f32.gmra.mrb[0].mxu0 %v296
    %v841 = vpop.f32.mrb[0].mxu0
    %v842 = vadd.f32 0.0, %v841
    %v843 = vpop.f32.mrb[0].mxu0
    %v844 = vadd.f32 0.0, %v843
    %845 = vmatprep.mubr.f32.mxu0 0.0
    %846 = vmatmul.mubr.f32.gmra.mrb[0].mxu0 %v297
    %v847 = vpop.f32.mrb[0].mxu0
    %v848 = vadd.f32 0.0, %v847
    %v849 = vpop.f32.mrb[0].mxu0
    %v850 = vadd.f32 0.0, %v849
    %851 = vmatprep.mubr.f32.mxu0 0.0
    %852 = vmatmul.mubr.f32.gmra.mrb[0].mxu0 %v298
    %v853 = vpop.f32.mrb[0].mxu0
    %v854 = vadd.f32 0.0, %v853
    %v855 = vpop.f32.mrb[0].mxu0
    %v856 = vadd.f32 0.0, %v855
    %857 = vmatprep.mubr.f32.mxu0 0.0
    %858 = vmatmul.mubr.f32.gmra.mrb[0].mxu0 %v299
    %v859 = vpop.f32.mrb[0].mxu0
    %v860 = vadd.f32 0.0, %v859
    %v861 = vpop.f32.mrb[0].mxu0
    %v862 = vadd.f32 0.0, %v861
    %863 = vmatprep.mubr.f32.mxu0 0.0
    %864 = vmatmul.mubr.f32.gmra.mrb[0].mxu0 %v300
    %v865 = vpop.f32.mrb[0].mxu0
    %v866 = vadd.f32 0.0, %v865
    %v867 = vpop.f32.mrb[0].mxu0
    %v868 = vadd.f32 0.0, %v867
    %869 = vmatprep.mubr.f32.mxu0 0.0
    %870 = vmatmul.mubr.f32.gmra.mrb[0].mxu0 %v301
    %v871 = vpop.f32.mrb[0].mxu0
    %v872 = vadd.f32 0.0, %v871
    %v873 = vpop.f32.mrb[0].mxu0
    %v874 = vadd.f32 0.0, %v873
    %875 = vmatprep.mubr.f32.mxu0 0.0
    %876 = vmatmul.mubr.f32.gmra.mrb[0].mxu0 %v302
    %v877 = vpop.f32.mrb[0].mxu0
    %v878 = vadd.f32 0.0, %v877
    %v879 = vpop.f32.mrb[0].mxu0
    %v880 = vadd.f32 0.0, %v879
    %881 = vdwg.mxu0
    %s882 = scalar_lea.hbm %s7, 2048
    %s883 = scalar_lea.vmem [#allocation2], 128
    %s884 = scalar_lea.sflag [#allocation3], 1
    // Predicated region
    $region42: #{net_forward.1} parent=1 // pred_check
      _
    $region43: #{net_forward.1} parent=1 // pred_check_branch
      %886 = sbr.rel target = $region45
    $region44: #{net_forward.1} parent=1 // pred_region
      %887 = sst [smem:[#allocation10]] [#allocation13]
      %888 = sst [smem:[#allocation11]] [#allocation12]
    $region45: #{net_forward.1} parent=1 // pred_fallthru
      _
    %890 = shalt.err (0)
    %s892 = sshll.u32 %s883, 4
    %s893 = int_to_ptr.vmem [resolvable:$true] %s892
    %895 = dma.hbm_to_vmem [thread:$0]  %s882, 2048, %s893, %s884
    %s896 = smul.u32 128, 1
    %s897 = sshll.u32 %s896, 4
    %898 = dma.done [#allocation3], %s897
    %v899 = vld [vmem:[%s0] sm:$0xff]
    %v900 = vld [vmem:[%s0 + $0x8] sm:$0xff]
    %v901 = vld [vmem:[%s0 + $0x10] sm:$0xff]
    %v902 = vld [vmem:[%s0 + $0x18] sm:$0xff]
    %v903 = vld [vmem:[%s0 + $0x20] sm:$0xff]
    %v904 = vld [vmem:[%s0 + $0x28] sm:$0xff]
    %v905 = vld [vmem:[%s0 + $0x30] sm:$0xff]
    %v906 = vld [vmem:[%s0 + $0x38] sm:$0xff]
    %v907 = vld [vmem:[%s0 + $0x40] sm:$0xff]
    %v908 = vld [vmem:[%s0 + $0x48] sm:$0xff]
    %v909 = vld [vmem:[%s0 + $0x50] sm:$0xff]
    %v910 = vld [vmem:[%s0 + $0x58] sm:$0xff]
    %v911 = vld [vmem:[%s0 + $0x60] sm:$0xff]
    %v912 = vld [vmem:[%s0 + $0x68] sm:$0xff]
    %v913 = vld [vmem:[%s0 + $0x70] sm:$0xff]
    %v914 = vld [vmem:[%s0 + $0x78] sm:$0xff]
    %915 = vmatprep.subr.mxu0 0.0
    %916 = vmatpush1.msra.mxu0 %v287
    %917 = vmatprep.subr.mxu0 0.0
    %918 = vmatpush1.msra.mxu0 %v288
    %919 = vmatprep.subr.mxu0 0.0
    %920 = vmatpush1.msra.mxu0 %v289
    %921 = vmatprep.subr.mxu0 0.0
    %922 = vmatpush1.msra.mxu0 %v290
    %923 = vmatprep.subr.mxu0 0.0
    %924 = vmatpush1.msra.mxu0 %v291
    %925 = vmatprep.subr.mxu0 0.0
    %926 = vmatpush1.msra.mxu0 %v292
    %927 = vmatprep.subr.mxu0 0.0
    %928 = vmatpush1.msra.mxu0 %v293
    %929 = vmatprep.subr.mxu0 0.0
    %930 = vmatpush1.msra.mxu0 %v294
    %931 = vmatprep.subr.mxu0 0.0
    %932 = vmatpush1.msra.mxu0 %v295
    %933 = vmatprep.subr.mxu0 0.0
    %934 = vmatpush1.msra.mxu0 %v296
    %935 = vmatprep.subr.mxu0 0.0
    %936 = vmatpush1.msra.mxu0 %v297
    %937 = vmatprep.subr.mxu0 0.0
    %938 = vmatpush1.msra.mxu0 %v298
    %939 = vmatprep.subr.mxu0 0.0
    %940 = vmatpush1.msra.mxu0 %v299
    %941 = vmatprep.subr.mxu0 0.0
    %942 = vmatpush1.msra.mxu0 %v300
    %943 = vmatprep.subr.mxu0 0.0
    %944 = vmatpush1.msra.mxu0 %v301
    %945 = vmatprep.subr.mxu0 0.0
    %946 = vmatpush1.msra.mxu0 %v302
    %947 = vmatprep.subr.mxu0 0.0
    %948 = vmatpush1.msra.mxu0 0.0
    %949 = vmatprep.subr.mxu0 0.0
    %950 = vmatpush1.msra.mxu0 0.0
    %951 = vmatprep.subr.mxu0 0.0
    %952 = vmatpush1.msra.mxu0 0.0
    %953 = vmatprep.subr.mxu0 0.0
    %954 = vmatpush1.msra.mxu0 0.0
    %955 = vmatprep.subr.mxu0 0.0
    %956 = vmatpush1.msra.mxu0 0.0
    %957 = vmatprep.subr.mxu0 0.0
    %958 = vmatpush1.msra.mxu0 0.0
    %959 = vmatprep.subr.mxu0 0.0
    %960 = vmatpush1.msra.mxu0 0.0
    %961 = vmatprep.subr.mxu0 0.0
    %962 = vmatpush1.msra.mxu0 0.0
    %963 = vmatprep.subr.mxu0 0.0
    %964 = vmatpush1.msra.mxu0 0.0
    %965 = vmatprep.subr.mxu0 0.0
    %966 = vmatpush1.msra.mxu0 0.0
    %967 = vmatprep.subr.mxu0 0.0
    %968 = vmatpush1.msra.mxu0 0.0
    %969 = vmatprep.subr.mxu0 0.0
    %970 = vmatpush1.msra.mxu0 0.0
    %971 = vmatprep.subr.mxu0 0.0
    %972 = vmatpush1.msra.mxu0 0.0
    %973 = vmatprep.subr.mxu0 0.0
    %974 = vmatpush1.msra.mxu0 0.0
    %975 = vmatprep.subr.mxu0 0.0
    %976 = vmatpush1.msra.mxu0 0.0
    %977 = vmatprep.subr.mxu0 0.0
    %978 = vmatpush1.msra.mxu0 0.0
    %979 = vmatprep.mubr.f32.mxu0 0.0
    %980 = vmatmul.mubr.f32.gmra.mrb[0].mxu0 %v899
    %v981 = vpop.f32.mrb[0].mxu0
    %v982 = vadd.f32 0.0, %v981
    %v983 = vpop.f32.mrb[0].mxu0
    %984 = vmatprep.mubr.f32.mxu0 0.0
    %985 = vmatmul.mubr.f32.gmra.mrb[0].mxu0 %v900
    %v986 = vpop.f32.mrb[0].mxu0
    %v987 = vadd.f32 0.0, %v986
    %v988 = vpop.f32.mrb[0].mxu0
    %989 = vmatprep.mubr.f32.mxu0 0.0
    %990 = vmatmul.mubr.f32.gmra.mrb[0].mxu0 %v901
    %v991 = vpop.f32.mrb[0].mxu0
    %v992 = vadd.f32 0.0, %v991
    %v993 = vpop.f32.mrb[0].mxu0
    %994 = vmatprep.mubr.f32.mxu0 0.0
    %995 = vmatmul.mubr.f32.gmra.mrb[0].mxu0 %v902
    %v996 = vpop.f32.mrb[0].mxu0
    %v997 = vadd.f32 0.0, %v996
    %v998 = vpop.f32.mrb[0].mxu0
    %999 = vmatprep.mubr.f32.mxu0 0.0
    %1000 = vmatmul.mubr.f32.gmra.mrb[0].mxu0 %v903
    %v1001 = vpop.f32.mrb[0].mxu0
    %v1002 = vadd.f32 0.0, %v1001
    %v1003 = vpop.f32.mrb[0].mxu0
    %1004 = vmatprep.mubr.f32.mxu0 0.0
    %1005 = vmatmul.mubr.f32.gmra.mrb[0].mxu0 %v904
    %v1006 = vpop.f32.mrb[0].mxu0
    %v1007 = vadd.f32 0.0, %v1006
    %v1008 = vpop.f32.mrb[0].mxu0
    %1009 = vmatprep.mubr.f32.mxu0 0.0
    %1010 = vmatmul.mubr.f32.gmra.mrb[0].mxu0 %v905
    %v1011 = vpop.f32.mrb[0].mxu0
    %v1012 = vadd.f32 0.0, %v1011
    %v1013 = vpop.f32.mrb[0].mxu0
    %1014 = vmatprep.mubr.f32.mxu0 0.0
    %1015 = vmatmul.mubr.f32.gmra.mrb[0].mxu0 %v906
    %v1016 = vpop.f32.mrb[0].mxu0
    %v1017 = vadd.f32 0.0, %v1016
    %v1018 = vpop.f32.mrb[0].mxu0
    %1019 = vmatprep.mubr.f32.mxu0 0.0
    %1020 = vmatmul.mubr.f32.gmra.mrb[0].mxu0 %v907
    %v1021 = vpop.f32.mrb[0].mxu0
    %v1022 = vadd.f32 0.0, %v1021
    %v1023 = vpop.f32.mrb[0].mxu0
    %1024 = vmatprep.mubr.f32.mxu0 0.0
    %1025 = vmatmul.mubr.f32.gmra.mrb[0].mxu0 %v908
    %v1026 = vpop.f32.mrb[0].mxu0
    %v1027 = vadd.f32 0.0, %v1026
    %v1028 = vpop.f32.mrb[0].mxu0
    %1029 = vmatprep.mubr.f32.mxu0 0.0
    %1030 = vmatmul.mubr.f32.gmra.mrb[0].mxu0 %v909
    %v1031 = vpop.f32.mrb[0].mxu0
    %v1032 = vadd.f32 0.0, %v1031
    %v1033 = vpop.f32.mrb[0].mxu0
    %1034 = vmatprep.mubr.f32.mxu0 0.0
    %1035 = vmatmul.mubr.f32.gmra.mrb[0].mxu0 %v910
    %v1036 = vpop.f32.mrb[0].mxu0
    %v1037 = vadd.f32 0.0, %v1036
    %v1038 = vpop.f32.mrb[0].mxu0
    %1039 = vmatprep.mubr.f32.mxu0 0.0
    %1040 = vmatmul.mubr.f32.gmra.mrb[0].mxu0 %v911
    %v1041 = vpop.f32.mrb[0].mxu0
    %v1042 = vadd.f32 0.0, %v1041
    %v1043 = vpop.f32.mrb[0].mxu0
    %1044 = vmatprep.mubr.f32.mxu0 0.0
    %1045 = vmatmul.mubr.f32.gmra.mrb[0].mxu0 %v912
    %v1046 = vpop.f32.mrb[0].mxu0
    %v1047 = vadd.f32 0.0, %v1046
    %v1048 = vpop.f32.mrb[0].mxu0
    %1049 = vmatprep.mubr.f32.mxu0 0.0
    %1050 = vmatmul.mubr.f32.gmra.mrb[0].mxu0 %v913
    %v1051 = vpop.f32.mrb[0].mxu0
    %v1052 = vadd.f32 0.0, %v1051
    %v1053 = vpop.f32.mrb[0].mxu0
    %1054 = vmatprep.mubr.f32.mxu0 0.0
    %1055 = vmatmul.mubr.f32.gmra.mrb[0].mxu0 %v914
    %v1056 = vpop.f32.mrb[0].mxu0
    %v1057 = vadd.f32 0.0, %v1056
    %v1058 = vpop.f32.mrb[0].mxu0
    %1059 = vdwg.mxu0
    %v1060 = vld [vmem:[#allocation2] sm:$0xff]
    %v1061 = vld [vmem:[#allocation2 + $0x8] sm:$0xff]
    %v1062 = vld [vmem:[#allocation2 + $0x10] sm:$0xff]
    %v1063 = vld [vmem:[#allocation2 + $0x18] sm:$0xff]
    %v1064 = vld [vmem:[#allocation2 + $0x20] sm:$0xff]
    %v1065 = vld [vmem:[#allocation2 + $0x28] sm:$0xff]
    %v1066 = vld [vmem:[#allocation2 + $0x30] sm:$0xff]
    %v1067 = vld [vmem:[#allocation2 + $0x38] sm:$0xff]
    %v1068 = vld [vmem:[#allocation2 + $0x40] sm:$0xff]
    %v1069 = vld [vmem:[#allocation2 + $0x48] sm:$0xff]
    %v1070 = vld [vmem:[#allocation2 + $0x50] sm:$0xff]
    %v1071 = vld [vmem:[#allocation2 + $0x58] sm:$0xff]
    %v1072 = vld [vmem:[#allocation2 + $0x60] sm:$0xff]
    %v1073 = vld [vmem:[#allocation2 + $0x68] sm:$0xff]
    %v1074 = vld [vmem:[#allocation2 + $0x70] sm:$0xff]
    %v1075 = vld [vmem:[#allocation2 + $0x78] sm:$0xff]
    %1076 = vmatprep.subr.mxu0 0.0
    %1077 = vmatpush1.msra.mxu0 %v1060
    %1078 = vmatprep.subr.mxu0 0.0
    %1079 = vmatpush1.msra.mxu0 %v1061
    %1080 = vmatprep.subr.mxu0 0.0
    %1081 = vmatpush1.msra.mxu0 %v1062
    %1082 = vmatprep.subr.mxu0 0.0
    %1083 = vmatpush1.msra.mxu0 %v1063
    %1084 = vmatprep.subr.mxu0 0.0
    %1085 = vmatpush1.msra.mxu0 %v1064
    %1086 = vmatprep.subr.mxu0 0.0
    %1087 = vmatpush1.msra.mxu0 %v1065
    %1088 = vmatprep.subr.mxu0 0.0
    %1089 = vmatpush1.msra.mxu0 %v1066
    %1090 = vmatprep.subr.mxu0 0.0
    %1091 = vmatpush1.msra.mxu0 %v1067
    %1092 = vmatprep.subr.mxu0 0.0
    %1093 = vmatpush1.msra.mxu0 %v1068
    %1094 = vmatprep.subr.mxu0 0.0
    %1095 = vmatpush1.msra.mxu0 %v1069
    %1096 = vmatprep.subr.mxu0 0.0
    %1097 = vmatpush1.msra.mxu0 %v1070
    %1098 = vmatprep.subr.mxu0 0.0
    %1099 = vmatpush1.msra.mxu0 %v1071
    %1100 = vmatprep.subr.mxu0 0.0
    %1101 = vmatpush1.msra.mxu0 %v1072
    %1102 = vmatprep.subr.mxu0 0.0
    %1103 = vmatpush1.msra.mxu0 %v1073
    %1104 = vmatprep.subr.mxu0 0.0
    %1105 = vmatpush1.msra.mxu0 %v1074
    %1106 = vmatprep.subr.mxu0 0.0
    %1107 = vmatpush1.msra.mxu0 %v1075
    %1108 = vmatprep.subr.mxu0 0.0
    %1109 = vmatpush1.msra.mxu0 0.0
    %1110 = vmatprep.subr.mxu0 0.0
    %1111 = vmatpush1.msra.mxu0 0.0
    %1112 = vmatprep.subr.mxu0 0.0
    %1113 = vmatpush1.msra.mxu0 0.0
    %1114 = vmatprep.subr.mxu0 0.0
    %1115 = vmatpush1.msra.mxu0 0.0
    %1116 = vmatprep.subr.mxu0 0.0
    %1117 = vmatpush1.msra.mxu0 0.0
    %1118 = vmatprep.subr.mxu0 0.0
    %1119 = vmatpush1.msra.mxu0 0.0
    %1120 = vmatprep.subr.mxu0 0.0
    %1121 = vmatpush1.msra.mxu0 0.0
    %1122 = vmatprep.subr.mxu0 0.0
    %1123 = vmatpush1.msra.mxu0 0.0
    %1124 = vmatprep.subr.mxu0 0.0
    %1125 = vmatpush1.msra.mxu0 0.0
    %1126 = vmatprep.subr.mxu0 0.0
    %1127 = vmatpush1.msra.mxu0 0.0
    %1128 = vmatprep.subr.mxu0 0.0
    %1129 = vmatpush1.msra.mxu0 0.0
    %1130 = vmatprep.subr.mxu0 0.0
    %1131 = vmatpush1.msra.mxu0 0.0
    %1132 = vmatprep.subr.mxu0 0.0
    %1133 = vmatpush1.msra.mxu0 0.0
    %1134 = vmatprep.subr.mxu0 0.0
    %1135 = vmatpush1.msra.mxu0 0.0
    %1136 = vmatprep.subr.mxu0 0.0
    %1137 = vmatpush1.msra.mxu0 0.0
    %1138 = vmatprep.subr.mxu0 0.0
    %1139 = vmatpush1.msra.mxu0 0.0
    %1140 = vmatprep.mubr.f32.mxu0 0.0
    %1141 = vmatmul.mubr.f32.gmra.mrb[0].mxu0 %v982
    %v1142 = vpop.f32.mrb[0].mxu0
    %v1143 = vadd.f32 %v466, %v1142
    %v1144 = vpop.f32.mrb[0].mxu0
    %1145 = vmatprep.mubr.f32.mxu0 0.0
    %1146 = vmatmul.mubr.f32.gmra.mrb[0].mxu0 %v987
    %v1147 = vpop.f32.mrb[0].mxu0
    %v1148 = vadd.f32 %v472, %v1147
    %v1149 = vpop.f32.mrb[0].mxu0
    %1150 = vmatprep.mubr.f32.mxu0 0.0
    %1151 = vmatmul.mubr.f32.gmra.mrb[0].mxu0 %v992
    %v1152 = vpop.f32.mrb[0].mxu0
    %v1153 = vadd.f32 %v478, %v1152
    %v1154 = vpop.f32.mrb[0].mxu0
    %1155 = vmatprep.mubr.f32.mxu0 0.0
    %1156 = vmatmul.mubr.f32.gmra.mrb[0].mxu0 %v997
    %v1157 = vpop.f32.mrb[0].mxu0
    %v1158 = vadd.f32 %v484, %v1157
    %v1159 = vpop.f32.mrb[0].mxu0
    %1160 = vmatprep.mubr.f32.mxu0 0.0
    %1161 = vmatmul.mubr.f32.gmra.mrb[0].mxu0 %v1002
    %v1162 = vpop.f32.mrb[0].mxu0
    %v1163 = vadd.f32 %v490, %v1162
    %v1164 = vpop.f32.mrb[0].mxu0
    %1165 = vmatprep.mubr.f32.mxu0 0.0
    %1166 = vmatmul.mubr.f32.gmra.mrb[0].mxu0 %v1007
    %v1167 = vpop.f32.mrb[0].mxu0
    %v1168 = vadd.f32 %v496, %v1167
    %v1169 = vpop.f32.mrb[0].mxu0
    %1170 = vmatprep.mubr.f32.mxu0 0.0
    %1171 = vmatmul.mubr.f32.gmra.mrb[0].mxu0 %v1012
    %v1172 = vpop.f32.mrb[0].mxu0
    %v1173 = vadd.f32 %v502, %v1172
    %v1174 = vpop.f32.mrb[0].mxu0
    %1175 = vmatprep.mubr.f32.mxu0 0.0
    %1176 = vmatmul.mubr.f32.gmra.mrb[0].mxu0 %v1017
    %v1177 = vpop.f32.mrb[0].mxu0
    %v1178 = vadd.f32 %v508, %v1177
    %v1179 = vpop.f32.mrb[0].mxu0
    %1180 = vmatprep.mubr.f32.mxu0 0.0
    %1181 = vmatmul.mubr.f32.gmra.mrb[0].mxu0 %v1022
    %v1182 = vpop.f32.mrb[0].mxu0
    %v1183 = vadd.f32 %v514, %v1182
    %v1184 = vpop.f32.mrb[0].mxu0
    %1185 = vmatprep.mubr.f32.mxu0 0.0
    %1186 = vmatmul.mubr.f32.gmra.mrb[0].mxu0 %v1027
    %v1187 = vpop.f32.mrb[0].mxu0
    %v1188 = vadd.f32 %v520, %v1187
    %v1189 = vpop.f32.mrb[0].mxu0
    %1190 = vmatprep.mubr.f32.mxu0 0.0
    %1191 = vmatmul.mubr.f32.gmra.mrb[0].mxu0 %v1032
    %v1192 = vpop.f32.mrb[0].mxu0
    %v1193 = vadd.f32 %v526, %v1192
    %v1194 = vpop.f32.mrb[0].mxu0
    %1195 = vmatprep.mubr.f32.mxu0 0.0
    %1196 = vmatmul.mubr.f32.gmra.mrb[0].mxu0 %v1037
    %v1197 = vpop.f32.mrb[0].mxu0
    %v1198 = vadd.f32 %v532, %v1197
    %v1199 = vpop.f32.mrb[0].mxu0
    %1200 = vmatprep.mubr.f32.mxu0 0.0
    %1201 = vmatmul.mubr.f32.gmra.mrb[0].mxu0 %v1042
    %v1202 = vpop.f32.mrb[0].mxu0
    %v1203 = vadd.f32 %v538, %v1202
    %v1204 = vpop.f32.mrb[0].mxu0
    %1205 = vmatprep.mubr.f32.mxu0 0.0
    %1206 = vmatmul.mubr.f32.gmra.mrb[0].mxu0 %v1047
    %v1207 = vpop.f32.mrb[0].mxu0
    %v1208 = vadd.f32 %v544, %v1207
    %v1209 = vpop.f32.mrb[0].mxu0
    %1210 = vmatprep.mubr.f32.mxu0 0.0
    %1211 = vmatmul.mubr.f32.gmra.mrb[0].mxu0 %v1052
    %v1212 = vpop.f32.mrb[0].mxu0
    %v1213 = vadd.f32 %v550, %v1212
    %v1214 = vpop.f32.mrb[0].mxu0
    %1215 = vmatprep.mubr.f32.mxu0 0.0
    %1216 = vmatmul.mubr.f32.gmra.mrb[0].mxu0 %v1057
    %v1217 = vpop.f32.mrb[0].mxu0
    %v1218 = vadd.f32 %v556, %v1217
    %v1219 = vpop.f32.mrb[0].mxu0
    %1220 = vdwg.mxu0
    %v1221 = vmax.f32 %v1143, 0.0
    %v1222 = vmax.f32 %v1148, 0.0
    %v1223 = vmax.f32 %v1153, 0.0
    %v1224 = vmax.f32 %v1158, 0.0
    %v1225 = vmax.f32 %v1163, 0.0
    %v1226 = vmax.f32 %v1168, 0.0
    %v1227 = vmax.f32 %v1173, 0.0
    %v1228 = vmax.f32 %v1178, 0.0
    %v1229 = vmax.f32 %v1183, 0.0
    %v1230 = vmax.f32 %v1188, 0.0
    %v1231 = vmax.f32 %v1193, 0.0
    %v1232 = vmax.f32 %v1198, 0.0
    %v1233 = vmax.f32 %v1203, 0.0
    %v1234 = vmax.f32 %v1208, 0.0
    %v1235 = vmax.f32 %v1213, 0.0
    %v1236 = vmax.f32 %v1218, 0.0
    %s1237 = scalar_lea.hbm %s7, 4096
    // Predicated region
    $region46: #{net_forward.1} parent=1 // pred_check
      _
    $region47: #{net_forward.1} parent=1 // pred_check_branch
      %1239 = sbr.rel target = $region49
    $region48: #{net_forward.1} parent=1 // pred_region
      %1240 = sst [smem:[#allocation10]] [#allocation15]
      %1241 = sst [smem:[#allocation11]] [#allocation14]
    $region49: #{net_forward.1} parent=1 // pred_fallthru
      _
    %1243 = shalt.err (0)
    %s1245 = sshll.u32 [#allocation2], 4
    %s1246 = int_to_ptr.vmem [resolvable:$true] %s1245
    %1248 = dma.hbm_to_vmem [thread:$0]  %s1237, 2048, %s1246, [#allocation3]
    %s1249 = sshll.u32 %s896, 4
    %1250 = dma.done %s884, %s1249
    %v1251 = vld [vmem:[%s0] sm:$0xff]
    %v1252 = vld [vmem:[%s0 + $0x8] sm:$0xff]
    %v1253 = vld [vmem:[%s0 + $0x10] sm:$0xff]
    %v1254 = vld [vmem:[%s0 + $0x18] sm:$0xff]
    %v1255 = vld [vmem:[%s0 + $0x20] sm:$0xff]
    %v1256 = vld [vmem:[%s0 + $0x28] sm:$0xff]
    %v1257 = vld [vmem:[%s0 + $0x30] sm:$0xff]
    %v1258 = vld [vmem:[%s0 + $0x38] sm:$0xff]
    %v1259 = vld [vmem:[%s0 + $0x40] sm:$0xff]
    %v1260 = vld [vmem:[%s0 + $0x48] sm:$0xff]
    %v1261 = vld [vmem:[%s0 + $0x50] sm:$0xff]
    %v1262 = vld [vmem:[%s0 + $0x58] sm:$0xff]
    %v1263 = vld [vmem:[%s0 + $0x60] sm:$0xff]
    %v1264 = vld [vmem:[%s0 + $0x68] sm:$0xff]
    %v1265 = vld [vmem:[%s0 + $0x70] sm:$0xff]
    %v1266 = vld [vmem:[%s0 + $0x78] sm:$0xff]
    %1267 = vmatprep.subr.mxu0 0.0
    %1268 = vmatpush1.msra.mxu0 %v1221
    %1269 = vmatprep.subr.mxu0 0.0
    %1270 = vmatpush1.msra.mxu0 %v1222
    %1271 = vmatprep.subr.mxu0 0.0
    %1272 = vmatpush1.msra.mxu0 %v1223
    %1273 = vmatprep.subr.mxu0 0.0
    %1274 = vmatpush1.msra.mxu0 %v1224
    %1275 = vmatprep.subr.mxu0 0.0
    %1276 = vmatpush1.msra.mxu0 %v1225
    %1277 = vmatprep.subr.mxu0 0.0
    %1278 = vmatpush1.msra.mxu0 %v1226
    %1279 = vmatprep.subr.mxu0 0.0
    %1280 = vmatpush1.msra.mxu0 %v1227
    %1281 = vmatprep.subr.mxu0 0.0
    %1282 = vmatpush1.msra.mxu0 %v1228
    %1283 = vmatprep.subr.mxu0 0.0
    %1284 = vmatpush1.msra.mxu0 %v1229
    %1285 = vmatprep.subr.mxu0 0.0
    %1286 = vmatpush1.msra.mxu0 %v1230
    %1287 = vmatprep.subr.mxu0 0.0
    %1288 = vmatpush1.msra.mxu0 %v1231
    %1289 = vmatprep.subr.mxu0 0.0
    %1290 = vmatpush1.msra.mxu0 %v1232
    %1291 = vmatprep.subr.mxu0 0.0
    %1292 = vmatpush1.msra.mxu0 %v1233
    %1293 = vmatprep.subr.mxu0 0.0
    %1294 = vmatpush1.msra.mxu0 %v1234
    %1295 = vmatprep.subr.mxu0 0.0
    %1296 = vmatpush1.msra.mxu0 %v1235
    %1297 = vmatprep.subr.mxu0 0.0
    %1298 = vmatpush1.msra.mxu0 %v1236
    %1299 = vmatprep.subr.mxu0 0.0
    %1300 = vmatpush1.msra.mxu0 0.0
    %1301 = vmatprep.subr.mxu0 0.0
    %1302 = vmatpush1.msra.mxu0 0.0
    %1303 = vmatprep.subr.mxu0 0.0
    %1304 = vmatpush1.msra.mxu0 0.0
    %1305 = vmatprep.subr.mxu0 0.0
    %1306 = vmatpush1.msra.mxu0 0.0
    %1307 = vmatprep.subr.mxu0 0.0
    %1308 = vmatpush1.msra.mxu0 0.0
    %1309 = vmatprep.subr.mxu0 0.0
    %1310 = vmatpush1.msra.mxu0 0.0
    %1311 = vmatprep.subr.mxu0 0.0
    %1312 = vmatpush1.msra.mxu0 0.0
    %1313 = vmatprep.subr.mxu0 0.0
    %1314 = vmatpush1.msra.mxu0 0.0
    %1315 = vmatprep.subr.mxu0 0.0
    %1316 = vmatpush1.msra.mxu0 0.0
    %1317 = vmatprep.subr.mxu0 0.0
    %1318 = vmatpush1.msra.mxu0 0.0
    %1319 = vmatprep.subr.mxu0 0.0
    %1320 = vmatpush1.msra.mxu0 0.0
    %1321 = vmatprep.subr.mxu0 0.0
    %1322 = vmatpush1.msra.mxu0 0.0
    %1323 = vmatprep.subr.mxu0 0.0
    %1324 = vmatpush1.msra.mxu0 0.0
    %1325 = vmatprep.subr.mxu0 0.0
    %1326 = vmatpush1.msra.mxu0 0.0
    %1327 = vmatprep.subr.mxu0 0.0
    %1328 = vmatpush1.msra.mxu0 0.0
    %1329 = vmatprep.subr.mxu0 0.0
    %1330 = vmatpush1.msra.mxu0 0.0
    %1331 = vmatprep.mubr.f32.mxu0 0.0
    %1332 = vmatmul.mubr.f32.gmra.mrb[0].mxu0 %v1251
    %v1333 = vpop.f32.mrb[0].mxu0
    %v1334 = vadd.f32 0.0, %v1333
    %v1335 = vpop.f32.mrb[0].mxu0
    %1336 = vmatprep.mubr.f32.mxu0 0.0
    %1337 = vmatmul.mubr.f32.gmra.mrb[0].mxu0 %v1252
    %v1338 = vpop.f32.mrb[0].mxu0
    %v1339 = vadd.f32 0.0, %v1338
    %v1340 = vpop.f32.mrb[0].mxu0
    %1341 = vmatprep.mubr.f32.mxu0 0.0
    %1342 = vmatmul.mubr.f32.gmra.mrb[0].mxu0 %v1253
    %v1343 = vpop.f32.mrb[0].mxu0
    %v1344 = vadd.f32 0.0, %v1343
    %v1345 = vpop.f32.mrb[0].mxu0
    %1346 = vmatprep.mubr.f32.mxu0 0.0
    %1347 = vmatmul.mubr.f32.gmra.mrb[0].mxu0 %v1254
    %v1348 = vpop.f32.mrb[0].mxu0
    %v1349 = vadd.f32 0.0, %v1348
    %v1350 = vpop.f32.mrb[0].mxu0
    %1351 = vmatprep.mubr.f32.mxu0 0.0
    %1352 = vmatmul.mubr.f32.gmra.mrb[0].mxu0 %v1255
    %v1353 = vpop.f32.mrb[0].mxu0
    %v1354 = vadd.f32 0.0, %v1353
    %v1355 = vpop.f32.mrb[0].mxu0
    %1356 = vmatprep.mubr.f32.mxu0 0.0
    %1357 = vmatmul.mubr.f32.gmra.mrb[0].mxu0 %v1256
    %v1358 = vpop.f32.mrb[0].mxu0
    %v1359 = vadd.f32 0.0, %v1358
    %v1360 = vpop.f32.mrb[0].mxu0
    %1361 = vmatprep.mubr.f32.mxu0 0.0
    %1362 = vmatmul.mubr.f32.gmra.mrb[0].mxu0 %v1257
    %v1363 = vpop.f32.mrb[0].mxu0
    %v1364 = vadd.f32 0.0, %v1363
    %v1365 = vpop.f32.mrb[0].mxu0
    %1366 = vmatprep.mubr.f32.mxu0 0.0
    %1367 = vmatmul.mubr.f32.gmra.mrb[0].mxu0 %v1258
    %v1368 = vpop.f32.mrb[0].mxu0
    %v1369 = vadd.f32 0.0, %v1368
    %v1370 = vpop.f32.mrb[0].mxu0
    %1371 = vmatprep.mubr.f32.mxu0 0.0
    %1372 = vmatmul.mubr.f32.gmra.mrb[0].mxu0 %v1259
    %v1373 = vpop.f32.mrb[0].mxu0
    %v1374 = vadd.f32 0.0, %v1373
    %v1375 = vpop.f32.mrb[0].mxu0
    %1376 = vmatprep.mubr.f32.mxu0 0.0
    %1377 = vmatmul.mubr.f32.gmra.mrb[0].mxu0 %v1260
    %v1378 = vpop.f32.mrb[0].mxu0
    %v1379 = vadd.f32 0.0, %v1378
    %v1380 = vpop.f32.mrb[0].mxu0
    %1381 = vmatprep.mubr.f32.mxu0 0.0
    %1382 = vmatmul.mubr.f32.gmra.mrb[0].mxu0 %v1261
    %v1383 = vpop.f32.mrb[0].mxu0
    %v1384 = vadd.f32 0.0, %v1383
    %v1385 = vpop.f32.mrb[0].mxu0
    %1386 = vmatprep.mubr.f32.mxu0 0.0
    %1387 = vmatmul.mubr.f32.gmra.mrb[0].mxu0 %v1262
    %v1388 = vpop.f32.mrb[0].mxu0
    %v1389 = vadd.f32 0.0, %v1388
    %v1390 = vpop.f32.mrb[0].mxu0
    %1391 = vmatprep.mubr.f32.mxu0 0.0
    %1392 = vmatmul.mubr.f32.gmra.mrb[0].mxu0 %v1263
    %v1393 = vpop.f32.mrb[0].mxu0
    %v1394 = vadd.f32 0.0, %v1393
    %v1395 = vpop.f32.mrb[0].mxu0
    %1396 = vmatprep.mubr.f32.mxu0 0.0
    %1397 = vmatmul.mubr.f32.gmra.mrb[0].mxu0 %v1264
    %v1398 = vpop.f32.mrb[0].mxu0
    %v1399 = vadd.f32 0.0, %v1398
    %v1400 = vpop.f32.mrb[0].mxu0
    %1401 = vmatprep.mubr.f32.mxu0 0.0
    %1402 = vmatmul.mubr.f32.gmra.mrb[0].mxu0 %v1265
    %v1403 = vpop.f32.mrb[0].mxu0
    %v1404 = vadd.f32 0.0, %v1403
    %v1405 = vpop.f32.mrb[0].mxu0
    %1406 = vmatprep.mubr.f32.mxu0 0.0
    %1407 = vmatmul.mubr.f32.gmra.mrb[0].mxu0 %v1266
    %v1408 = vpop.f32.mrb[0].mxu0
    %v1409 = vadd.f32 0.0, %v1408
    %v1410 = vpop.f32.mrb[0].mxu0
    %1411 = vdwg.mxu0
    %v1412 = vld [vmem:[%s883] sm:$0xff]
    %v1413 = vld [vmem:[%s883 + $0x8] sm:$0xff]
    %v1414 = vld [vmem:[%s883 + $0x10] sm:$0xff]
    %v1415 = vld [vmem:[%s883 + $0x18] sm:$0xff]
    %v1416 = vld [vmem:[%s883 + $0x20] sm:$0xff]
    %v1417 = vld [vmem:[%s883 + $0x28] sm:$0xff]
    %v1418 = vld [vmem:[%s883 + $0x30] sm:$0xff]
    %v1419 = vld [vmem:[%s883 + $0x38] sm:$0xff]
    %v1420 = vld [vmem:[%s883 + $0x40] sm:$0xff]
    %v1421 = vld [vmem:[%s883 + $0x48] sm:$0xff]
    %v1422 = vld [vmem:[%s883 + $0x50] sm:$0xff]
    %v1423 = vld [vmem:[%s883 + $0x58] sm:$0xff]
    %v1424 = vld [vmem:[%s883 + $0x60] sm:$0xff]
    %v1425 = vld [vmem:[%s883 + $0x68] sm:$0xff]
    %v1426 = vld [vmem:[%s883 + $0x70] sm:$0xff]
    %v1427 = vld [vmem:[%s883 + $0x78] sm:$0xff]
    %1428 = vmatprep.subr.mxu0 0.0
    %1429 = vmatpush1.msra.mxu0 %v1412
    %1430 = vmatprep.subr.mxu0 0.0
    %1431 = vmatpush1.msra.mxu0 %v1413
    %1432 = vmatprep.subr.mxu0 0.0
    %1433 = vmatpush1.msra.mxu0 %v1414
    %1434 = vmatprep.subr.mxu0 0.0
    %1435 = vmatpush1.msra.mxu0 %v1415
    %1436 = vmatprep.subr.mxu0 0.0
    %1437 = vmatpush1.msra.mxu0 %v1416
    %1438 = vmatprep.subr.mxu0 0.0
    %1439 = vmatpush1.msra.mxu0 %v1417
    %1440 = vmatprep.subr.mxu0 0.0
    %1441 = vmatpush1.msra.mxu0 %v1418
    %1442 = vmatprep.subr.mxu0 0.0
    %1443 = vmatpush1.msra.mxu0 %v1419
    %1444 = vmatprep.subr.mxu0 0.0
    %1445 = vmatpush1.msra.mxu0 %v1420
    %1446 = vmatprep.subr.mxu0 0.0
    %1447 = vmatpush1.msra.mxu0 %v1421
    %1448 = vmatprep.subr.mxu0 0.0
    %1449 = vmatpush1.msra.mxu0 %v1422
    %1450 = vmatprep.subr.mxu0 0.0
    %1451 = vmatpush1.msra.mxu0 %v1423
    %1452 = vmatprep.subr.mxu0 0.0
    %1453 = vmatpush1.msra.mxu0 %v1424
    %1454 = vmatprep.subr.mxu0 0.0
    %1455 = vmatpush1.msra.mxu0 %v1425
    %1456 = vmatprep.subr.mxu0 0.0
    %1457 = vmatpush1.msra.mxu0 %v1426
    %1458 = vmatprep.subr.mxu0 0.0
    %1459 = vmatpush1.msra.mxu0 %v1427
    %1460 = vmatprep.subr.mxu0 0.0
    %1461 = vmatpush1.msra.mxu0 0.0
    %1462 = vmatprep.subr.mxu0 0.0
    %1463 = vmatpush1.msra.mxu0 0.0
    %1464 = vmatprep.subr.mxu0 0.0
    %1465 = vmatpush1.msra.mxu0 0.0
    %1466 = vmatprep.subr.mxu0 0.0
    %1467 = vmatpush1.msra.mxu0 0.0
    %1468 = vmatprep.subr.mxu0 0.0
    %1469 = vmatpush1.msra.mxu0 0.0
    %1470 = vmatprep.subr.mxu0 0.0
    %1471 = vmatpush1.msra.mxu0 0.0
    %1472 = vmatprep.subr.mxu0 0.0
    %1473 = vmatpush1.msra.mxu0 0.0
    %1474 = vmatprep.subr.mxu0 0.0
    %1475 = vmatpush1.msra.mxu0 0.0
    %1476 = vmatprep.subr.mxu0 0.0
    %1477 = vmatpush1.msra.mxu0 0.0
    %1478 = vmatprep.subr.mxu0 0.0
    %1479 = vmatpush1.msra.mxu0 0.0
    %1480 = vmatprep.subr.mxu0 0.0
    %1481 = vmatpush1.msra.mxu0 0.0
    %1482 = vmatprep.subr.mxu0 0.0
    %1483 = vmatpush1.msra.mxu0 0.0
    %1484 = vmatprep.subr.mxu0 0.0
    %1485 = vmatpush1.msra.mxu0 0.0
    %1486 = vmatprep.subr.mxu0 0.0
    %1487 = vmatpush1.msra.mxu0 0.0
    %1488 = vmatprep.subr.mxu0 0.0
    %1489 = vmatpush1.msra.mxu0 0.0
    %1490 = vmatprep.subr.mxu0 0.0
    %1491 = vmatpush1.msra.mxu0 0.0
    %1492 = vmatprep.mubr.f32.mxu0 0.0
    %1493 = vmatmul.mubr.f32.gmra.mrb[0].mxu0 %v1334
    %v1494 = vpop.f32.mrb[0].mxu0
    %v1495 = vadd.f32 %v468, %v1494
    %v1496 = vpop.f32.mrb[0].mxu0
    %1497 = vmatprep.mubr.f32.mxu0 0.0
    %1498 = vmatmul.mubr.f32.gmra.mrb[0].mxu0 %v1339
    %v1499 = vpop.f32.mrb[0].mxu0
    %v1500 = vadd.f32 %v474, %v1499
    %v1501 = vpop.f32.mrb[0].mxu0
    %1502 = vmatprep.mubr.f32.mxu0 0.0
    %1503 = vmatmul.mubr.f32.gmra.mrb[0].mxu0 %v1344
    %v1504 = vpop.f32.mrb[0].mxu0
    %v1505 = vadd.f32 %v480, %v1504
    %v1506 = vpop.f32.mrb[0].mxu0
    %1507 = vmatprep.mubr.f32.mxu0 0.0
    %1508 = vmatmul.mubr.f32.gmra.mrb[0].mxu0 %v1349
    %v1509 = vpop.f32.mrb[0].mxu0
    %v1510 = vadd.f32 %v486, %v1509
    %v1511 = vpop.f32.mrb[0].mxu0
    %1512 = vmatprep.mubr.f32.mxu0 0.0
    %1513 = vmatmul.mubr.f32.gmra.mrb[0].mxu0 %v1354
    %v1514 = vpop.f32.mrb[0].mxu0
    %v1515 = vadd.f32 %v492, %v1514
    %v1516 = vpop.f32.mrb[0].mxu0
    %1517 = vmatprep.mubr.f32.mxu0 0.0
    %1518 = vmatmul.mubr.f32.gmra.mrb[0].mxu0 %v1359
    %v1519 = vpop.f32.mrb[0].mxu0
    %v1520 = vadd.f32 %v498, %v1519
    %v1521 = vpop.f32.mrb[0].mxu0
    %1522 = vmatprep.mubr.f32.mxu0 0.0
    %1523 = vmatmul.mubr.f32.gmra.mrb[0].mxu0 %v1364
    %v1524 = vpop.f32.mrb[0].mxu0
    %v1525 = vadd.f32 %v504, %v1524
    %v1526 = vpop.f32.mrb[0].mxu0
    %1527 = vmatprep.mubr.f32.mxu0 0.0
    %1528 = vmatmul.mubr.f32.gmra.mrb[0].mxu0 %v1369
    %v1529 = vpop.f32.mrb[0].mxu0
    %v1530 = vadd.f32 %v510, %v1529
    %v1531 = vpop.f32.mrb[0].mxu0
    %1532 = vmatprep.mubr.f32.mxu0 0.0
    %1533 = vmatmul.mubr.f32.gmra.mrb[0].mxu0 %v1374
    %v1534 = vpop.f32.mrb[0].mxu0
    %v1535 = vadd.f32 %v516, %v1534
    %v1536 = vpop.f32.mrb[0].mxu0
    %1537 = vmatprep.mubr.f32.mxu0 0.0
    %1538 = vmatmul.mubr.f32.gmra.mrb[0].mxu0 %v1379
    %v1539 = vpop.f32.mrb[0].mxu0
    %v1540 = vadd.f32 %v522, %v1539
    %v1541 = vpop.f32.mrb[0].mxu0
    %1542 = vmatprep.mubr.f32.mxu0 0.0
    %1543 = vmatmul.mubr.f32.gmra.mrb[0].mxu0 %v1384
    %v1544 = vpop.f32.mrb[0].mxu0
    %v1545 = vadd.f32 %v528, %v1544
    %v1546 = vpop.f32.mrb[0].mxu0
    %1547 = vmatprep.mubr.f32.mxu0 0.0
    %1548 = vmatmul.mubr.f32.gmra.mrb[0].mxu0 %v1389
    %v1549 = vpop.f32.mrb[0].mxu0
    %v1550 = vadd.f32 %v534, %v1549
    %v1551 = vpop.f32.mrb[0].mxu0
    %1552 = vmatprep.mubr.f32.mxu0 0.0
    %1553 = vmatmul.mubr.f32.gmra.mrb[0].mxu0 %v1394
    %v1554 = vpop.f32.mrb[0].mxu0
    %v1555 = vadd.f32 %v540, %v1554
    %v1556 = vpop.f32.mrb[0].mxu0
    %1557 = vmatprep.mubr.f32.mxu0 0.0
    %1558 = vmatmul.mubr.f32.gmra.mrb[0].mxu0 %v1399
    %v1559 = vpop.f32.mrb[0].mxu0
    %v1560 = vadd.f32 %v546, %v1559
    %v1561 = vpop.f32.mrb[0].mxu0
    %1562 = vmatprep.mubr.f32.mxu0 0.0
    %1563 = vmatmul.mubr.f32.gmra.mrb[0].mxu0 %v1404
    %v1564 = vpop.f32.mrb[0].mxu0
    %v1565 = vadd.f32 %v552, %v1564
    %v1566 = vpop.f32.mrb[0].mxu0
    %1567 = vmatprep.mubr.f32.mxu0 0.0
    %1568 = vmatmul.mubr.f32.gmra.mrb[0].mxu0 %v1409
    %v1569 = vpop.f32.mrb[0].mxu0
    %v1570 = vadd.f32 %v558, %v1569
    %v1571 = vpop.f32.mrb[0].mxu0
    %1572 = vdwg.mxu0
    %v1573 = vmax.f32 %v1495, 0.0
    %v1574 = vmax.f32 %v1500, 0.0
    %v1575 = vmax.f32 %v1505, 0.0
    %v1576 = vmax.f32 %v1510, 0.0
    %v1577 = vmax.f32 %v1515, 0.0
    %v1578 = vmax.f32 %v1520, 0.0
    %v1579 = vmax.f32 %v1525, 0.0
    %v1580 = vmax.f32 %v1530, 0.0
    %v1581 = vmax.f32 %v1535, 0.0
    %v1582 = vmax.f32 %v1540, 0.0
    %v1583 = vmax.f32 %v1545, 0.0
    %v1584 = vmax.f32 %v1550, 0.0
    %v1585 = vmax.f32 %v1555, 0.0
    %v1586 = vmax.f32 %v1560, 0.0
    %v1587 = vmax.f32 %v1565, 0.0
    %v1588 = vmax.f32 %v1570, 0.0
    %s1589 = scalar_lea.hbm %s7, 6144
    // Predicated region
    $region50: #{net_forward.1} parent=1 // pred_check
      _
    $region51: #{net_forward.1} parent=1 // pred_check_branch
      %1591 = sbr.rel target = $region53
    $region52: #{net_forward.1} parent=1 // pred_region
      %1592 = sst [smem:[#allocation10]] [#allocation17]
      %1593 = sst [smem:[#allocation11]] [#allocation16]
    $region53: #{net_forward.1} parent=1 // pred_fallthru
      _
    %1595 = shalt.err (0)
    %s1597 = sshll.u32 %s883, 4
    %s1598 = int_to_ptr.vmem [resolvable:$true] %s1597
    %1600 = dma.hbm_to_vmem [thread:$0]  %s1589, 2048, %s1598, %s884
    %s1601 = sshll.u32 %s896, 4
    %1602 = dma.done [#allocation3], %s1601
    %v1603 = vld [vmem:[%s0] sm:$0xff]
    %v1604 = vld [vmem:[%s0 + $0x8] sm:$0xff]
    %v1605 = vld [vmem:[%s0 + $0x10] sm:$0xff]
    %v1606 = vld [vmem:[%s0 + $0x18] sm:$0xff]
    %v1607 = vld [vmem:[%s0 + $0x20] sm:$0xff]
    %v1608 = vld [vmem:[%s0 + $0x28] sm:$0xff]
    %v1609 = vld [vmem:[%s0 + $0x30] sm:$0xff]
    %v1610 = vld [vmem:[%s0 + $0x38] sm:$0xff]
    %v1611 = vld [vmem:[%s0 + $0x40] sm:$0xff]
    %v1612 = vld [vmem:[%s0 + $0x48] sm:$0xff]
    %v1613 = vld [vmem:[%s0 + $0x50] sm:$0xff]
    %v1614 = vld [vmem:[%s0 + $0x58] sm:$0xff]
    %v1615 = vld [vmem:[%s0 + $0x60] sm:$0xff]
    %v1616 = vld [vmem:[%s0 + $0x68] sm:$0xff]
    %v1617 = vld [vmem:[%s0 + $0x70] sm:$0xff]
    %v1618 = vld [vmem:[%s0 + $0x78] sm:$0xff]
    %1619 = vmatprep.subr.mxu0 0.0
    %1620 = vmatpush1.msra.mxu0 %v1573
    %1621 = vmatprep.subr.mxu0 0.0
    %1622 = vmatpush1.msra.mxu0 %v1574
    %1623 = vmatprep.subr.mxu0 0.0
    %1624 = vmatpush1.msra.mxu0 %v1575
    %1625 = vmatprep.subr.mxu0 0.0
    %1626 = vmatpush1.msra.mxu0 %v1576
    %1627 = vmatprep.subr.mxu0 0.0
    %1628 = vmatpush1.msra.mxu0 %v1577
    %1629 = vmatprep.subr.mxu0 0.0
    %1630 = vmatpush1.msra.mxu0 %v1578
    %1631 = vmatprep.subr.mxu0 0.0
    %1632 = vmatpush1.msra.mxu0 %v1579
    %1633 = vmatprep.subr.mxu0 0.0
    %1634 = vmatpush1.msra.mxu0 %v1580
    %1635 = vmatprep.subr.mxu0 0.0
    %1636 = vmatpush1.msra.mxu0 %v1581
    %1637 = vmatprep.subr.mxu0 0.0
    %1638 = vmatpush1.msra.mxu0 %v1582
    %1639 = vmatprep.subr.mxu0 0.0
    %1640 = vmatpush1.msra.mxu0 %v1583
    %1641 = vmatprep.subr.mxu0 0.0
    %1642 = vmatpush1.msra.mxu0 %v1584
    %1643 = vmatprep.subr.mxu0 0.0
    %1644 = vmatpush1.msra.mxu0 %v1585
    %1645 = vmatprep.subr.mxu0 0.0
    %1646 = vmatpush1.msra.mxu0 %v1586
    %1647 = vmatprep.subr.mxu0 0.0
    %1648 = vmatpush1.msra.mxu0 %v1587
    %1649 = vmatprep.subr.mxu0 0.0
    %1650 = vmatpush1.msra.mxu0 %v1588
    %1651 = vmatprep.subr.mxu0 0.0
    %1652 = vmatpush1.msra.mxu0 0.0
    %1653 = vmatprep.subr.mxu0 0.0
    %1654 = vmatpush1.msra.mxu0 0.0
    %1655 = vmatprep.subr.mxu0 0.0
    %1656 = vmatpush1.msra.mxu0 0.0
    %1657 = vmatprep.subr.mxu0 0.0
    %1658 = vmatpush1.msra.mxu0 0.0
    %1659 = vmatprep.subr.mxu0 0.0
    %1660 = vmatpush1.msra.mxu0 0.0
    %1661 = vmatprep.subr.mxu0 0.0
    %1662 = vmatpush1.msra.mxu0 0.0
    %1663 = vmatprep.subr.mxu0 0.0
    %1664 = vmatpush1.msra.mxu0 0.0
    %1665 = vmatprep.subr.mxu0 0.0
    %1666 = vmatpush1.msra.mxu0 0.0
    %1667 = vmatprep.subr.mxu0 0.0
    %1668 = vmatpush1.msra.mxu0 0.0
    %1669 = vmatprep.subr.mxu0 0.0
    %1670 = vmatpush1.msra.mxu0 0.0
    %1671 = vmatprep.subr.mxu0 0.0
    %1672 = vmatpush1.msra.mxu0 0.0
    %1673 = vmatprep.subr.mxu0 0.0
    %1674 = vmatpush1.msra.mxu0 0.0
    %1675 = vmatprep.subr.mxu0 0.0
    %1676 = vmatpush1.msra.mxu0 0.0
    %1677 = vmatprep.subr.mxu0 0.0
    %1678 = vmatpush1.msra.mxu0 0.0
    %1679 = vmatprep.subr.mxu0 0.0
    %1680 = vmatpush1.msra.mxu0 0.0
    %1681 = vmatprep.subr.mxu0 0.0
    %1682 = vmatpush1.msra.mxu0 0.0
    %1683 = vmatprep.mubr.f32.mxu0 0.0
    %1684 = vmatmul.mubr.f32.gmra.mrb[0].mxu0 %v1603
    %v1685 = vpop.f32.mrb[0].mxu0
    %v1686 = vadd.f32 0.0, %v1685
    %v1687 = vpop.f32.mrb[0].mxu0
    %1688 = vmatprep.mubr.f32.mxu0 0.0
    %1689 = vmatmul.mubr.f32.gmra.mrb[0].mxu0 %v1604
    %v1690 = vpop.f32.mrb[0].mxu0
    %v1691 = vadd.f32 0.0, %v1690
    %v1692 = vpop.f32.mrb[0].mxu0
    %1693 = vmatprep.mubr.f32.mxu0 0.0
    %1694 = vmatmul.mubr.f32.gmra.mrb[0].mxu0 %v1605
    %v1695 = vpop.f32.mrb[0].mxu0
    %v1696 = vadd.f32 0.0, %v1695
    %v1697 = vpop.f32.mrb[0].mxu0
    %1698 = vmatprep.mubr.f32.mxu0 0.0
    %1699 = vmatmul.mubr.f32.gmra.mrb[0].mxu0 %v1606
    %v1700 = vpop.f32.mrb[0].mxu0
    %v1701 = vadd.f32 0.0, %v1700
    %v1702 = vpop.f32.mrb[0].mxu0
    %1703 = vmatprep.mubr.f32.mxu0 0.0
    %1704 = vmatmul.mubr.f32.gmra.mrb[0].mxu0 %v1607
    %v1705 = vpop.f32.mrb[0].mxu0
    %v1706 = vadd.f32 0.0, %v1705
    %v1707 = vpop.f32.mrb[0].mxu0
    %1708 = vmatprep.mubr.f32.mxu0 0.0
    %1709 = vmatmul.mubr.f32.gmra.mrb[0].mxu0 %v1608
    %v1710 = vpop.f32.mrb[0].mxu0
    %v1711 = vadd.f32 0.0, %v1710
    %v1712 = vpop.f32.mrb[0].mxu0
    %1713 = vmatprep.mubr.f32.mxu0 0.0
    %1714 = vmatmul.mubr.f32.gmra.mrb[0].mxu0 %v1609
    %v1715 = vpop.f32.mrb[0].mxu0
    %v1716 = vadd.f32 0.0, %v1715
    %v1717 = vpop.f32.mrb[0].mxu0
    %1718 = vmatprep.mubr.f32.mxu0 0.0
    %1719 = vmatmul.mubr.f32.gmra.mrb[0].mxu0 %v1610
    %v1720 = vpop.f32.mrb[0].mxu0
    %v1721 = vadd.f32 0.0, %v1720
    %v1722 = vpop.f32.mrb[0].mxu0
    %1723 = vmatprep.mubr.f32.mxu0 0.0
    %1724 = vmatmul.mubr.f32.gmra.mrb[0].mxu0 %v1611
    %v1725 = vpop.f32.mrb[0].mxu0
    %v1726 = vadd.f32 0.0, %v1725
    %v1727 = vpop.f32.mrb[0].mxu0
    %1728 = vmatprep.mubr.f32.mxu0 0.0
    %1729 = vmatmul.mubr.f32.gmra.mrb[0].mxu0 %v1612
    %v1730 = vpop.f32.mrb[0].mxu0
    %v1731 = vadd.f32 0.0, %v1730
    %v1732 = vpop.f32.mrb[0].mxu0
    %1733 = vmatprep.mubr.f32.mxu0 0.0
    %1734 = vmatmul.mubr.f32.gmra.mrb[0].mxu0 %v1613
    %v1735 = vpop.f32.mrb[0].mxu0
    %v1736 = vadd.f32 0.0, %v1735
    %v1737 = vpop.f32.mrb[0].mxu0
    %1738 = vmatprep.mubr.f32.mxu0 0.0
    %1739 = vmatmul.mubr.f32.gmra.mrb[0].mxu0 %v1614
    %v1740 = vpop.f32.mrb[0].mxu0
    %v1741 = vadd.f32 0.0, %v1740
    %v1742 = vpop.f32.mrb[0].mxu0
    %1743 = vmatprep.mubr.f32.mxu0 0.0
    %1744 = vmatmul.mubr.f32.gmra.mrb[0].mxu0 %v1615
    %v1745 = vpop.f32.mrb[0].mxu0
    %v1746 = vadd.f32 0.0, %v1745
    %v1747 = vpop.f32.mrb[0].mxu0
    %1748 = vmatprep.mubr.f32.mxu0 0.0
    %1749 = vmatmul.mubr.f32.gmra.mrb[0].mxu0 %v1616
    %v1750 = vpop.f32.mrb[0].mxu0
    %v1751 = vadd.f32 0.0, %v1750
    %v1752 = vpop.f32.mrb[0].mxu0
    %1753 = vmatprep.mubr.f32.mxu0 0.0
    %1754 = vmatmul.mubr.f32.gmra.mrb[0].mxu0 %v1617
    %v1755 = vpop.f32.mrb[0].mxu0
    %v1756 = vadd.f32 0.0, %v1755
    %v1757 = vpop.f32.mrb[0].mxu0
    %1758 = vmatprep.mubr.f32.mxu0 0.0
    %1759 = vmatmul.mubr.f32.gmra.mrb[0].mxu0 %v1618
    %v1760 = vpop.f32.mrb[0].mxu0
    %v1761 = vadd.f32 0.0, %v1760
    %v1762 = vpop.f32.mrb[0].mxu0
    %1763 = vdwg.mxu0
    %v1764 = vld [vmem:[#allocation2] sm:$0xff]
    %v1765 = vld [vmem:[#allocation2 + $0x8] sm:$0xff]
    %v1766 = vld [vmem:[#allocation2 + $0x10] sm:$0xff]
    %v1767 = vld [vmem:[#allocation2 + $0x18] sm:$0xff]
    %v1768 = vld [vmem:[#allocation2 + $0x20] sm:$0xff]
    %v1769 = vld [vmem:[#allocation2 + $0x28] sm:$0xff]
    %v1770 = vld [vmem:[#allocation2 + $0x30] sm:$0xff]
    %v1771 = vld [vmem:[#allocation2 + $0x38] sm:$0xff]
    %v1772 = vld [vmem:[#allocation2 + $0x40] sm:$0xff]
    %v1773 = vld [vmem:[#allocation2 + $0x48] sm:$0xff]
    %v1774 = vld [vmem:[#allocation2 + $0x50] sm:$0xff]
    %v1775 = vld [vmem:[#allocation2 + $0x58] sm:$0xff]
    %v1776 = vld [vmem:[#allocation2 + $0x60] sm:$0xff]
    %v1777 = vld [vmem:[#allocation2 + $0x68] sm:$0xff]
    %v1778 = vld [vmem:[#allocation2 + $0x70] sm:$0xff]
    %v1779 = vld [vmem:[#allocation2 + $0x78] sm:$0xff]
    %1780 = vmatprep.subr.mxu0 0.0
    %1781 = vmatpush1.msra.mxu0 %v1764
    %1782 = vmatprep.subr.mxu0 0.0
    %1783 = vmatpush1.msra.mxu0 %v1765
    %1784 = vmatprep.subr.mxu0 0.0
    %1785 = vmatpush1.msra.mxu0 %v1766
    %1786 = vmatprep.subr.mxu0 0.0
    %1787 = vmatpush1.msra.mxu0 %v1767
    %1788 = vmatprep.subr.mxu0 0.0
    %1789 = vmatpush1.msra.mxu0 %v1768
    %1790 = vmatprep.subr.mxu0 0.0
    %1791 = vmatpush1.msra.mxu0 %v1769
    %1792 = vmatprep.subr.mxu0 0.0
    %1793 = vmatpush1.msra.mxu0 %v1770
    %1794 = vmatprep.subr.mxu0 0.0
    %1795 = vmatpush1.msra.mxu0 %v1771
    %1796 = vmatprep.subr.mxu0 0.0
    %1797 = vmatpush1.msra.mxu0 %v1772
    %1798 = vmatprep.subr.mxu0 0.0
    %1799 = vmatpush1.msra.mxu0 %v1773
    %1800 = vmatprep.subr.mxu0 0.0
    %1801 = vmatpush1.msra.mxu0 %v1774
    %1802 = vmatprep.subr.mxu0 0.0
    %1803 = vmatpush1.msra.mxu0 %v1775
    %1804 = vmatprep.subr.mxu0 0.0
    %1805 = vmatpush1.msra.mxu0 %v1776
    %1806 = vmatprep.subr.mxu0 0.0
    %1807 = vmatpush1.msra.mxu0 %v1777
    %1808 = vmatprep.subr.mxu0 0.0
    %1809 = vmatpush1.msra.mxu0 %v1778
    %1810 = vmatprep.subr.mxu0 0.0
    %1811 = vmatpush1.msra.mxu0 %v1779
    %1812 = vmatprep.subr.mxu0 0.0
    %1813 = vmatpush1.msra.mxu0 0.0
    %1814 = vmatprep.subr.mxu0 0.0
    %1815 = vmatpush1.msra.mxu0 0.0
    %1816 = vmatprep.subr.mxu0 0.0
    %1817 = vmatpush1.msra.mxu0 0.0
    %1818 = vmatprep.subr.mxu0 0.0
    %1819 = vmatpush1.msra.mxu0 0.0
    %1820 = vmatprep.subr.mxu0 0.0
    %1821 = vmatpush1.msra.mxu0 0.0
    %1822 = vmatprep.subr.mxu0 0.0
    %1823 = vmatpush1.msra.mxu0 0.0
    %1824 = vmatprep.subr.mxu0 0.0
    %1825 = vmatpush1.msra.mxu0 0.0
    %1826 = vmatprep.subr.mxu0 0.0
    %1827 = vmatpush1.msra.mxu0 0.0
    %1828 = vmatprep.subr.mxu0 0.0
    %1829 = vmatpush1.msra.mxu0 0.0
    %1830 = vmatprep.subr.mxu0 0.0
    %1831 = vmatpush1.msra.mxu0 0.0
    %1832 = vmatprep.subr.mxu0 0.0
    %1833 = vmatpush1.msra.mxu0 0.0
    %1834 = vmatprep.subr.mxu0 0.0
    %1835 = vmatpush1.msra.mxu0 0.0
    %1836 = vmatprep.subr.mxu0 0.0
    %1837 = vmatpush1.msra.mxu0 0.0
    %1838 = vmatprep.subr.mxu0 0.0
    %1839 = vmatpush1.msra.mxu0 0.0
    %1840 = vmatprep.subr.mxu0 0.0
    %1841 = vmatpush1.msra.mxu0 0.0
    %1842 = vmatprep.subr.mxu0 0.0
    %1843 = vmatpush1.msra.mxu0 0.0
    %1844 = vmatprep.mubr.f32.mxu0 0.0
    %1845 = vmatmul.mubr.f32.gmra.mrb[0].mxu0 %v1686
    %v1846 = vpop.f32.mrb[0].mxu0
    %v1847 = vadd.f32 %v627, %v1846
    %v1848 = vpop.f32.mrb[0].mxu0
    %1849 = vmatprep.mubr.f32.mxu0 0.0
    %1850 = vmatmul.mubr.f32.gmra.mrb[0].mxu0 %v1691
    %v1851 = vpop.f32.mrb[0].mxu0
    %v1852 = vadd.f32 %v633, %v1851
    %v1853 = vpop.f32.mrb[0].mxu0
    %1854 = vmatprep.mubr.f32.mxu0 0.0
    %1855 = vmatmul.mubr.f32.gmra.mrb[0].mxu0 %v1696
    %v1856 = vpop.f32.mrb[0].mxu0
    %v1857 = vadd.f32 %v639, %v1856
    %v1858 = vpop.f32.mrb[0].mxu0
    %1859 = vmatprep.mubr.f32.mxu0 0.0
    %1860 = vmatmul.mubr.f32.gmra.mrb[0].mxu0 %v1701
    %v1861 = vpop.f32.mrb[0].mxu0
    %v1862 = vadd.f32 %v645, %v1861
    %v1863 = vpop.f32.mrb[0].mxu0
    %1864 = vmatprep.mubr.f32.mxu0 0.0
    %1865 = vmatmul.mubr.f32.gmra.mrb[0].mxu0 %v1706
    %v1866 = vpop.f32.mrb[0].mxu0
    %v1867 = vadd.f32 %v651, %v1866
    %v1868 = vpop.f32.mrb[0].mxu0
    %1869 = vmatprep.mubr.f32.mxu0 0.0
    %1870 = vmatmul.mubr.f32.gmra.mrb[0].mxu0 %v1711
    %v1871 = vpop.f32.mrb[0].mxu0
    %v1872 = vadd.f32 %v657, %v1871
    %v1873 = vpop.f32.mrb[0].mxu0
    %1874 = vmatprep.mubr.f32.mxu0 0.0
    %1875 = vmatmul.mubr.f32.gmra.mrb[0].mxu0 %v1716
    %v1876 = vpop.f32.mrb[0].mxu0
    %v1877 = vadd.f32 %v663, %v1876
    %v1878 = vpop.f32.mrb[0].mxu0
    %1879 = vmatprep.mubr.f32.mxu0 0.0
    %1880 = vmatmul.mubr.f32.gmra.mrb[0].mxu0 %v1721
    %v1881 = vpop.f32.mrb[0].mxu0
    %v1882 = vadd.f32 %v669, %v1881
    %v1883 = vpop.f32.mrb[0].mxu0
    %1884 = vmatprep.mubr.f32.mxu0 0.0
    %1885 = vmatmul.mubr.f32.gmra.mrb[0].mxu0 %v1726
    %v1886 = vpop.f32.mrb[0].mxu0
    %v1887 = vadd.f32 %v675, %v1886
    %v1888 = vpop.f32.mrb[0].mxu0
    %1889 = vmatprep.mubr.f32.mxu0 0.0
    %1890 = vmatmul.mubr.f32.gmra.mrb[0].mxu0 %v1731
    %v1891 = vpop.f32.mrb[0].mxu0
    %v1892 = vadd.f32 %v681, %v1891
    %v1893 = vpop.f32.mrb[0].mxu0
    %1894 = vmatprep.mubr.f32.mxu0 0.0
    %1895 = vmatmul.mubr.f32.gmra.mrb[0].mxu0 %v1736
    %v1896 = vpop.f32.mrb[0].mxu0
    %v1897 = vadd.f32 %v687, %v1896
    %v1898 = vpop.f32.mrb[0].mxu0
    %1899 = vmatprep.mubr.f32.mxu0 0.0
    %1900 = vmatmul.mubr.f32.gmra.mrb[0].mxu0 %v1741
    %v1901 = vpop.f32.mrb[0].mxu0
    %v1902 = vadd.f32 %v693, %v1901
    %v1903 = vpop.f32.mrb[0].mxu0
    %1904 = vmatprep.mubr.f32.mxu0 0.0
    %1905 = vmatmul.mubr.f32.gmra.mrb[0].mxu0 %v1746
    %v1906 = vpop.f32.mrb[0].mxu0
    %v1907 = vadd.f32 %v699, %v1906
    %v1908 = vpop.f32.mrb[0].mxu0
    %1909 = vmatprep.mubr.f32.mxu0 0.0
    %1910 = vmatmul.mubr.f32.gmra.mrb[0].mxu0 %v1751
    %v1911 = vpop.f32.mrb[0].mxu0
    %v1912 = vadd.f32 %v705, %v1911
    %v1913 = vpop.f32.mrb[0].mxu0
    %1914 = vmatprep.mubr.f32.mxu0 0.0
    %1915 = vmatmul.mubr.f32.gmra.mrb[0].mxu0 %v1756
    %v1916 = vpop.f32.mrb[0].mxu0
    %v1917 = vadd.f32 %v711, %v1916
    %v1918 = vpop.f32.mrb[0].mxu0
    %1919 = vmatprep.mubr.f32.mxu0 0.0
    %1920 = vmatmul.mubr.f32.gmra.mrb[0].mxu0 %v1761
    %v1921 = vpop.f32.mrb[0].mxu0
    %v1922 = vadd.f32 %v717, %v1921
    %v1923 = vpop.f32.mrb[0].mxu0
    %1924 = vdwg.mxu0
    %v1925 = vmax.f32 %v1847, 0.0
    %v1926 = vmax.f32 %v1852, 0.0
    %v1927 = vmax.f32 %v1857, 0.0
    %v1928 = vmax.f32 %v1862, 0.0
    %v1929 = vmax.f32 %v1867, 0.0
    %v1930 = vmax.f32 %v1872, 0.0
    %v1931 = vmax.f32 %v1877, 0.0
    %v1932 = vmax.f32 %v1882, 0.0
    %v1933 = vmax.f32 %v1887, 0.0
    %v1934 = vmax.f32 %v1892, 0.0
    %v1935 = vmax.f32 %v1897, 0.0
    %v1936 = vmax.f32 %v1902, 0.0
    %v1937 = vmax.f32 %v1907, 0.0
    %v1938 = vmax.f32 %v1912, 0.0
    %v1939 = vmax.f32 %v1917, 0.0
    %v1940 = vmax.f32 %v1922, 0.0
    %s1941 = scalar_lea.hbm %s7, 8192
    // Predicated region
    $region54: #{net_forward.1} parent=1 // pred_check
      _
    $region55: #{net_forward.1} parent=1 // pred_check_branch
      %1943 = sbr.rel target = $region57
    $region56: #{net_forward.1} parent=1 // pred_region
      %1944 = sst [smem:[#allocation10]] [#allocation19]
      %1945 = sst [smem:[#allocation11]] [#allocation18]
    $region57: #{net_forward.1} parent=1 // pred_fallthru
      _
    %1947 = shalt.err (0)
    %s1949 = sshll.u32 [#allocation2], 4
    %s1950 = int_to_ptr.vmem [resolvable:$true] %s1949
    %1952 = dma.hbm_to_vmem [thread:$0]  %s1941, 2048, %s1950, [#allocation3]
    %s1953 = sshll.u32 %s896, 4
    %1954 = dma.done %s884, %s1953
    %v1955 = vld [vmem:[%s0] sm:$0xff]
    %v1956 = vld [vmem:[%s0 + $0x8] sm:$0xff]
    %v1957 = vld [vmem:[%s0 + $0x10] sm:$0xff]
    %v1958 = vld [vmem:[%s0 + $0x18] sm:$0xff]
    %v1959 = vld [vmem:[%s0 + $0x20] sm:$0xff]
    %v1960 = vld [vmem:[%s0 + $0x28] sm:$0xff]
    %v1961 = vld [vmem:[%s0 + $0x30] sm:$0xff]
    %v1962 = vld [vmem:[%s0 + $0x38] sm:$0xff]
    %v1963 = vld [vmem:[%s0 + $0x40] sm:$0xff]
    %v1964 = vld [vmem:[%s0 + $0x48] sm:$0xff]
    %v1965 = vld [vmem:[%s0 + $0x50] sm:$0xff]
    %v1966 = vld [vmem:[%s0 + $0x58] sm:$0xff]
    %v1967 = vld [vmem:[%s0 + $0x60] sm:$0xff]
    %v1968 = vld [vmem:[%s0 + $0x68] sm:$0xff]
    %v1969 = vld [vmem:[%s0 + $0x70] sm:$0xff]
    %v1970 = vld [vmem:[%s0 + $0x78] sm:$0xff]
    %1971 = vmatprep.subr.mxu0 0.0
    %1972 = vmatpush1.msra.mxu0 %v1925
    %1973 = vmatprep.subr.mxu0 0.0
    %1974 = vmatpush1.msra.mxu0 %v1926
    %1975 = vmatprep.subr.mxu0 0.0
    %1976 = vmatpush1.msra.mxu0 %v1927
    %1977 = vmatprep.subr.mxu0 0.0
    %1978 = vmatpush1.msra.mxu0 %v1928
    %1979 = vmatprep.subr.mxu0 0.0
    %1980 = vmatpush1.msra.mxu0 %v1929
    %1981 = vmatprep.subr.mxu0 0.0
    %1982 = vmatpush1.msra.mxu0 %v1930
    %1983 = vmatprep.subr.mxu0 0.0
    %1984 = vmatpush1.msra.mxu0 %v1931
    %1985 = vmatprep.subr.mxu0 0.0
    %1986 = vmatpush1.msra.mxu0 %v1932
    %1987 = vmatprep.subr.mxu0 0.0
    %1988 = vmatpush1.msra.mxu0 %v1933
    %1989 = vmatprep.subr.mxu0 0.0
    %1990 = vmatpush1.msra.mxu0 %v1934
    %1991 = vmatprep.subr.mxu0 0.0
    %1992 = vmatpush1.msra.mxu0 %v1935
    %1993 = vmatprep.subr.mxu0 0.0
    %1994 = vmatpush1.msra.mxu0 %v1936
    %1995 = vmatprep.subr.mxu0 0.0
    %1996 = vmatpush1.msra.mxu0 %v1937
    %1997 = vmatprep.subr.mxu0 0.0
    %1998 = vmatpush1.msra.mxu0 %v1938
    %1999 = vmatprep.subr.mxu0 0.0
    %2000 = vmatpush1.msra.mxu0 %v1939
    %2001 = vmatprep.subr.mxu0 0.0
    %2002 = vmatpush1.msra.mxu0 %v1940
    %2003 = vmatprep.subr.mxu0 0.0
    %2004 = vmatpush1.msra.mxu0 0.0
    %2005 = vmatprep.subr.mxu0 0.0
    %2006 = vmatpush1.msra.mxu0 0.0
    %2007 = vmatprep.subr.mxu0 0.0
    %2008 = vmatpush1.msra.mxu0 0.0
    %2009 = vmatprep.subr.mxu0 0.0
    %2010 = vmatpush1.msra.mxu0 0.0
    %2011 = vmatprep.subr.mxu0 0.0
    %2012 = vmatpush1.msra.mxu0 0.0
    %2013 = vmatprep.subr.mxu0 0.0
    %2014 = vmatpush1.msra.mxu0 0.0
    %2015 = vmatprep.subr.mxu0 0.0
    %2016 = vmatpush1.msra.mxu0 0.0
    %2017 = vmatprep.subr.mxu0 0.0
    %2018 = vmatpush1.msra.mxu0 0.0
    %2019 = vmatprep.subr.mxu0 0.0
    %2020 = vmatpush1.msra.mxu0 0.0
    %2021 = vmatprep.subr.mxu0 0.0
    %2022 = vmatpush1.msra.mxu0 0.0
    %2023 = vmatprep.subr.mxu0 0.0
    %2024 = vmatpush1.msra.mxu0 0.0
    %2025 = vmatprep.subr.mxu0 0.0
    %2026 = vmatpush1.msra.mxu0 0.0
    %2027 = vmatprep.subr.mxu0 0.0
    %2028 = vmatpush1.msra.mxu0 0.0
    %2029 = vmatprep.subr.mxu0 0.0
    %2030 = vmatpush1.msra.mxu0 0.0
    %2031 = vmatprep.subr.mxu0 0.0
    %2032 = vmatpush1.msra.mxu0 0.0
    %2033 = vmatprep.subr.mxu0 0.0
    %2034 = vmatpush1.msra.mxu0 0.0
    %2035 = vmatprep.mubr.f32.mxu0 0.0
    %2036 = vmatmul.mubr.f32.gmra.mrb[0].mxu0 %v1955
    %v2037 = vpop.f32.mrb[0].mxu0
    %v2038 = vadd.f32 0.0, %v2037
    %v2039 = vpop.f32.mrb[0].mxu0
    %2040 = vmatprep.mubr.f32.mxu0 0.0
    %2041 = vmatmul.mubr.f32.gmra.mrb[0].mxu0 %v1956
    %v2042 = vpop.f32.mrb[0].mxu0
    %v2043 = vadd.f32 0.0, %v2042
    %v2044 = vpop.f32.mrb[0].mxu0
    %2045 = vmatprep.mubr.f32.mxu0 0.0
    %2046 = vmatmul.mubr.f32.gmra.mrb[0].mxu0 %v1957
    %v2047 = vpop.f32.mrb[0].mxu0
    %v2048 = vadd.f32 0.0, %v2047
    %v2049 = vpop.f32.mrb[0].mxu0
    %2050 = vmatprep.mubr.f32.mxu0 0.0
    %2051 = vmatmul.mubr.f32.gmra.mrb[0].mxu0 %v1958
    %v2052 = vpop.f32.mrb[0].mxu0
    %v2053 = vadd.f32 0.0, %v2052
    %v2054 = vpop.f32.mrb[0].mxu0
    %2055 = vmatprep.mubr.f32.mxu0 0.0
    %2056 = vmatmul.mubr.f32.gmra.mrb[0].mxu0 %v1959
    %v2057 = vpop.f32.mrb[0].mxu0
    %v2058 = vadd.f32 0.0, %v2057
    %v2059 = vpop.f32.mrb[0].mxu0
    %2060 = vmatprep.mubr.f32.mxu0 0.0
    %2061 = vmatmul.mubr.f32.gmra.mrb[0].mxu0 %v1960
    %v2062 = vpop.f32.mrb[0].mxu0
    %v2063 = vadd.f32 0.0, %v2062
    %v2064 = vpop.f32.mrb[0].mxu0
    %2065 = vmatprep.mubr.f32.mxu0 0.0
    %2066 = vmatmul.mubr.f32.gmra.mrb[0].mxu0 %v1961
    %v2067 = vpop.f32.mrb[0].mxu0
    %v2068 = vadd.f32 0.0, %v2067
    %v2069 = vpop.f32.mrb[0].mxu0
    %2070 = vmatprep.mubr.f32.mxu0 0.0
    %2071 = vmatmul.mubr.f32.gmra.mrb[0].mxu0 %v1962
    %v2072 = vpop.f32.mrb[0].mxu0
    %v2073 = vadd.f32 0.0, %v2072
    %v2074 = vpop.f32.mrb[0].mxu0
    %2075 = vmatprep.mubr.f32.mxu0 0.0
    %2076 = vmatmul.mubr.f32.gmra.mrb[0].mxu0 %v1963
    %v2077 = vpop.f32.mrb[0].mxu0
    %v2078 = vadd.f32 0.0, %v2077
    %v2079 = vpop.f32.mrb[0].mxu0
    %2080 = vmatprep.mubr.f32.mxu0 0.0
    %2081 = vmatmul.mubr.f32.gmra.mrb[0].mxu0 %v1964
    %v2082 = vpop.f32.mrb[0].mxu0
    %v2083 = vadd.f32 0.0, %v2082
    %v2084 = vpop.f32.mrb[0].mxu0
    %2085 = vmatprep.mubr.f32.mxu0 0.0
    %2086 = vmatmul.mubr.f32.gmra.mrb[0].mxu0 %v1965
    %v2087 = vpop.f32.mrb[0].mxu0
    %v2088 = vadd.f32 0.0, %v2087
    %v2089 = vpop.f32.mrb[0].mxu0
    %2090 = vmatprep.mubr.f32.mxu0 0.0
    %2091 = vmatmul.mubr.f32.gmra.mrb[0].mxu0 %v1966
    %v2092 = vpop.f32.mrb[0].mxu0
    %v2093 = vadd.f32 0.0, %v2092
    %v2094 = vpop.f32.mrb[0].mxu0
    %2095 = vmatprep.mubr.f32.mxu0 0.0
    %2096 = vmatmul.mubr.f32.gmra.mrb[0].mxu0 %v1967
    %v2097 = vpop.f32.mrb[0].mxu0
    %v2098 = vadd.f32 0.0, %v2097
    %v2099 = vpop.f32.mrb[0].mxu0
    %2100 = vmatprep.mubr.f32.mxu0 0.0
    %2101 = vmatmul.mubr.f32.gmra.mrb[0].mxu0 %v1968
    %v2102 = vpop.f32.mrb[0].mxu0
    %v2103 = vadd.f32 0.0, %v2102
    %v2104 = vpop.f32.mrb[0].mxu0
    %2105 = vmatprep.mubr.f32.mxu0 0.0
    %2106 = vmatmul.mubr.f32.gmra.mrb[0].mxu0 %v1969
    %v2107 = vpop.f32.mrb[0].mxu0
    %v2108 = vadd.f32 0.0, %v2107
    %v2109 = vpop.f32.mrb[0].mxu0
    %2110 = vmatprep.mubr.f32.mxu0 0.0
    %2111 = vmatmul.mubr.f32.gmra.mrb[0].mxu0 %v1970
    %v2112 = vpop.f32.mrb[0].mxu0
    %v2113 = vadd.f32 0.0, %v2112
    %v2114 = vpop.f32.mrb[0].mxu0
    %2115 = vdwg.mxu0
    %v2116 = vld [vmem:[%s883] sm:$0xff]
    %v2117 = vld [vmem:[%s883 + $0x8] sm:$0xff]
    %v2118 = vld [vmem:[%s883 + $0x10] sm:$0xff]
    %v2119 = vld [vmem:[%s883 + $0x18] sm:$0xff]
    %v2120 = vld [vmem:[%s883 + $0x20] sm:$0xff]
    %v2121 = vld [vmem:[%s883 + $0x28] sm:$0xff]
    %v2122 = vld [vmem:[%s883 + $0x30] sm:$0xff]
    %v2123 = vld [vmem:[%s883 + $0x38] sm:$0xff]
    %v2124 = vld [vmem:[%s883 + $0x40] sm:$0xff]
    %v2125 = vld [vmem:[%s883 + $0x48] sm:$0xff]
    %v2126 = vld [vmem:[%s883 + $0x50] sm:$0xff]
    %v2127 = vld [vmem:[%s883 + $0x58] sm:$0xff]
    %v2128 = vld [vmem:[%s883 + $0x60] sm:$0xff]
    %v2129 = vld [vmem:[%s883 + $0x68] sm:$0xff]
    %v2130 = vld [vmem:[%s883 + $0x70] sm:$0xff]
    %v2131 = vld [vmem:[%s883 + $0x78] sm:$0xff]
    %2132 = vmatprep.subr.mxu0 0.0
    %2133 = vmatpush1.msra.mxu0 %v2116
    %2134 = vmatprep.subr.mxu0 0.0
    %2135 = vmatpush1.msra.mxu0 %v2117
    %2136 = vmatprep.subr.mxu0 0.0
    %2137 = vmatpush1.msra.mxu0 %v2118
    %2138 = vmatprep.subr.mxu0 0.0
    %2139 = vmatpush1.msra.mxu0 %v2119
    %2140 = vmatprep.subr.mxu0 0.0
    %2141 = vmatpush1.msra.mxu0 %v2120
    %2142 = vmatprep.subr.mxu0 0.0
    %2143 = vmatpush1.msra.mxu0 %v2121
    %2144 = vmatprep.subr.mxu0 0.0
    %2145 = vmatpush1.msra.mxu0 %v2122
    %2146 = vmatprep.subr.mxu0 0.0
    %2147 = vmatpush1.msra.mxu0 %v2123
    %2148 = vmatprep.subr.mxu0 0.0
    %2149 = vmatpush1.msra.mxu0 %v2124
    %2150 = vmatprep.subr.mxu0 0.0
    %2151 = vmatpush1.msra.mxu0 %v2125
    %2152 = vmatprep.subr.mxu0 0.0
    %2153 = vmatpush1.msra.mxu0 %v2126
    %2154 = vmatprep.subr.mxu0 0.0
    %2155 = vmatpush1.msra.mxu0 %v2127
    %2156 = vmatprep.subr.mxu0 0.0
    %2157 = vmatpush1.msra.mxu0 %v2128
    %2158 = vmatprep.subr.mxu0 0.0
    %2159 = vmatpush1.msra.mxu0 %v2129
    %2160 = vmatprep.subr.mxu0 0.0
    %2161 = vmatpush1.msra.mxu0 %v2130
    %2162 = vmatprep.subr.mxu0 0.0
    %2163 = vmatpush1.msra.mxu0 %v2131
    %2164 = vmatprep.subr.mxu0 0.0
    %2165 = vmatpush1.msra.mxu0 0.0
    %2166 = vmatprep.subr.mxu0 0.0
    %2167 = vmatpush1.msra.mxu0 0.0
    %2168 = vmatprep.subr.mxu0 0.0
    %2169 = vmatpush1.msra.mxu0 0.0
    %2170 = vmatprep.subr.mxu0 0.0
    %2171 = vmatpush1.msra.mxu0 0.0
    %2172 = vmatprep.subr.mxu0 0.0
    %2173 = vmatpush1.msra.mxu0 0.0
    %2174 = vmatprep.subr.mxu0 0.0
    %2175 = vmatpush1.msra.mxu0 0.0
    %2176 = vmatprep.subr.mxu0 0.0
    %2177 = vmatpush1.msra.mxu0 0.0
    %2178 = vmatprep.subr.mxu0 0.0
    %2179 = vmatpush1.msra.mxu0 0.0
    %2180 = vmatprep.subr.mxu0 0.0
    %2181 = vmatpush1.msra.mxu0 0.0
    %2182 = vmatprep.subr.mxu0 0.0
    %2183 = vmatpush1.msra.mxu0 0.0
    %2184 = vmatprep.subr.mxu0 0.0
    %2185 = vmatpush1.msra.mxu0 0.0
    %2186 = vmatprep.subr.mxu0 0.0
    %2187 = vmatpush1.msra.mxu0 0.0
    %2188 = vmatprep.subr.mxu0 0.0
    %2189 = vmatpush1.msra.mxu0 0.0
    %2190 = vmatprep.subr.mxu0 0.0
    %2191 = vmatpush1.msra.mxu0 0.0
    %2192 = vmatprep.subr.mxu0 0.0
    %2193 = vmatpush1.msra.mxu0 0.0
    %2194 = vmatprep.subr.mxu0 0.0
    %2195 = vmatpush1.msra.mxu0 0.0
    %2196 = vmatprep.mubr.f32.mxu0 0.0
    %2197 = vmatmul.mubr.f32.gmra.mrb[0].mxu0 %v2038
    %v2198 = vpop.f32.mrb[0].mxu0
    %v2199 = vadd.f32 %v629, %v2198
    %v2200 = vpop.f32.mrb[0].mxu0
    %2201 = vmatprep.mubr.f32.mxu0 0.0
    %2202 = vmatmul.mubr.f32.gmra.mrb[0].mxu0 %v2043
    %v2203 = vpop.f32.mrb[0].mxu0
    %v2204 = vadd.f32 %v635, %v2203
    %v2205 = vpop.f32.mrb[0].mxu0
    %2206 = vmatprep.mubr.f32.mxu0 0.0
    %2207 = vmatmul.mubr.f32.gmra.mrb[0].mxu0 %v2048
    %v2208 = vpop.f32.mrb[0].mxu0
    %v2209 = vadd.f32 %v641, %v2208
    %v2210 = vpop.f32.mrb[0].mxu0
    %2211 = vmatprep.mubr.f32.mxu0 0.0
    %2212 = vmatmul.mubr.f32.gmra.mrb[0].mxu0 %v2053
    %v2213 = vpop.f32.mrb[0].mxu0
    %v2214 = vadd.f32 %v647, %v2213
    %v2215 = vpop.f32.mrb[0].mxu0
    %2216 = vmatprep.mubr.f32.mxu0 0.0
    %2217 = vmatmul.mubr.f32.gmra.mrb[0].mxu0 %v2058
    %v2218 = vpop.f32.mrb[0].mxu0
    %v2219 = vadd.f32 %v653, %v2218
    %v2220 = vpop.f32.mrb[0].mxu0
    %2221 = vmatprep.mubr.f32.mxu0 0.0
    %2222 = vmatmul.mubr.f32.gmra.mrb[0].mxu0 %v2063
    %v2223 = vpop.f32.mrb[0].mxu0
    %v2224 = vadd.f32 %v659, %v2223
    %v2225 = vpop.f32.mrb[0].mxu0
    %2226 = vmatprep.mubr.f32.mxu0 0.0
    %2227 = vmatmul.mubr.f32.gmra.mrb[0].mxu0 %v2068
    %v2228 = vpop.f32.mrb[0].mxu0
    %v2229 = vadd.f32 %v665, %v2228
    %v2230 = vpop.f32.mrb[0].mxu0
    %2231 = vmatprep.mubr.f32.mxu0 0.0
    %2232 = vmatmul.mubr.f32.gmra.mrb[0].mxu0 %v2073
    %v2233 = vpop.f32.mrb[0].mxu0
    %v2234 = vadd.f32 %v671, %v2233
    %v2235 = vpop.f32.mrb[0].mxu0
    %2236 = vmatprep.mubr.f32.mxu0 0.0
    %2237 = vmatmul.mubr.f32.gmra.mrb[0].mxu0 %v2078
    %v2238 = vpop.f32.mrb[0].mxu0
    %v2239 = vadd.f32 %v677, %v2238
    %v2240 = vpop.f32.mrb[0].mxu0
    %2241 = vmatprep.mubr.f32.mxu0 0.0
    %2242 = vmatmul.mubr.f32.gmra.mrb[0].mxu0 %v2083
    %v2243 = vpop.f32.mrb[0].mxu0
    %v2244 = vadd.f32 %v683, %v2243
    %v2245 = vpop.f32.mrb[0].mxu0
    %2246 = vmatprep.mubr.f32.mxu0 0.0
    %2247 = vmatmul.mubr.f32.gmra.mrb[0].mxu0 %v2088
    %v2248 = vpop.f32.mrb[0].mxu0
    %v2249 = vadd.f32 %v689, %v2248
    %v2250 = vpop.f32.mrb[0].mxu0
    %2251 = vmatprep.mubr.f32.mxu0 0.0
    %2252 = vmatmul.mubr.f32.gmra.mrb[0].mxu0 %v2093
    %v2253 = vpop.f32.mrb[0].mxu0
    %v2254 = vadd.f32 %v695, %v2253
    %v2255 = vpop.f32.mrb[0].mxu0
    %2256 = vmatprep.mubr.f32.mxu0 0.0
    %2257 = vmatmul.mubr.f32.gmra.mrb[0].mxu0 %v2098
    %v2258 = vpop.f32.mrb[0].mxu0
    %v2259 = vadd.f32 %v701, %v2258
    %v2260 = vpop.f32.mrb[0].mxu0
    %2261 = vmatprep.mubr.f32.mxu0 0.0
    %2262 = vmatmul.mubr.f32.gmra.mrb[0].mxu0 %v2103
    %v2263 = vpop.f32.mrb[0].mxu0
    %v2264 = vadd.f32 %v707, %v2263
    %v2265 = vpop.f32.mrb[0].mxu0
    %2266 = vmatprep.mubr.f32.mxu0 0.0
    %2267 = vmatmul.mubr.f32.gmra.mrb[0].mxu0 %v2108
    %v2268 = vpop.f32.mrb[0].mxu0
    %v2269 = vadd.f32 %v713, %v2268
    %v2270 = vpop.f32.mrb[0].mxu0
    %2271 = vmatprep.mubr.f32.mxu0 0.0
    %2272 = vmatmul.mubr.f32.gmra.mrb[0].mxu0 %v2113
    %v2273 = vpop.f32.mrb[0].mxu0
    %v2274 = vadd.f32 %v719, %v2273
    %v2275 = vpop.f32.mrb[0].mxu0
    %2276 = vdwg.mxu0
    %v2277 = vmax.f32 %v2199, 0.0
    %v2278 = vmax.f32 %v2204, 0.0
    %v2279 = vmax.f32 %v2209, 0.0
    %v2280 = vmax.f32 %v2214, 0.0
    %v2281 = vmax.f32 %v2219, 0.0
    %v2282 = vmax.f32 %v2224, 0.0
    %v2283 = vmax.f32 %v2229, 0.0
    %v2284 = vmax.f32 %v2234, 0.0
    %v2285 = vmax.f32 %v2239, 0.0
    %v2286 = vmax.f32 %v2244, 0.0
    %v2287 = vmax.f32 %v2249, 0.0
    %v2288 = vmax.f32 %v2254, 0.0
    %v2289 = vmax.f32 %v2259, 0.0
    %v2290 = vmax.f32 %v2264, 0.0
    %v2291 = vmax.f32 %v2269, 0.0
    %v2292 = vmax.f32 %v2274, 0.0
    %s2293 = scalar_lea.hbm %s7, 10240
    // Predicated region
    $region58: #{net_forward.1} parent=1 // pred_check
      _
    $region59: #{net_forward.1} parent=1 // pred_check_branch
      %2295 = sbr.rel target = $region61
    $region60: #{net_forward.1} parent=1 // pred_region
      %2296 = sst [smem:[#allocation10]] [#allocation21]
      %2297 = sst [smem:[#allocation11]] [#allocation20]
    $region61: #{net_forward.1} parent=1 // pred_fallthru
      _
    %2299 = shalt.err (0)
    %s2301 = sshll.u32 %s883, 4
    %s2302 = int_to_ptr.vmem [resolvable:$true] %s2301
    %2304 = dma.hbm_to_vmem [thread:$0]  %s2293, 2048, %s2302, %s884
    %s2305 = sshll.u32 %s896, 4
    %2306 = dma.done [#allocation3], %s2305
    %v2307 = vld [vmem:[%s0] sm:$0xff]
    %v2308 = vld [vmem:[%s0 + $0x8] sm:$0xff]
    %v2309 = vld [vmem:[%s0 + $0x10] sm:$0xff]
    %v2310 = vld [vmem:[%s0 + $0x18] sm:$0xff]
    %v2311 = vld [vmem:[%s0 + $0x20] sm:$0xff]
    %v2312 = vld [vmem:[%s0 + $0x28] sm:$0xff]
    %v2313 = vld [vmem:[%s0 + $0x30] sm:$0xff]
    %v2314 = vld [vmem:[%s0 + $0x38] sm:$0xff]
    %v2315 = vld [vmem:[%s0 + $0x40] sm:$0xff]
    %v2316 = vld [vmem:[%s0 + $0x48] sm:$0xff]
    %v2317 = vld [vmem:[%s0 + $0x50] sm:$0xff]
    %v2318 = vld [vmem:[%s0 + $0x58] sm:$0xff]
    %v2319 = vld [vmem:[%s0 + $0x60] sm:$0xff]
    %v2320 = vld [vmem:[%s0 + $0x68] sm:$0xff]
    %v2321 = vld [vmem:[%s0 + $0x70] sm:$0xff]
    %v2322 = vld [vmem:[%s0 + $0x78] sm:$0xff]
    %2323 = vmatprep.subr.mxu0 0.0
    %2324 = vmatpush1.msra.mxu0 %v2277
    %2325 = vmatprep.subr.mxu0 0.0
    %2326 = vmatpush1.msra.mxu0 %v2278
    %2327 = vmatprep.subr.mxu0 0.0
    %2328 = vmatpush1.msra.mxu0 %v2279
    %2329 = vmatprep.subr.mxu0 0.0
    %2330 = vmatpush1.msra.mxu0 %v2280
    %2331 = vmatprep.subr.mxu0 0.0
    %2332 = vmatpush1.msra.mxu0 %v2281
    %2333 = vmatprep.subr.mxu0 0.0
    %2334 = vmatpush1.msra.mxu0 %v2282
    %2335 = vmatprep.subr.mxu0 0.0
    %2336 = vmatpush1.msra.mxu0 %v2283
    %2337 = vmatprep.subr.mxu0 0.0
    %2338 = vmatpush1.msra.mxu0 %v2284
    %2339 = vmatprep.subr.mxu0 0.0
    %2340 = vmatpush1.msra.mxu0 %v2285
    %2341 = vmatprep.subr.mxu0 0.0
    %2342 = vmatpush1.msra.mxu0 %v2286
    %2343 = vmatprep.subr.mxu0 0.0
    %2344 = vmatpush1.msra.mxu0 %v2287
    %2345 = vmatprep.subr.mxu0 0.0
    %2346 = vmatpush1.msra.mxu0 %v2288
    %2347 = vmatprep.subr.mxu0 0.0
    %2348 = vmatpush1.msra.mxu0 %v2289
    %2349 = vmatprep.subr.mxu0 0.0
    %2350 = vmatpush1.msra.mxu0 %v2290
    %2351 = vmatprep.subr.mxu0 0.0
    %2352 = vmatpush1.msra.mxu0 %v2291
    %2353 = vmatprep.subr.mxu0 0.0
    %2354 = vmatpush1.msra.mxu0 %v2292
    %2355 = vmatprep.subr.mxu0 0.0
    %2356 = vmatpush1.msra.mxu0 0.0
    %2357 = vmatprep.subr.mxu0 0.0
    %2358 = vmatpush1.msra.mxu0 0.0
    %2359 = vmatprep.subr.mxu0 0.0
    %2360 = vmatpush1.msra.mxu0 0.0
    %2361 = vmatprep.subr.mxu0 0.0
    %2362 = vmatpush1.msra.mxu0 0.0
    %2363 = vmatprep.subr.mxu0 0.0
    %2364 = vmatpush1.msra.mxu0 0.0
    %2365 = vmatprep.subr.mxu0 0.0
    %2366 = vmatpush1.msra.mxu0 0.0
    %2367 = vmatprep.subr.mxu0 0.0
    %2368 = vmatpush1.msra.mxu0 0.0
    %2369 = vmatprep.subr.mxu0 0.0
    %2370 = vmatpush1.msra.mxu0 0.0
    %2371 = vmatprep.subr.mxu0 0.0
    %2372 = vmatpush1.msra.mxu0 0.0
    %2373 = vmatprep.subr.mxu0 0.0
    %2374 = vmatpush1.msra.mxu0 0.0
    %2375 = vmatprep.subr.mxu0 0.0
    %2376 = vmatpush1.msra.mxu0 0.0
    %2377 = vmatprep.subr.mxu0 0.0
    %2378 = vmatpush1.msra.mxu0 0.0
    %2379 = vmatprep.subr.mxu0 0.0
    %2380 = vmatpush1.msra.mxu0 0.0
    %2381 = vmatprep.subr.mxu0 0.0
    %2382 = vmatpush1.msra.mxu0 0.0
    %2383 = vmatprep.subr.mxu0 0.0
    %2384 = vmatpush1.msra.mxu0 0.0
    %2385 = vmatprep.subr.mxu0 0.0
    %2386 = vmatpush1.msra.mxu0 0.0
    %2387 = vmatprep.mubr.f32.mxu0 0.0
    %2388 = vmatmul.mubr.f32.gmra.mrb[0].mxu0 %v2307
    %v2389 = vpop.f32.mrb[0].mxu0
    %v2390 = vadd.f32 0.0, %v2389
    %v2391 = vpop.f32.mrb[0].mxu0
    %2392 = vmatprep.mubr.f32.mxu0 0.0
    %2393 = vmatmul.mubr.f32.gmra.mrb[0].mxu0 %v2308
    %v2394 = vpop.f32.mrb[0].mxu0
    %v2395 = vadd.f32 0.0, %v2394
    %v2396 = vpop.f32.mrb[0].mxu0
    %2397 = vmatprep.mubr.f32.mxu0 0.0
    %2398 = vmatmul.mubr.f32.gmra.mrb[0].mxu0 %v2309
    %v2399 = vpop.f32.mrb[0].mxu0
    %v2400 = vadd.f32 0.0, %v2399
    %v2401 = vpop.f32.mrb[0].mxu0
    %2402 = vmatprep.mubr.f32.mxu0 0.0
    %2403 = vmatmul.mubr.f32.gmra.mrb[0].mxu0 %v2310
    %v2404 = vpop.f32.mrb[0].mxu0
    %v2405 = vadd.f32 0.0, %v2404
    %v2406 = vpop.f32.mrb[0].mxu0
    %2407 = vmatprep.mubr.f32.mxu0 0.0
    %2408 = vmatmul.mubr.f32.gmra.mrb[0].mxu0 %v2311
    %v2409 = vpop.f32.mrb[0].mxu0
    %v2410 = vadd.f32 0.0, %v2409
    %v2411 = vpop.f32.mrb[0].mxu0
    %2412 = vmatprep.mubr.f32.mxu0 0.0
    %2413 = vmatmul.mubr.f32.gmra.mrb[0].mxu0 %v2312
    %v2414 = vpop.f32.mrb[0].mxu0
    %v2415 = vadd.f32 0.0, %v2414
    %v2416 = vpop.f32.mrb[0].mxu0
    %2417 = vmatprep.mubr.f32.mxu0 0.0
    %2418 = vmatmul.mubr.f32.gmra.mrb[0].mxu0 %v2313
    %v2419 = vpop.f32.mrb[0].mxu0
    %v2420 = vadd.f32 0.0, %v2419
    %v2421 = vpop.f32.mrb[0].mxu0
    %2422 = vmatprep.mubr.f32.mxu0 0.0
    %2423 = vmatmul.mubr.f32.gmra.mrb[0].mxu0 %v2314
    %v2424 = vpop.f32.mrb[0].mxu0
    %v2425 = vadd.f32 0.0, %v2424
    %v2426 = vpop.f32.mrb[0].mxu0
    %2427 = vmatprep.mubr.f32.mxu0 0.0
    %2428 = vmatmul.mubr.f32.gmra.mrb[0].mxu0 %v2315
    %v2429 = vpop.f32.mrb[0].mxu0
    %v2430 = vadd.f32 0.0, %v2429
    %v2431 = vpop.f32.mrb[0].mxu0
    %2432 = vmatprep.mubr.f32.mxu0 0.0
    %2433 = vmatmul.mubr.f32.gmra.mrb[0].mxu0 %v2316
    %v2434 = vpop.f32.mrb[0].mxu0
    %v2435 = vadd.f32 0.0, %v2434
    %v2436 = vpop.f32.mrb[0].mxu0
    %2437 = vmatprep.mubr.f32.mxu0 0.0
    %2438 = vmatmul.mubr.f32.gmra.mrb[0].mxu0 %v2317
    %v2439 = vpop.f32.mrb[0].mxu0
    %v2440 = vadd.f32 0.0, %v2439
    %v2441 = vpop.f32.mrb[0].mxu0
    %2442 = vmatprep.mubr.f32.mxu0 0.0
    %2443 = vmatmul.mubr.f32.gmra.mrb[0].mxu0 %v2318
    %v2444 = vpop.f32.mrb[0].mxu0
    %v2445 = vadd.f32 0.0, %v2444
    %v2446 = vpop.f32.mrb[0].mxu0
    %2447 = vmatprep.mubr.f32.mxu0 0.0
    %2448 = vmatmul.mubr.f32.gmra.mrb[0].mxu0 %v2319
    %v2449 = vpop.f32.mrb[0].mxu0
    %v2450 = vadd.f32 0.0, %v2449
    %v2451 = vpop.f32.mrb[0].mxu0
    %2452 = vmatprep.mubr.f32.mxu0 0.0
    %2453 = vmatmul.mubr.f32.gmra.mrb[0].mxu0 %v2320
    %v2454 = vpop.f32.mrb[0].mxu0
    %v2455 = vadd.f32 0.0, %v2454
    %v2456 = vpop.f32.mrb[0].mxu0
    %2457 = vmatprep.mubr.f32.mxu0 0.0
    %2458 = vmatmul.mubr.f32.gmra.mrb[0].mxu0 %v2321
    %v2459 = vpop.f32.mrb[0].mxu0
    %v2460 = vadd.f32 0.0, %v2459
    %v2461 = vpop.f32.mrb[0].mxu0
    %2462 = vmatprep.mubr.f32.mxu0 0.0
    %2463 = vmatmul.mubr.f32.gmra.mrb[0].mxu0 %v2322
    %v2464 = vpop.f32.mrb[0].mxu0
    %v2465 = vadd.f32 0.0, %v2464
    %v2466 = vpop.f32.mrb[0].mxu0
    %2467 = vdwg.mxu0
    %v2468 = vld [vmem:[#allocation2] sm:$0xff]
    %v2469 = vld [vmem:[#allocation2 + $0x8] sm:$0xff]
    %v2470 = vld [vmem:[#allocation2 + $0x10] sm:$0xff]
    %v2471 = vld [vmem:[#allocation2 + $0x18] sm:$0xff]
    %v2472 = vld [vmem:[#allocation2 + $0x20] sm:$0xff]
    %v2473 = vld [vmem:[#allocation2 + $0x28] sm:$0xff]
    %v2474 = vld [vmem:[#allocation2 + $0x30] sm:$0xff]
    %v2475 = vld [vmem:[#allocation2 + $0x38] sm:$0xff]
    %v2476 = vld [vmem:[#allocation2 + $0x40] sm:$0xff]
    %v2477 = vld [vmem:[#allocation2 + $0x48] sm:$0xff]
    %v2478 = vld [vmem:[#allocation2 + $0x50] sm:$0xff]
    %v2479 = vld [vmem:[#allocation2 + $0x58] sm:$0xff]
    %v2480 = vld [vmem:[#allocation2 + $0x60] sm:$0xff]
    %v2481 = vld [vmem:[#allocation2 + $0x68] sm:$0xff]
    %v2482 = vld [vmem:[#allocation2 + $0x70] sm:$0xff]
    %v2483 = vld [vmem:[#allocation2 + $0x78] sm:$0xff]
    %2484 = vmatprep.subr.mxu0 0.0
    %2485 = vmatpush1.msra.mxu0 %v2468
    %2486 = vmatprep.subr.mxu0 0.0
    %2487 = vmatpush1.msra.mxu0 %v2469
    %2488 = vmatprep.subr.mxu0 0.0
    %2489 = vmatpush1.msra.mxu0 %v2470
    %2490 = vmatprep.subr.mxu0 0.0
    %2491 = vmatpush1.msra.mxu0 %v2471
    %2492 = vmatprep.subr.mxu0 0.0
    %2493 = vmatpush1.msra.mxu0 %v2472
    %2494 = vmatprep.subr.mxu0 0.0
    %2495 = vmatpush1.msra.mxu0 %v2473
    %2496 = vmatprep.subr.mxu0 0.0
    %2497 = vmatpush1.msra.mxu0 %v2474
    %2498 = vmatprep.subr.mxu0 0.0
    %2499 = vmatpush1.msra.mxu0 %v2475
    %2500 = vmatprep.subr.mxu0 0.0
    %2501 = vmatpush1.msra.mxu0 %v2476
    %2502 = vmatprep.subr.mxu0 0.0
    %2503 = vmatpush1.msra.mxu0 %v2477
    %2504 = vmatprep.subr.mxu0 0.0
    %2505 = vmatpush1.msra.mxu0 %v2478
    %2506 = vmatprep.subr.mxu0 0.0
    %2507 = vmatpush1.msra.mxu0 %v2479
    %2508 = vmatprep.subr.mxu0 0.0
    %2509 = vmatpush1.msra.mxu0 %v2480
    %2510 = vmatprep.subr.mxu0 0.0
    %2511 = vmatpush1.msra.mxu0 %v2481
    %2512 = vmatprep.subr.mxu0 0.0
    %2513 = vmatpush1.msra.mxu0 %v2482
    %2514 = vmatprep.subr.mxu0 0.0
    %2515 = vmatpush1.msra.mxu0 %v2483
    %2516 = vmatprep.subr.mxu0 0.0
    %2517 = vmatpush1.msra.mxu0 0.0
    %2518 = vmatprep.subr.mxu0 0.0
    %2519 = vmatpush1.msra.mxu0 0.0
    %2520 = vmatprep.subr.mxu0 0.0
    %2521 = vmatpush1.msra.mxu0 0.0
    %2522 = vmatprep.subr.mxu0 0.0
    %2523 = vmatpush1.msra.mxu0 0.0
    %2524 = vmatprep.subr.mxu0 0.0
    %2525 = vmatpush1.msra.mxu0 0.0
    %2526 = vmatprep.subr.mxu0 0.0
    %2527 = vmatpush1.msra.mxu0 0.0
    %2528 = vmatprep.subr.mxu0 0.0
    %2529 = vmatpush1.msra.mxu0 0.0
    %2530 = vmatprep.subr.mxu0 0.0
    %2531 = vmatpush1.msra.mxu0 0.0
    %2532 = vmatprep.subr.mxu0 0.0
    %2533 = vmatpush1.msra.mxu0 0.0
    %2534 = vmatprep.subr.mxu0 0.0
    %2535 = vmatpush1.msra.mxu0 0.0
    %2536 = vmatprep.subr.mxu0 0.0
    %2537 = vmatpush1.msra.mxu0 0.0
    %2538 = vmatprep.subr.mxu0 0.0
    %2539 = vmatpush1.msra.mxu0 0.0
    %2540 = vmatprep.subr.mxu0 0.0
    %2541 = vmatpush1.msra.mxu0 0.0
    %2542 = vmatprep.subr.mxu0 0.0
    %2543 = vmatpush1.msra.mxu0 0.0
    %2544 = vmatprep.subr.mxu0 0.0
    %2545 = vmatpush1.msra.mxu0 0.0
    %2546 = vmatprep.subr.mxu0 0.0
    %2547 = vmatpush1.msra.mxu0 0.0
    %2548 = vmatprep.mubr.f32.mxu0 0.0
    %2549 = vmatmul.mubr.f32.gmra.mrb[0].mxu0 %v2390
    %v2550 = vpop.f32.mrb[0].mxu0
    %v2551 = vadd.f32 %v788, %v2550
    %v2552 = vpop.f32.mrb[0].mxu0
    %2553 = vmatprep.mubr.f32.mxu0 0.0
    %2554 = vmatmul.mubr.f32.gmra.mrb[0].mxu0 %v2395
    %v2555 = vpop.f32.mrb[0].mxu0
    %v2556 = vadd.f32 %v794, %v2555
    %v2557 = vpop.f32.mrb[0].mxu0
    %2558 = vmatprep.mubr.f32.mxu0 0.0
    %2559 = vmatmul.mubr.f32.gmra.mrb[0].mxu0 %v2400
    %v2560 = vpop.f32.mrb[0].mxu0
    %v2561 = vadd.f32 %v800, %v2560
    %v2562 = vpop.f32.mrb[0].mxu0
    %2563 = vmatprep.mubr.f32.mxu0 0.0
    %2564 = vmatmul.mubr.f32.gmra.mrb[0].mxu0 %v2405
    %v2565 = vpop.f32.mrb[0].mxu0
    %v2566 = vadd.f32 %v806, %v2565
    %v2567 = vpop.f32.mrb[0].mxu0
    %2568 = vmatprep.mubr.f32.mxu0 0.0
    %2569 = vmatmul.mubr.f32.gmra.mrb[0].mxu0 %v2410
    %v2570 = vpop.f32.mrb[0].mxu0
    %v2571 = vadd.f32 %v812, %v2570
    %v2572 = vpop.f32.mrb[0].mxu0
    %2573 = vmatprep.mubr.f32.mxu0 0.0
    %2574 = vmatmul.mubr.f32.gmra.mrb[0].mxu0 %v2415
    %v2575 = vpop.f32.mrb[0].mxu0
    %v2576 = vadd.f32 %v818, %v2575
    %v2577 = vpop.f32.mrb[0].mxu0
    %2578 = vmatprep.mubr.f32.mxu0 0.0
    %2579 = vmatmul.mubr.f32.gmra.mrb[0].mxu0 %v2420
    %v2580 = vpop.f32.mrb[0].mxu0
    %v2581 = vadd.f32 %v824, %v2580
    %v2582 = vpop.f32.mrb[0].mxu0
    %2583 = vmatprep.mubr.f32.mxu0 0.0
    %2584 = vmatmul.mubr.f32.gmra.mrb[0].mxu0 %v2425
    %v2585 = vpop.f32.mrb[0].mxu0
    %v2586 = vadd.f32 %v830, %v2585
    %v2587 = vpop.f32.mrb[0].mxu0
    %2588 = vmatprep.mubr.f32.mxu0 0.0
    %2589 = vmatmul.mubr.f32.gmra.mrb[0].mxu0 %v2430
    %v2590 = vpop.f32.mrb[0].mxu0
    %v2591 = vadd.f32 %v836, %v2590
    %v2592 = vpop.f32.mrb[0].mxu0
    %2593 = vmatprep.mubr.f32.mxu0 0.0
    %2594 = vmatmul.mubr.f32.gmra.mrb[0].mxu0 %v2435
    %v2595 = vpop.f32.mrb[0].mxu0
    %v2596 = vadd.f32 %v842, %v2595
    %v2597 = vpop.f32.mrb[0].mxu0
    %2598 = vmatprep.mubr.f32.mxu0 0.0
    %2599 = vmatmul.mubr.f32.gmra.mrb[0].mxu0 %v2440
    %v2600 = vpop.f32.mrb[0].mxu0
    %v2601 = vadd.f32 %v848, %v2600
    %v2602 = vpop.f32.mrb[0].mxu0
    %2603 = vmatprep.mubr.f32.mxu0 0.0
    %2604 = vmatmul.mubr.f32.gmra.mrb[0].mxu0 %v2445
    %v2605 = vpop.f32.mrb[0].mxu0
    %v2606 = vadd.f32 %v854, %v2605
    %v2607 = vpop.f32.mrb[0].mxu0
    %2608 = vmatprep.mubr.f32.mxu0 0.0
    %2609 = vmatmul.mubr.f32.gmra.mrb[0].mxu0 %v2450
    %v2610 = vpop.f32.mrb[0].mxu0
    %v2611 = vadd.f32 %v860, %v2610
    %v2612 = vpop.f32.mrb[0].mxu0
    %2613 = vmatprep.mubr.f32.mxu0 0.0
    %2614 = vmatmul.mubr.f32.gmra.mrb[0].mxu0 %v2455
    %v2615 = vpop.f32.mrb[0].mxu0
    %v2616 = vadd.f32 %v866, %v2615
    %v2617 = vpop.f32.mrb[0].mxu0
    %2618 = vmatprep.mubr.f32.mxu0 0.0
    %2619 = vmatmul.mubr.f32.gmra.mrb[0].mxu0 %v2460
    %v2620 = vpop.f32.mrb[0].mxu0
    %v2621 = vadd.f32 %v872, %v2620
    %v2622 = vpop.f32.mrb[0].mxu0
    %2623 = vmatprep.mubr.f32.mxu0 0.0
    %2624 = vmatmul.mubr.f32.gmra.mrb[0].mxu0 %v2465
    %v2625 = vpop.f32.mrb[0].mxu0
    %v2626 = vadd.f32 %v878, %v2625
    %v2627 = vpop.f32.mrb[0].mxu0
    %2628 = vdwg.mxu0
    %v2629 = vmax.f32 %v2551, 0.0
    %v2630 = vmax.f32 %v2556, 0.0
    %v2631 = vmax.f32 %v2561, 0.0
    %v2632 = vmax.f32 %v2566, 0.0
    %v2633 = vmax.f32 %v2571, 0.0
    %v2634 = vmax.f32 %v2576, 0.0
    %v2635 = vmax.f32 %v2581, 0.0
    %v2636 = vmax.f32 %v2586, 0.0
    %v2637 = vmax.f32 %v2591, 0.0
    %v2638 = vmax.f32 %v2596, 0.0
    %v2639 = vmax.f32 %v2601, 0.0
    %v2640 = vmax.f32 %v2606, 0.0
    %v2641 = vmax.f32 %v2611, 0.0
    %v2642 = vmax.f32 %v2616, 0.0
    %v2643 = vmax.f32 %v2621, 0.0
    %v2644 = vmax.f32 %v2626, 0.0
    %s2645 = sshll.u32 %s896, 4
    %2646 = dma.done %s884, %s2645
    %v2647 = vld [vmem:[%s0] sm:$0xff]
    %v2648 = vld [vmem:[%s0 + $0x8] sm:$0xff]
    %v2649 = vld [vmem:[%s0 + $0x10] sm:$0xff]
    %v2650 = vld [vmem:[%s0 + $0x18] sm:$0xff]
    %v2651 = vld [vmem:[%s0 + $0x20] sm:$0xff]
    %v2652 = vld [vmem:[%s0 + $0x28] sm:$0xff]
    %v2653 = vld [vmem:[%s0 + $0x30] sm:$0xff]
    %v2654 = vld [vmem:[%s0 + $0x38] sm:$0xff]
    %v2655 = vld [vmem:[%s0 + $0x40] sm:$0xff]
    %v2656 = vld [vmem:[%s0 + $0x48] sm:$0xff]
    %v2657 = vld [vmem:[%s0 + $0x50] sm:$0xff]
    %v2658 = vld [vmem:[%s0 + $0x58] sm:$0xff]
    %v2659 = vld [vmem:[%s0 + $0x60] sm:$0xff]
    %v2660 = vld [vmem:[%s0 + $0x68] sm:$0xff]
    %v2661 = vld [vmem:[%s0 + $0x70] sm:$0xff]
    %v2662 = vld [vmem:[%s0 + $0x78] sm:$0xff]
    %2663 = vmatprep.subr.mxu0 0.0
    %2664 = vmatpush1.msra.mxu0 %v2629
    %2665 = vmatprep.subr.mxu0 0.0
    %2666 = vmatpush1.msra.mxu0 %v2630
    %2667 = vmatprep.subr.mxu0 0.0
    %2668 = vmatpush1.msra.mxu0 %v2631
    %2669 = vmatprep.subr.mxu0 0.0
    %2670 = vmatpush1.msra.mxu0 %v2632
    %2671 = vmatprep.subr.mxu0 0.0
    %2672 = vmatpush1.msra.mxu0 %v2633
    %2673 = vmatprep.subr.mxu0 0.0
    %2674 = vmatpush1.msra.mxu0 %v2634
    %2675 = vmatprep.subr.mxu0 0.0
    %2676 = vmatpush1.msra.mxu0 %v2635
    %2677 = vmatprep.subr.mxu0 0.0
    %2678 = vmatpush1.msra.mxu0 %v2636
    %2679 = vmatprep.subr.mxu0 0.0
    %2680 = vmatpush1.msra.mxu0 %v2637
    %2681 = vmatprep.subr.mxu0 0.0
    %2682 = vmatpush1.msra.mxu0 %v2638
    %2683 = vmatprep.subr.mxu0 0.0
    %2684 = vmatpush1.msra.mxu0 %v2639
    %2685 = vmatprep.subr.mxu0 0.0
    %2686 = vmatpush1.msra.mxu0 %v2640
    %2687 = vmatprep.subr.mxu0 0.0
    %2688 = vmatpush1.msra.mxu0 %v2641
    %2689 = vmatprep.subr.mxu0 0.0
    %2690 = vmatpush1.msra.mxu0 %v2642
    %2691 = vmatprep.subr.mxu0 0.0
    %2692 = vmatpush1.msra.mxu0 %v2643
    %2693 = vmatprep.subr.mxu0 0.0
    %2694 = vmatpush1.msra.mxu0 %v2644
    %2695 = vmatprep.subr.mxu0 0.0
    %2696 = vmatpush1.msra.mxu0 0.0
    %2697 = vmatprep.subr.mxu0 0.0
    %2698 = vmatpush1.msra.mxu0 0.0
    %2699 = vmatprep.subr.mxu0 0.0
    %2700 = vmatpush1.msra.mxu0 0.0
    %2701 = vmatprep.subr.mxu0 0.0
    %2702 = vmatpush1.msra.mxu0 0.0
    %2703 = vmatprep.subr.mxu0 0.0
    %2704 = vmatpush1.msra.mxu0 0.0
    %2705 = vmatprep.subr.mxu0 0.0
    %2706 = vmatpush1.msra.mxu0 0.0
    %2707 = vmatprep.subr.mxu0 0.0
    %2708 = vmatpush1.msra.mxu0 0.0
    %2709 = vmatprep.subr.mxu0 0.0
    %2710 = vmatpush1.msra.mxu0 0.0
    %2711 = vmatprep.subr.mxu0 0.0
    %2712 = vmatpush1.msra.mxu0 0.0
    %2713 = vmatprep.subr.mxu0 0.0
    %2714 = vmatpush1.msra.mxu0 0.0
    %2715 = vmatprep.subr.mxu0 0.0
    %2716 = vmatpush1.msra.mxu0 0.0
    %2717 = vmatprep.subr.mxu0 0.0
    %2718 = vmatpush1.msra.mxu0 0.0
    %2719 = vmatprep.subr.mxu0 0.0
    %2720 = vmatpush1.msra.mxu0 0.0
    %2721 = vmatprep.subr.mxu0 0.0
    %2722 = vmatpush1.msra.mxu0 0.0
    %2723 = vmatprep.subr.mxu0 0.0
    %2724 = vmatpush1.msra.mxu0 0.0
    %2725 = vmatprep.subr.mxu0 0.0
    %2726 = vmatpush1.msra.mxu0 0.0
    %2727 = vmatprep.mubr.f32.mxu0 0.0
    %2728 = vmatmul.mubr.f32.gmra.mrb[0].mxu0 %v2647
    %v2729 = vpop.f32.mrb[0].mxu0
    %v2730 = vadd.f32 0.0, %v2729
    %v2731 = vpop.f32.mrb[0].mxu0
    %2732 = vmatprep.mubr.f32.mxu0 0.0
    %2733 = vmatmul.mubr.f32.gmra.mrb[0].mxu0 %v2648
    %v2734 = vpop.f32.mrb[0].mxu0
    %v2735 = vadd.f32 0.0, %v2734
    %v2736 = vpop.f32.mrb[0].mxu0
    %2737 = vmatprep.mubr.f32.mxu0 0.0
    %2738 = vmatmul.mubr.f32.gmra.mrb[0].mxu0 %v2649
    %v2739 = vpop.f32.mrb[0].mxu0
    %v2740 = vadd.f32 0.0, %v2739
    %v2741 = vpop.f32.mrb[0].mxu0
    %2742 = vmatprep.mubr.f32.mxu0 0.0
    %2743 = vmatmul.mubr.f32.gmra.mrb[0].mxu0 %v2650
    %v2744 = vpop.f32.mrb[0].mxu0
    %v2745 = vadd.f32 0.0, %v2744
    %v2746 = vpop.f32.mrb[0].mxu0
    %2747 = vmatprep.mubr.f32.mxu0 0.0
    %2748 = vmatmul.mubr.f32.gmra.mrb[0].mxu0 %v2651
    %v2749 = vpop.f32.mrb[0].mxu0
    %v2750 = vadd.f32 0.0, %v2749
    %v2751 = vpop.f32.mrb[0].mxu0
    %2752 = vmatprep.mubr.f32.mxu0 0.0
    %2753 = vmatmul.mubr.f32.gmra.mrb[0].mxu0 %v2652
    %v2754 = vpop.f32.mrb[0].mxu0
    %v2755 = vadd.f32 0.0, %v2754
    %v2756 = vpop.f32.mrb[0].mxu0
    %2757 = vmatprep.mubr.f32.mxu0 0.0
    %2758 = vmatmul.mubr.f32.gmra.mrb[0].mxu0 %v2653
    %v2759 = vpop.f32.mrb[0].mxu0
    %v2760 = vadd.f32 0.0, %v2759
    %v2761 = vpop.f32.mrb[0].mxu0
    %2762 = vmatprep.mubr.f32.mxu0 0.0
    %2763 = vmatmul.mubr.f32.gmra.mrb[0].mxu0 %v2654
    %v2764 = vpop.f32.mrb[0].mxu0
    %v2765 = vadd.f32 0.0, %v2764
    %v2766 = vpop.f32.mrb[0].mxu0
    %2767 = vmatprep.mubr.f32.mxu0 0.0
    %2768 = vmatmul.mubr.f32.gmra.mrb[0].mxu0 %v2655
    %v2769 = vpop.f32.mrb[0].mxu0
    %v2770 = vadd.f32 0.0, %v2769
    %v2771 = vpop.f32.mrb[0].mxu0
    %2772 = vmatprep.mubr.f32.mxu0 0.0
    %2773 = vmatmul.mubr.f32.gmra.mrb[0].mxu0 %v2656
    %v2774 = vpop.f32.mrb[0].mxu0
    %v2775 = vadd.f32 0.0, %v2774
    %v2776 = vpop.f32.mrb[0].mxu0
    %2777 = vmatprep.mubr.f32.mxu0 0.0
    %2778 = vmatmul.mubr.f32.gmra.mrb[0].mxu0 %v2657
    %v2779 = vpop.f32.mrb[0].mxu0
    %v2780 = vadd.f32 0.0, %v2779
    %v2781 = vpop.f32.mrb[0].mxu0
    %2782 = vmatprep.mubr.f32.mxu0 0.0
    %2783 = vmatmul.mubr.f32.gmra.mrb[0].mxu0 %v2658
    %v2784 = vpop.f32.mrb[0].mxu0
    %v2785 = vadd.f32 0.0, %v2784
    %v2786 = vpop.f32.mrb[0].mxu0
    %2787 = vmatprep.mubr.f32.mxu0 0.0
    %2788 = vmatmul.mubr.f32.gmra.mrb[0].mxu0 %v2659
    %v2789 = vpop.f32.mrb[0].mxu0
    %v2790 = vadd.f32 0.0, %v2789
    %v2791 = vpop.f32.mrb[0].mxu0
    %2792 = vmatprep.mubr.f32.mxu0 0.0
    %2793 = vmatmul.mubr.f32.gmra.mrb[0].mxu0 %v2660
    %v2794 = vpop.f32.mrb[0].mxu0
    %v2795 = vadd.f32 0.0, %v2794
    %v2796 = vpop.f32.mrb[0].mxu0
    %2797 = vmatprep.mubr.f32.mxu0 0.0
    %2798 = vmatmul.mubr.f32.gmra.mrb[0].mxu0 %v2661
    %v2799 = vpop.f32.mrb[0].mxu0
    %v2800 = vadd.f32 0.0, %v2799
    %v2801 = vpop.f32.mrb[0].mxu0
    %2802 = vmatprep.mubr.f32.mxu0 0.0
    %2803 = vmatmul.mubr.f32.gmra.mrb[0].mxu0 %v2662
    %v2804 = vpop.f32.mrb[0].mxu0
    %v2805 = vadd.f32 0.0, %v2804
    %v2806 = vpop.f32.mrb[0].mxu0
    %2807 = vdwg.mxu0
    %v2808 = vld [vmem:[%s883] sm:$0xff]
    %v2809 = vld [vmem:[%s883 + $0x8] sm:$0xff]
    %v2810 = vld [vmem:[%s883 + $0x10] sm:$0xff]
    %v2811 = vld [vmem:[%s883 + $0x18] sm:$0xff]
    %v2812 = vld [vmem:[%s883 + $0x20] sm:$0xff]
    %v2813 = vld [vmem:[%s883 + $0x28] sm:$0xff]
    %v2814 = vld [vmem:[%s883 + $0x30] sm:$0xff]
    %v2815 = vld [vmem:[%s883 + $0x38] sm:$0xff]
    %v2816 = vld [vmem:[%s883 + $0x40] sm:$0xff]
    %v2817 = vld [vmem:[%s883 + $0x48] sm:$0xff]
    %v2818 = vld [vmem:[%s883 + $0x50] sm:$0xff]
    %v2819 = vld [vmem:[%s883 + $0x58] sm:$0xff]
    %v2820 = vld [vmem:[%s883 + $0x60] sm:$0xff]
    %v2821 = vld [vmem:[%s883 + $0x68] sm:$0xff]
    %v2822 = vld [vmem:[%s883 + $0x70] sm:$0xff]
    %v2823 = vld [vmem:[%s883 + $0x78] sm:$0xff]
    %2824 = vmatprep.subr.mxu0 0.0
    %2825 = vmatpush1.msra.mxu0 %v2808
    %2826 = vmatprep.subr.mxu0 0.0
    %2827 = vmatpush1.msra.mxu0 %v2809
    %2828 = vmatprep.subr.mxu0 0.0
    %2829 = vmatpush1.msra.mxu0 %v2810
    %2830 = vmatprep.subr.mxu0 0.0
    %2831 = vmatpush1.msra.mxu0 %v2811
    %2832 = vmatprep.subr.mxu0 0.0
    %2833 = vmatpush1.msra.mxu0 %v2812
    %2834 = vmatprep.subr.mxu0 0.0
    %2835 = vmatpush1.msra.mxu0 %v2813
    %2836 = vmatprep.subr.mxu0 0.0
    %2837 = vmatpush1.msra.mxu0 %v2814
    %2838 = vmatprep.subr.mxu0 0.0
    %2839 = vmatpush1.msra.mxu0 %v2815
    %2840 = vmatprep.subr.mxu0 0.0
    %2841 = vmatpush1.msra.mxu0 %v2816
    %2842 = vmatprep.subr.mxu0 0.0
    %2843 = vmatpush1.msra.mxu0 %v2817
    %2844 = vmatprep.subr.mxu0 0.0
    %2845 = vmatpush1.msra.mxu0 %v2818
    %2846 = vmatprep.subr.mxu0 0.0
    %2847 = vmatpush1.msra.mxu0 %v2819
    %2848 = vmatprep.subr.mxu0 0.0
    %2849 = vmatpush1.msra.mxu0 %v2820
    %2850 = vmatprep.subr.mxu0 0.0
    %2851 = vmatpush1.msra.mxu0 %v2821
    %2852 = vmatprep.subr.mxu0 0.0
    %2853 = vmatpush1.msra.mxu0 %v2822
    %2854 = vmatprep.subr.mxu0 0.0
    %2855 = vmatpush1.msra.mxu0 %v2823
    %2856 = vmatprep.subr.mxu0 0.0
    %2857 = vmatpush1.msra.mxu0 0.0
    %2858 = vmatprep.subr.mxu0 0.0
    %2859 = vmatpush1.msra.mxu0 0.0
    %2860 = vmatprep.subr.mxu0 0.0
    %2861 = vmatpush1.msra.mxu0 0.0
    %2862 = vmatprep.subr.mxu0 0.0
    %2863 = vmatpush1.msra.mxu0 0.0
    %2864 = vmatprep.subr.mxu0 0.0
    %2865 = vmatpush1.msra.mxu0 0.0
    %2866 = vmatprep.subr.mxu0 0.0
    %2867 = vmatpush1.msra.mxu0 0.0
    %2868 = vmatprep.subr.mxu0 0.0
    %2869 = vmatpush1.msra.mxu0 0.0
    %2870 = vmatprep.subr.mxu0 0.0
    %2871 = vmatpush1.msra.mxu0 0.0
    %2872 = vmatprep.subr.mxu0 0.0
    %2873 = vmatpush1.msra.mxu0 0.0
    %2874 = vmatprep.subr.mxu0 0.0
    %2875 = vmatpush1.msra.mxu0 0.0
    %2876 = vmatprep.subr.mxu0 0.0
    %2877 = vmatpush1.msra.mxu0 0.0
    %2878 = vmatprep.subr.mxu0 0.0
    %2879 = vmatpush1.msra.mxu0 0.0
    %2880 = vmatprep.subr.mxu0 0.0
    %2881 = vmatpush1.msra.mxu0 0.0
    %2882 = vmatprep.subr.mxu0 0.0
    %2883 = vmatpush1.msra.mxu0 0.0
    %2884 = vmatprep.subr.mxu0 0.0
    %2885 = vmatpush1.msra.mxu0 0.0
    %2886 = vmatprep.subr.mxu0 0.0
    %2887 = vmatpush1.msra.mxu0 0.0
    %2888 = vmatprep.mubr.f32.mxu0 0.0
    %2889 = vmatmul.mubr.f32.gmra.mrb[0].mxu0 %v2730
    %v2890 = vpop.f32.mrb[0].mxu0
    %v2891 = vadd.f32 %v790, %v2890
    %v2892 = vpop.f32.mrb[0].mxu0
    %2893 = vmatprep.mubr.f32.mxu0 0.0
    %2894 = vmatmul.mubr.f32.gmra.mrb[0].mxu0 %v2735
    %v2895 = vpop.f32.mrb[0].mxu0
    %v2896 = vadd.f32 %v796, %v2895
    %v2897 = vpop.f32.mrb[0].mxu0
    %2898 = vmatprep.mubr.f32.mxu0 0.0
    %2899 = vmatmul.mubr.f32.gmra.mrb[0].mxu0 %v2740
    %v2900 = vpop.f32.mrb[0].mxu0
    %v2901 = vadd.f32 %v802, %v2900
    %v2902 = vpop.f32.mrb[0].mxu0
    %2903 = vmatprep.mubr.f32.mxu0 0.0
    %2904 = vmatmul.mubr.f32.gmra.mrb[0].mxu0 %v2745
    %v2905 = vpop.f32.mrb[0].mxu0
    %v2906 = vadd.f32 %v808, %v2905
    %v2907 = vpop.f32.mrb[0].mxu0
    %2908 = vmatprep.mubr.f32.mxu0 0.0
    %2909 = vmatmul.mubr.f32.gmra.mrb[0].mxu0 %v2750
    %v2910 = vpop.f32.mrb[0].mxu0
    %v2911 = vadd.f32 %v814, %v2910
    %v2912 = vpop.f32.mrb[0].mxu0
    %2913 = vmatprep.mubr.f32.mxu0 0.0
    %2914 = vmatmul.mubr.f32.gmra.mrb[0].mxu0 %v2755
    %v2915 = vpop.f32.mrb[0].mxu0
    %v2916 = vadd.f32 %v820, %v2915
    %v2917 = vpop.f32.mrb[0].mxu0
    %2918 = vmatprep.mubr.f32.mxu0 0.0
    %2919 = vmatmul.mubr.f32.gmra.mrb[0].mxu0 %v2760
    %v2920 = vpop.f32.mrb[0].mxu0
    %v2921 = vadd.f32 %v826, %v2920
    %v2922 = vpop.f32.mrb[0].mxu0
    %2923 = vmatprep.mubr.f32.mxu0 0.0
    %2924 = vmatmul.mubr.f32.gmra.mrb[0].mxu0 %v2765
    %v2925 = vpop.f32.mrb[0].mxu0
    %v2926 = vadd.f32 %v832, %v2925
    %v2927 = vpop.f32.mrb[0].mxu0
    %2928 = vmatprep.mubr.f32.mxu0 0.0
    %2929 = vmatmul.mubr.f32.gmra.mrb[0].mxu0 %v2770
    %v2930 = vpop.f32.mrb[0].mxu0
    %v2931 = vadd.f32 %v838, %v2930
    %v2932 = vpop.f32.mrb[0].mxu0
    %2933 = vmatprep.mubr.f32.mxu0 0.0
    %2934 = vmatmul.mubr.f32.gmra.mrb[0].mxu0 %v2775
    %v2935 = vpop.f32.mrb[0].mxu0
    %v2936 = vadd.f32 %v844, %v2935
    %v2937 = vpop.f32.mrb[0].mxu0
    %2938 = vmatprep.mubr.f32.mxu0 0.0
    %2939 = vmatmul.mubr.f32.gmra.mrb[0].mxu0 %v2780
    %v2940 = vpop.f32.mrb[0].mxu0
    %v2941 = vadd.f32 %v850, %v2940
    %v2942 = vpop.f32.mrb[0].mxu0
    %2943 = vmatprep.mubr.f32.mxu0 0.0
    %2944 = vmatmul.mubr.f32.gmra.mrb[0].mxu0 %v2785
    %v2945 = vpop.f32.mrb[0].mxu0
    %v2946 = vadd.f32 %v856, %v2945
    %v2947 = vpop.f32.mrb[0].mxu0
    %2948 = vmatprep.mubr.f32.mxu0 0.0
    %2949 = vmatmul.mubr.f32.gmra.mrb[0].mxu0 %v2790
    %v2950 = vpop.f32.mrb[0].mxu0
    %v2951 = vadd.f32 %v862, %v2950
    %v2952 = vpop.f32.mrb[0].mxu0
    %2953 = vmatprep.mubr.f32.mxu0 0.0
    %2954 = vmatmul.mubr.f32.gmra.mrb[0].mxu0 %v2795
    %v2955 = vpop.f32.mrb[0].mxu0
    %v2956 = vadd.f32 %v868, %v2955
    %v2957 = vpop.f32.mrb[0].mxu0
    %2958 = vmatprep.mubr.f32.mxu0 0.0
    %2959 = vmatmul.mubr.f32.gmra.mrb[0].mxu0 %v2800
    %v2960 = vpop.f32.mrb[0].mxu0
    %v2961 = vadd.f32 %v874, %v2960
    %v2962 = vpop.f32.mrb[0].mxu0
    %2963 = vmatprep.mubr.f32.mxu0 0.0
    %2964 = vmatmul.mubr.f32.gmra.mrb[0].mxu0 %v2805
    %v2965 = vpop.f32.mrb[0].mxu0
    %v2966 = vadd.f32 %v880, %v2965
    %v2967 = vpop.f32.mrb[0].mxu0
    %2968 = vdwg.mxu0
    %v2969 = vmax.f32 %v2891, 0.0
    %v2970 = vmax.f32 %v2896, 0.0
    %v2971 = vmax.f32 %v2901, 0.0
    %v2972 = vmax.f32 %v2906, 0.0
    %v2973 = vmax.f32 %v2911, 0.0
    %v2974 = vmax.f32 %v2916, 0.0
    %v2975 = vmax.f32 %v2921, 0.0
    %v2976 = vmax.f32 %v2926, 0.0
    %v2977 = vmax.f32 %v2931, 0.0
    %v2978 = vmax.f32 %v2936, 0.0
    %v2979 = vmax.f32 %v2941, 0.0
    %v2980 = vmax.f32 %v2946, 0.0
    %v2981 = vmax.f32 %v2951, 0.0
    %v2982 = vmax.f32 %v2956, 0.0
    %v2983 = vmax.f32 %v2961, 0.0
    %v2984 = vmax.f32 %v2966, 0.0
    %v2985 = vld [vmem:[#allocation6] sm:$0xff]
    %v2986 = vld [vmem:[#allocation6 + $0x8] sm:$0xff]
    %v2987 = vld [vmem:[#allocation6 + $0x10] sm:$0xff]
    %v2988 = vld [vmem:[#allocation6 + $0x18] sm:$0xff]
    %v2989 = vld [vmem:[#allocation6 + $0x20] sm:$0xff]
    %v2990 = vld [vmem:[#allocation6 + $0x28] sm:$0xff]
    %v2991 = vld [vmem:[#allocation6 + $0x30] sm:$0xff]
    %v2992 = vld [vmem:[#allocation6 + $0x38] sm:$0xff]
    %v2993 = vld [vmem:[#allocation6 + $0x40] sm:$0xff]
    %v2994 = vld [vmem:[#allocation6 + $0x48] sm:$0xff]
    %v2995 = vld [vmem:[#allocation6 + $0x50] sm:$0xff]
    %v2996 = vld [vmem:[#allocation6 + $0x58] sm:$0xff]
    %v2997 = vld [vmem:[#allocation6 + $0x60] sm:$0xff]
    %v2998 = vld [vmem:[#allocation6 + $0x68] sm:$0xff]
    %v2999 = vld [vmem:[#allocation6 + $0x70] sm:$0xff]
    %v3000 = vld [vmem:[#allocation6 + $0x78] sm:$0xff]
    %v3001 = vld [vmem:[%s6] sm:$0x1]
    %v3003 = vlaneseq
    %v3004 = vshrl.u32 %v3003, 7
    %v3005 = vsub.s32 0, %v3004
    %v3006 = vrot.slane %v3001, %v3005
    %3008 = vmatprep.subr.mxu0 0.0
    %3009 = vmatpush1.msra.mxu0 %v2985
    %3010 = vmatprep.subr.mxu0 0.0
    %3011 = vmatpush1.msra.mxu0 %v2986
    %3012 = vmatprep.subr.mxu0 0.0
    %3013 = vmatpush1.msra.mxu0 %v2987
    %3014 = vmatprep.subr.mxu0 0.0
    %3015 = vmatpush1.msra.mxu0 %v2988
    %3016 = vmatprep.subr.mxu0 0.0
    %3017 = vmatpush1.msra.mxu0 %v2989
    %3018 = vmatprep.subr.mxu0 0.0
    %3019 = vmatpush1.msra.mxu0 %v2990
    %3020 = vmatprep.subr.mxu0 0.0
    %3021 = vmatpush1.msra.mxu0 %v2991
    %3022 = vmatprep.subr.mxu0 0.0
    %3023 = vmatpush1.msra.mxu0 %v2992
    %3024 = vmatprep.subr.mxu0 0.0
    %3025 = vmatpush1.msra.mxu0 %v2993
    %3026 = vmatprep.subr.mxu0 0.0
    %3027 = vmatpush1.msra.mxu0 %v2994
    %3028 = vmatprep.subr.mxu0 0.0
    %3029 = vmatpush1.msra.mxu0 %v2995
    %3030 = vmatprep.subr.mxu0 0.0
    %3031 = vmatpush1.msra.mxu0 %v2996
    %3032 = vmatprep.subr.mxu0 0.0
    %3033 = vmatpush1.msra.mxu0 %v2997
    %3034 = vmatprep.subr.mxu0 0.0
    %3035 = vmatpush1.msra.mxu0 %v2998
    %3036 = vmatprep.subr.mxu0 0.0
    %3037 = vmatpush1.msra.mxu0 %v2999
    %3038 = vmatprep.subr.mxu0 0.0
    %3039 = vmatpush1.msra.mxu0 %v3000
    %3040 = vmatprep.subr.mxu0 0.0
    %3041 = vmatpush1.msra.mxu0 0.0
    %3042 = vmatprep.subr.mxu0 0.0
    %3043 = vmatpush1.msra.mxu0 0.0
    %3044 = vmatprep.subr.mxu0 0.0
    %3045 = vmatpush1.msra.mxu0 0.0
    %3046 = vmatprep.subr.mxu0 0.0
    %3047 = vmatpush1.msra.mxu0 0.0
    %3048 = vmatprep.subr.mxu0 0.0
    %3049 = vmatpush1.msra.mxu0 0.0
    %3050 = vmatprep.subr.mxu0 0.0
    %3051 = vmatpush1.msra.mxu0 0.0
    %3052 = vmatprep.subr.mxu0 0.0
    %3053 = vmatpush1.msra.mxu0 0.0
    %3054 = vmatprep.subr.mxu0 0.0
    %3055 = vmatpush1.msra.mxu0 0.0
    %3056 = vmatprep.subr.mxu0 0.0
    %3057 = vmatpush1.msra.mxu0 0.0
    %3058 = vmatprep.subr.mxu0 0.0
    %3059 = vmatpush1.msra.mxu0 0.0
    %3060 = vmatprep.subr.mxu0 0.0
    %3061 = vmatpush1.msra.mxu0 0.0
    %3062 = vmatprep.subr.mxu0 0.0
    %3063 = vmatpush1.msra.mxu0 0.0
    %3064 = vmatprep.subr.mxu0 0.0
    %3065 = vmatpush1.msra.mxu0 0.0
    %3066 = vmatprep.subr.mxu0 0.0
    %3067 = vmatpush1.msra.mxu0 0.0
    %3068 = vmatprep.subr.mxu0 0.0
    %3069 = vmatpush1.msra.mxu0 0.0
    %3070 = vmatprep.subr.mxu0 0.0
    %3071 = vmatpush1.msra.mxu0 0.0
    %3072 = vmatprep.mubr.f32.mxu0 0.0
    %3073 = vmatmul.mubr.f32.gmra.mrb[0].mxu0 %v2969
    %v3074 = vpop.f32.mrb[0].mxu0
    %v3075 = vadd.f32 %v3006, %v3074
    %v3076 = vpop.f32.mrb[0].mxu0
    %3077 = vmatprep.mubr.f32.mxu0 0.0
    %3078 = vmatmul.mubr.f32.gmra.mrb[0].mxu0 %v2970
    %v3079 = vpop.f32.mrb[0].mxu0
    %v3080 = vadd.f32 %v3006, %v3079
    %v3081 = vpop.f32.mrb[0].mxu0
    %3082 = vmatprep.mubr.f32.mxu0 0.0
    %3083 = vmatmul.mubr.f32.gmra.mrb[0].mxu0 %v2971
    %v3084 = vpop.f32.mrb[0].mxu0
    %v3085 = vadd.f32 %v3006, %v3084
    %v3086 = vpop.f32.mrb[0].mxu0
    %3087 = vmatprep.mubr.f32.mxu0 0.0
    %3088 = vmatmul.mubr.f32.gmra.mrb[0].mxu0 %v2972
    %v3089 = vpop.f32.mrb[0].mxu0
    %v3090 = vadd.f32 %v3006, %v3089
    %v3091 = vpop.f32.mrb[0].mxu0
    %3092 = vmatprep.mubr.f32.mxu0 0.0
    %3093 = vmatmul.mubr.f32.gmra.mrb[0].mxu0 %v2973
    %v3094 = vpop.f32.mrb[0].mxu0
    %v3095 = vadd.f32 %v3006, %v3094
    %v3096 = vpop.f32.mrb[0].mxu0
    %3097 = vmatprep.mubr.f32.mxu0 0.0
    %3098 = vmatmul.mubr.f32.gmra.mrb[0].mxu0 %v2974
    %v3099 = vpop.f32.mrb[0].mxu0
    %v3100 = vadd.f32 %v3006, %v3099
    %v3101 = vpop.f32.mrb[0].mxu0
    %3102 = vmatprep.mubr.f32.mxu0 0.0
    %3103 = vmatmul.mubr.f32.gmra.mrb[0].mxu0 %v2975
    %v3104 = vpop.f32.mrb[0].mxu0
    %v3105 = vadd.f32 %v3006, %v3104
    %v3106 = vpop.f32.mrb[0].mxu0
    %3107 = vmatprep.mubr.f32.mxu0 0.0
    %3108 = vmatmul.mubr.f32.gmra.mrb[0].mxu0 %v2976
    %v3109 = vpop.f32.mrb[0].mxu0
    %v3110 = vadd.f32 %v3006, %v3109
    %v3111 = vpop.f32.mrb[0].mxu0
    %3112 = vmatprep.mubr.f32.mxu0 0.0
    %3113 = vmatmul.mubr.f32.gmra.mrb[0].mxu0 %v2977
    %v3114 = vpop.f32.mrb[0].mxu0
    %v3115 = vadd.f32 %v3006, %v3114
    %v3116 = vpop.f32.mrb[0].mxu0
    %3117 = vmatprep.mubr.f32.mxu0 0.0
    %3118 = vmatmul.mubr.f32.gmra.mrb[0].mxu0 %v2978
    %v3119 = vpop.f32.mrb[0].mxu0
    %v3120 = vadd.f32 %v3006, %v3119
    %v3121 = vpop.f32.mrb[0].mxu0
    %3122 = vmatprep.mubr.f32.mxu0 0.0
    %3123 = vmatmul.mubr.f32.gmra.mrb[0].mxu0 %v2979
    %v3124 = vpop.f32.mrb[0].mxu0
    %v3125 = vadd.f32 %v3006, %v3124
    %v3126 = vpop.f32.mrb[0].mxu0
    %3127 = vmatprep.mubr.f32.mxu0 0.0
    %3128 = vmatmul.mubr.f32.gmra.mrb[0].mxu0 %v2980
    %v3129 = vpop.f32.mrb[0].mxu0
    %v3130 = vadd.f32 %v3006, %v3129
    %v3131 = vpop.f32.mrb[0].mxu0
    %3132 = vmatprep.mubr.f32.mxu0 0.0
    %3133 = vmatmul.mubr.f32.gmra.mrb[0].mxu0 %v2981
    %v3134 = vpop.f32.mrb[0].mxu0
    %v3135 = vadd.f32 %v3006, %v3134
    %v3136 = vpop.f32.mrb[0].mxu0
    %3137 = vmatprep.mubr.f32.mxu0 0.0
    %3138 = vmatmul.mubr.f32.gmra.mrb[0].mxu0 %v2982
    %v3139 = vpop.f32.mrb[0].mxu0
    %v3140 = vadd.f32 %v3006, %v3139
    %v3141 = vpop.f32.mrb[0].mxu0
    %3142 = vmatprep.mubr.f32.mxu0 0.0
    %3143 = vmatmul.mubr.f32.gmra.mrb[0].mxu0 %v2983
    %v3144 = vpop.f32.mrb[0].mxu0
    %v3145 = vadd.f32 %v3006, %v3144
    %v3146 = vpop.f32.mrb[0].mxu0
    %3147 = vmatprep.mubr.f32.mxu0 0.0
    %3148 = vmatmul.mubr.f32.gmra.mrb[0].mxu0 %v2984
    %v3149 = vpop.f32.mrb[0].mxu0
    %v3150 = vadd.f32 %v3006, %v3149
    %v3151 = vpop.f32.mrb[0].mxu0
    %3152 = vdwg.mxu0
    %3153 = vst [vmem:[%s8] sm:$0xff] %v3075
    %3154 = vst [vmem:[%s8 + $0x8] sm:$0xff] %v3080
    %3155 = vst [vmem:[%s8 + $0x10] sm:$0xff] %v3085
    %3156 = vst [vmem:[%s8 + $0x18] sm:$0xff] %v3090
    %3157 = vst [vmem:[%s8 + $0x20] sm:$0xff] %v3095
    %3158 = vst [vmem:[%s8 + $0x28] sm:$0xff] %v3100
    %3159 = vst [vmem:[%s8 + $0x30] sm:$0xff] %v3105
    %3160 = vst [vmem:[%s8 + $0x38] sm:$0xff] %v3110
    %3161 = vst [vmem:[%s8 + $0x40] sm:$0xff] %v3115
    %3162 = vst [vmem:[%s8 + $0x48] sm:$0xff] %v3120
    %3163 = vst [vmem:[%s8 + $0x50] sm:$0xff] %v3125
    %3164 = vst [vmem:[%s8 + $0x58] sm:$0xff] %v3130
    %3165 = vst [vmem:[%s8 + $0x60] sm:$0xff] %v3135
    %3166 = vst [vmem:[%s8 + $0x68] sm:$0xff] %v3140
    %3167 = vst [vmem:[%s8 + $0x70] sm:$0xff] %v3145
    %3168 = vst [vmem:[%s8 + $0x78] sm:$0xff] %v3150
    // Predicated region
    $region62: #{net_forward.1} parent=1 // pred_check
      _
    $region63: #{net_forward.1} parent=1 // pred_check_branch
      %3170 = sbr.rel (0) target = $region65
    $region64: #{net_forward.1} parent=1 // pred_region
      _
    $region65: #{net_forward.1} parent=1 // pred_fallthru
      _
    // Predicated region
    $region66: #{net_forward.1} parent=1 // pred_check
      _
    $region67: #{net_forward.1} parent=1 // pred_check_branch
      %3172 = sbr.rel (0) target = $region69
    $region68: #{net_forward.1} parent=1 // pred_region
      _
    $region69: #{net_forward.1} parent=1 // pred_fallthru
      _
    %3173 = vsyncpa [#allocation5], 1
    %3174 = vsyncpa [#allocation7], 1
  %3175 = vsyncmov [#allocation3]
  %s3176 = vpop.sfrf %3175
  %p3177 = scmp.eq.s32.totalorder %s3176, 0
  %p3178 = pneg %p3177
  %3180 = shalt.err (%p3178)
  %s3181 = scalar_lea.sflag [#allocation3], 1
  %3182 = vsyncmov %s3181
  %s3183 = vpop.sfrf %3182
  %p3184 = scmp.eq.s32.totalorder %s3183, 0
  %p3185 = pneg %p3184
  %3187 = shalt.err (%p3185)

</llo_original>
